<compile_context>
chip_gen: v6e
topology: v6e:2x2x1
jax: 0.10.0
libtpu: 0.0.40
codegen_flags: <defaults>
</compile_context>

<pallas_src>
import functools
from collections import namedtuple

import jax
import jax.numpy as jnp
from jax.experimental import pallas as pl
from jax.experimental.pallas import tpu as pltpu

BN_EPS = 1e-5          # PyTorch BatchNorm1d default eps
NORM_EPS = 1e-24       # added under rsqrt of sum(x^2) to avoid NaN on zero rows

ENCODER_DIMS = [512, 256, 128, 64, 32, 16, 3]
DECODER_DIMS = [16, 32, 64, 128, 256, 512, 768]
INPUT_DIM = 768
MAX_DIM = 768          # lane width of the packed vector table

StageMeta = namedtuple(
    "StageMeta",
    "din dout use_relu normalize_after bias_row bn_scale_row bn_shift_row")


# ----------------------------- fused Pallas kernel ---------------------------

def _fused_forward_kernel(*refs, stages):
    """Whole autoencoder forward on one batch tile.

    refs = (x_ref, w_0 ... w_13, vecs_ref, o_ref)
      x_ref    : (TILE_B, 768) f32
      w_i      : (din_i, dout_i) bf16, VMEM-resident across grid steps
      vecs_ref : (26, 768) f32 packed biases + folded BN scale/shift rows
      o_ref    : (TILE_B, 768) f32
    """
    x_ref = refs[0]
    w_refs = refs[1:1 + len(stages)]
    vecs_ref = refs[1 + len(stages)]
    o_ref = refs[-1]

    h = x_ref[...]  # f32 (TILE_B, 768)
    for st, w_ref in zip(stages, w_refs):
        if st.bn_scale_row >= 0:
            # Inference-mode BatchNorm folded on host into a single FMA.
            scale = vecs_ref[st.bn_scale_row:st.bn_scale_row + 1, 0:st.din]
            shift = vecs_ref[st.bn_shift_row:st.bn_shift_row + 1, 0:st.din]
            h = h * scale + shift
        if st.use_relu:
            h = jnp.maximum(h, 0.0)
        bias = vecs_ref[st.bias_row:st.bias_row + 1, 0:st.dout]
        # bf16 operands on the MXU, f32 accumulation.
        h = jnp.dot(h.astype(jnp.bfloat16), w_ref[...],
                    preferred_element_type=jnp.float32) + bias
        if st.normalize_after:
            # x / ||x||  ==  x * rsqrt(sum(x^2) + eps)   (EUP rsqrt, no divide)
            h = h * jax.lax.rsqrt(
                jnp.sum(h * h, axis=-1, keepdims=True) + NORM_EPS)
    o_ref[...] = h.astype(o_ref.dtype)


# ------------------------------- host wrapper --------------------------------

def build_stage_configs():
    cfgs = []
    enc_in = [INPUT_DIM] + ENCODER_DIMS[:-1]
    for i, (din, dout) in enumerate(zip(enc_in, ENCODER_DIMS)):
        cfgs.append(dict(din=din, dout=dout,
                         use_bn=(i != 0), use_relu=(i != 0),
                         normalize_after=(i == len(ENCODER_DIMS) - 1)))
    dec_in = [ENCODER_DIMS[-1]] + DECODER_DIMS[:-1]
    for i, (din, dout) in enumerate(zip(dec_in, DECODER_DIMS)):
        cfgs.append(dict(din=din, dout=dout,
                         use_bn=False, use_relu=(i != 0),
                         normalize_after=(i == len(DECODER_DIMS) - 1)))
    return cfgs


def init_params(key, cfgs):
    """PyTorch-default-like Linear init; BN running stats randomized so the
    BN math is actually exercised (at true init they'd be mean=0, var=1)."""
    params = []
    for cfg in cfgs:
        key, kw, kb, kg, kbe, km, kv = jax.random.split(key, 7)
        bound = 1.0 / (cfg["din"] ** 0.5)
        w = jax.random.uniform(kw, (cfg["din"], cfg["dout"]), jnp.float32,
                               -bound, bound).astype(jnp.bfloat16)
        b = jax.random.uniform(kb, (cfg["dout"],), jnp.float32, -bound, bound)
        p = dict(w=w, b=b)
        if cfg["use_bn"]:
            p["gamma"] = jax.random.uniform(kg, (cfg["din"],), jnp.float32, 0.5, 1.5)
            p["beta"] = 0.1 * jax.random.normal(kbe, (cfg["din"],), jnp.float32)
            p["running_mean"] = 0.1 * jax.random.normal(km, (cfg["din"],), jnp.float32)
            p["running_var"] = jax.random.uniform(kv, (cfg["din"],), jnp.float32, 0.5, 1.5)
        params.append(p)
    return params


def fold_bn(p):
    scale = p["gamma"] * jax.lax.rsqrt(p["running_var"] + BN_EPS)
    shift = p["beta"] - p["running_mean"] * scale
    return scale, shift


def prepare_kernel_inputs(cfgs, params):
    """Pack all 1-D parameter vectors into one (num_rows, 768) f32 table."""
    weights, rows, metas = [], [], []

    def add_row(vec):
        r = len(rows)
        row = jnp.zeros((MAX_DIM,), jnp.float32).at[:vec.shape[0]].set(
            vec.astype(jnp.float32))
        rows.append(row)
        return r

    for cfg, p in zip(cfgs, params):
        weights.append(p["w"].astype(jnp.bfloat16))
        bias_row = add_row(p["b"])
        if cfg["use_bn"]:
            scale, shift = fold_bn(p)
            s_row = add_row(scale)
            t_row = add_row(shift)
        else:
            s_row = t_row = -1
        metas.append(StageMeta(cfg["din"], cfg["dout"], cfg["use_relu"],
                               cfg["normalize_after"], bias_row, s_row, t_row))
    vecs = jnp.stack(rows, axis=0)  # (26, 768) f32, ~80 KiB
    return weights, vecs, tuple(metas)


def autoencoder_forward(x, weights, vecs, stages, *, tile_b=256):
    """Batch-tiled fused forward.

    tile_b: 256+ recommended on v6e/v7x (fills the 256-wide MXU M dim),
            128 is enough on v5e.  Capped to B for small batches.
    """
    B = x.shape[0]
    out_dim = stages[-1].dout
    tile_b = min(tile_b, B)
    assert B % 8 == 0 and tile_b % 8 == 0, "batch / tile must be a multiple of 8"

    in_specs = [pl.BlockSpec((tile_b, INPUT_DIM), lambda i: (i, 0))]
    for w in weights:
        # Full-extent block + constant index_map -> DMA'd once, VMEM-resident.
        in_specs.append(pl.BlockSpec(w.shape, lambda i: (0, 0)))
    in_specs.append(pl.BlockSpec(vecs.shape, lambda i: (0, 0)))

    kernel = functools.partial(_fused_forward_kernel, stages=stages)
    return pl.pallas_call(
        kernel,
        out_shape=jax.ShapeDtypeStruct((B, out_dim), jnp.float32),
        grid=(pl.cdiv(B, tile_b),),
        in_specs=in_specs,
        out_specs=pl.BlockSpec((tile_b, out_dim), lambda i: (i, 0)),
        compiler_params=pltpu.CompilerParams(
            dimension_semantics=("parallel",),      # megacore sharding on v7x
            vmem_limit_bytes=48 * 1024 * 1024,       # > v5e's 16 MiB default,
        ),                                           # < v7x's 64 MiB physical
    )(x, *weights, vecs)


# ------------------------------ pure-JAX reference ---------------------------

def autoencoder_reference(x, cfgs, params):
    """Identical math: folded eval-mode BN, bf16 matmul operands, f32 accum."""
    h = x
    for cfg, p in zip(cfgs, params):
        if cfg["use_bn"]:
            scale, shift = fold_bn(p)
            h = h * scale + shift
        if cfg["use_relu"]:
            h = jnp.maximum(h, 0.0)
        h = jnp.dot(h.astype(jnp.bfloat16), p["w"].astype(jnp.bfloat16),
                    preferred_element_type=jnp.float32) + p["b"]
        if cfg["normalize_after"]:
            h = h * jax.lax.rsqrt(jnp.sum(h * h, axis=-1, keepdims=True) + NORM_EPS)
    return h


# ----------------------------------- main -------------------------------------

if __name__ == "__main__":
    key = jax.random.PRNGKey(0)
    key_params, key_x = jax.random.split(key)

    cfgs = build_stage_configs()
    params = init_params(key_params, cfgs)
    weights, vecs, stages = prepare_kernel_inputs(cfgs, params)

    B = 64
    x = jax.random.normal(key_x, (B, INPUT_DIM), jnp.float32)

    # tile_b=32 -> grid=(2,): exercises the batch grid while staying small.
    out = autoencoder_forward(x, weights, vecs, stages, tile_b=32)
    out = jax.block_until_ready(out)

    ref = autoencoder_reference(x, cfgs, params)
    assert out.shape == (B, DECODER_DIMS[-1])
    assert bool(jnp.all(jnp.isfinite(out))), "non-finite output"
    max_err = float(jnp.max(jnp.abs(out - ref)))
    assert jnp.allclose(out, ref, rtol=5e-3, atol=5e-3), f"mismatch vs reference: {max_err}"

    print("KERNEL_OK")
</pallas_src>

<mosaic_0001>
module attributes {stable_mosaic.version = 11 : i64} {
  func.func @_fused_forward_kernel(%arg0: i32, %arg1: memref<32x768xf32, #tpu.memory_space<vmem>>, %arg2: memref<768x512xbf16, #tpu.memory_space<vmem>>, %arg3: memref<512x256xbf16, #tpu.memory_space<vmem>>, %arg4: memref<256x128xbf16, #tpu.memory_space<vmem>>, %arg5: memref<128x64xbf16, #tpu.memory_space<vmem>>, %arg6: memref<64x32xbf16, #tpu.memory_space<vmem>>, %arg7: memref<32x16xbf16, #tpu.memory_space<vmem>>, %arg8: memref<16x3xbf16, #tpu.memory_space<vmem>>, %arg9: memref<3x16xbf16, #tpu.memory_space<vmem>>, %arg10: memref<16x32xbf16, #tpu.memory_space<vmem>>, %arg11: memref<32x64xbf16, #tpu.memory_space<vmem>>, %arg12: memref<64x128xbf16, #tpu.memory_space<vmem>>, %arg13: memref<128x256xbf16, #tpu.memory_space<vmem>>, %arg14: memref<256x512xbf16, #tpu.memory_space<vmem>>, %arg15: memref<512x768xbf16, #tpu.memory_space<vmem>>, %arg16: memref<26x768xf32, #tpu.memory_space<vmem>>, %arg17: memref<32x768xf32, #tpu.memory_space<vmem>>) attributes {dimension_semantics = [#tpu.dimension_semantics<parallel>], iteration_bounds = array<i64: 2>, scalar_prefetch = 0 : i64, scratch_operands = 0 : i64, tpu.core_type = #tpu.core_type<tc>, window_params = [{transform_indices = @transform_0, window_bounds = array<i64: 32, 768>}, {pipeline_mode = #tpu.pipeline_mode<synchronous>, transform_indices = @transform_1, window_bounds = array<i64: 768, 512>}, {pipeline_mode = #tpu.pipeline_mode<synchronous>, transform_indices = @transform_2, window_bounds = array<i64: 512, 256>}, {pipeline_mode = #tpu.pipeline_mode<synchronous>, transform_indices = @transform_3, window_bounds = array<i64: 256, 128>}, {pipeline_mode = #tpu.pipeline_mode<synchronous>, transform_indices = @transform_4, window_bounds = array<i64: 128, 64>}, {pipeline_mode = #tpu.pipeline_mode<synchronous>, transform_indices = @transform_5, window_bounds = array<i64: 64, 32>}, {pipeline_mode = #tpu.pipeline_mode<synchronous>, transform_indices = @transform_6, window_bounds = array<i64: 32, 16>}, {pipeline_mode = #tpu.pipeline_mode<synchronous>, transform_indices = @transform_7, window_bounds = array<i64: 16, 3>}, {pipeline_mode = #tpu.pipeline_mode<synchronous>, transform_indices = @transform_8, window_bounds = array<i64: 3, 16>}, {pipeline_mode = #tpu.pipeline_mode<synchronous>, transform_indices = @transform_9, window_bounds = array<i64: 16, 32>}, {pipeline_mode = #tpu.pipeline_mode<synchronous>, transform_indices = @transform_10, window_bounds = array<i64: 32, 64>}, {pipeline_mode = #tpu.pipeline_mode<synchronous>, transform_indices = @transform_11, window_bounds = array<i64: 64, 128>}, {pipeline_mode = #tpu.pipeline_mode<synchronous>, transform_indices = @transform_12, window_bounds = array<i64: 128, 256>}, {pipeline_mode = #tpu.pipeline_mode<synchronous>, transform_indices = @transform_13, window_bounds = array<i64: 256, 512>}, {pipeline_mode = #tpu.pipeline_mode<synchronous>, transform_indices = @transform_14, window_bounds = array<i64: 512, 768>}, {pipeline_mode = #tpu.pipeline_mode<synchronous>, transform_indices = @transform_15, window_bounds = array<i64: 26, 768>}, {transform_indices = @transform_16, window_bounds = array<i64: 32, 768>}]} {
    %c0 = arith.constant 0 : index
    %c0_0 = arith.constant 0 : index
    %0 = vector.load %arg1[%c0, %c0_0] : memref<32x768xf32, #tpu.memory_space<vmem>>, vector<32x768xf32>
    %c0_1 = arith.constant 0 : index
    %c0_2 = arith.constant 0 : index
    %1 = vector.load %arg16[%c0_1, %c0_2] : memref<26x768xf32, #tpu.memory_space<vmem>>, vector<1x512xf32>
    %2 = arith.truncf %0 : vector<32x768xf32> to vector<32x768xbf16>
    %c0_3 = arith.constant 0 : index
    %c0_4 = arith.constant 0 : index
    %3 = vector.load %arg2[%c0_3, %c0_4] : memref<768x512xbf16, #tpu.memory_space<vmem>>, vector<768x512xbf16>
    %cst = arith.constant dense<0.000000e+00> : vector<32x512xf32>
    %4 = tpu.matmul %2, %3, %cst {dimension_numbers = #tpu.dot_dimension_numbers<[1], [0], [0], [1], [0, 0, 1, 1], [], []>} : vector<32x768xbf16>, vector<768x512xbf16>, vector<32x512xf32> -> vector<32x512xf32>
    %5 = vector.broadcast %1 : vector<1x512xf32> to vector<32x512xf32>
    %6 = arith.addf %4, %5 : vector<32x512xf32>
    %c2 = arith.constant 2 : index
    %c0_5 = arith.constant 0 : index
    %7 = vector.load %arg16[%c2, %c0_5] : memref<26x768xf32, #tpu.memory_space<vmem>>, vector<1x512xf32>
    %c3 = arith.constant 3 : index
    %c0_6 = arith.constant 0 : index
    %8 = vector.load %arg16[%c3, %c0_6] : memref<26x768xf32, #tpu.memory_space<vmem>>, vector<1x512xf32>
    %9 = vector.broadcast %7 : vector<1x512xf32> to vector<32x512xf32>
    %10 = arith.mulf %6, %9 : vector<32x512xf32>
    %11 = vector.broadcast %8 : vector<1x512xf32> to vector<32x512xf32>
    %12 = arith.addf %10, %11 : vector<32x512xf32>
    %cst_7 = arith.constant 0.000000e+00 : f32
    %13 = vector.broadcast %cst_7 : f32 to vector<32x512xf32>
    %14 = arith.maximumf %12, %13 : vector<32x512xf32>
    %c1 = arith.constant 1 : index
    %c0_8 = arith.constant 0 : index
    %15 = vector.load %arg16[%c1, %c0_8] : memref<26x768xf32, #tpu.memory_space<vmem>>, vector<1x256xf32>
    %16 = arith.truncf %14 : vector<32x512xf32> to vector<32x512xbf16>
    %c0_9 = arith.constant 0 : index
    %c0_10 = arith.constant 0 : index
    %17 = vector.load %arg3[%c0_9, %c0_10] : memref<512x256xbf16, #tpu.memory_space<vmem>>, vector<512x256xbf16>
    %cst_11 = arith.constant dense<0.000000e+00> : vector<32x256xf32>
    %18 = tpu.matmul %16, %17, %cst_11 {dimension_numbers = #tpu.dot_dimension_numbers<[1], [0], [0], [1], [0, 0, 1, 1], [], []>} : vector<32x512xbf16>, vector<512x256xbf16>, vector<32x256xf32> -> vector<32x256xf32>
    %19 = vector.broadcast %15 : vector<1x256xf32> to vector<32x256xf32>
    %20 = arith.addf %18, %19 : vector<32x256xf32>
    %c5 = arith.constant 5 : index
    %c0_12 = arith.constant 0 : index
    %21 = vector.load %arg16[%c5, %c0_12] : memref<26x768xf32, #tpu.memory_space<vmem>>, vector<1x256xf32>
    %c6 = arith.constant 6 : index
    %c0_13 = arith.constant 0 : index
    %22 = vector.load %arg16[%c6, %c0_13] : memref<26x768xf32, #tpu.memory_space<vmem>>, vector<1x256xf32>
    %23 = vector.broadcast %21 : vector<1x256xf32> to vector<32x256xf32>
    %24 = arith.mulf %20, %23 : vector<32x256xf32>
    %25 = vector.broadcast %22 : vector<1x256xf32> to vector<32x256xf32>
    %26 = arith.addf %24, %25 : vector<32x256xf32>
    %cst_14 = arith.constant 0.000000e+00 : f32
    %27 = vector.broadcast %cst_14 : f32 to vector<32x256xf32>
    %28 = arith.maximumf %26, %27 : vector<32x256xf32>
    %c4 = arith.constant 4 : index
    %c0_15 = arith.constant 0 : index
    %29 = vector.load %arg16[%c4, %c0_15] : memref<26x768xf32, #tpu.memory_space<vmem>>, vector<1x128xf32>
    %30 = arith.truncf %28 : vector<32x256xf32> to vector<32x256xbf16>
    %c0_16 = arith.constant 0 : index
    %c0_17 = arith.constant 0 : index
    %31 = vector.load %arg4[%c0_16, %c0_17] : memref<256x128xbf16, #tpu.memory_space<vmem>>, vector<256x128xbf16>
    %cst_18 = arith.constant dense<0.000000e+00> : vector<32x128xf32>
    %32 = tpu.matmul %30, %31, %cst_18 {dimension_numbers = #tpu.dot_dimension_numbers<[1], [0], [0], [1], [0, 0, 1, 1], [], []>} : vector<32x256xbf16>, vector<256x128xbf16>, vector<32x128xf32> -> vector<32x128xf32>
    %33 = vector.broadcast %29 : vector<1x128xf32> to vector<32x128xf32>
    %34 = arith.addf %32, %33 : vector<32x128xf32>
    %c8 = arith.constant 8 : index
    %c0_19 = arith.constant 0 : index
    %35 = vector.load %arg16[%c8, %c0_19] : memref<26x768xf32, #tpu.memory_space<vmem>>, vector<1x128xf32>
    %c9 = arith.constant 9 : index
    %c0_20 = arith.constant 0 : index
    %36 = vector.load %arg16[%c9, %c0_20] : memref<26x768xf32, #tpu.memory_space<vmem>>, vector<1x128xf32>
    %37 = vector.broadcast %35 : vector<1x128xf32> to vector<32x128xf32>
    %38 = arith.mulf %34, %37 : vector<32x128xf32>
    %39 = vector.broadcast %36 : vector<1x128xf32> to vector<32x128xf32>
    %40 = arith.addf %38, %39 : vector<32x128xf32>
    %cst_21 = arith.constant 0.000000e+00 : f32
    %41 = vector.broadcast %cst_21 : f32 to vector<32x128xf32>
    %42 = arith.maximumf %40, %41 : vector<32x128xf32>
    %c7 = arith.constant 7 : index
    %c0_22 = arith.constant 0 : index
    %43 = vector.load %arg16[%c7, %c0_22] : memref<26x768xf32, #tpu.memory_space<vmem>>, vector<1x64xf32>
    %44 = arith.truncf %42 : vector<32x128xf32> to vector<32x128xbf16>
    %c0_23 = arith.constant 0 : index
    %c0_24 = arith.constant 0 : index
    %45 = vector.load %arg5[%c0_23, %c0_24] : memref<128x64xbf16, #tpu.memory_space<vmem>>, vector<128x64xbf16>
    %cst_25 = arith.constant dense<0.000000e+00> : vector<32x64xf32>
    %46 = tpu.matmul %44, %45, %cst_25 {dimension_numbers = #tpu.dot_dimension_numbers<[1], [0], [0], [1], [0, 0, 1, 1], [], []>} : vector<32x128xbf16>, vector<128x64xbf16>, vector<32x64xf32> -> vector<32x64xf32>
    %47 = vector.broadcast %43 : vector<1x64xf32> to vector<32x64xf32>
    %48 = arith.addf %46, %47 : vector<32x64xf32>
    %c11 = arith.constant 11 : index
    %c0_26 = arith.constant 0 : index
    %49 = vector.load %arg16[%c11, %c0_26] : memref<26x768xf32, #tpu.memory_space<vmem>>, vector<1x64xf32>
    %c12 = arith.constant 12 : index
    %c0_27 = arith.constant 0 : index
    %50 = vector.load %arg16[%c12, %c0_27] : memref<26x768xf32, #tpu.memory_space<vmem>>, vector<1x64xf32>
    %51 = vector.broadcast %49 : vector<1x64xf32> to vector<32x64xf32>
    %52 = arith.mulf %48, %51 : vector<32x64xf32>
    %53 = vector.broadcast %50 : vector<1x64xf32> to vector<32x64xf32>
    %54 = arith.addf %52, %53 : vector<32x64xf32>
    %cst_28 = arith.constant 0.000000e+00 : f32
    %55 = vector.broadcast %cst_28 : f32 to vector<32x64xf32>
    %56 = arith.maximumf %54, %55 : vector<32x64xf32>
    %c10 = arith.constant 10 : index
    %c0_29 = arith.constant 0 : index
    %57 = vector.load %arg16[%c10, %c0_29] : memref<26x768xf32, #tpu.memory_space<vmem>>, vector<1x32xf32>
    %58 = arith.truncf %56 : vector<32x64xf32> to vector<32x64xbf16>
    %c0_30 = arith.constant 0 : index
    %c0_31 = arith.constant 0 : index
    %59 = vector.load %arg6[%c0_30, %c0_31] : memref<64x32xbf16, #tpu.memory_space<vmem>>, vector<64x32xbf16>
    %cst_32 = arith.constant dense<0.000000e+00> : vector<32x32xf32>
    %60 = tpu.matmul %58, %59, %cst_32 {dimension_numbers = #tpu.dot_dimension_numbers<[1], [0], [0], [1], [0, 0, 1, 1], [], []>} : vector<32x64xbf16>, vector<64x32xbf16>, vector<32x32xf32> -> vector<32x32xf32>
    %61 = vector.broadcast %57 : vector<1x32xf32> to vector<32x32xf32>
    %62 = arith.addf %60, %61 : vector<32x32xf32>
    %c14 = arith.constant 14 : index
    %c0_33 = arith.constant 0 : index
    %63 = vector.load %arg16[%c14, %c0_33] : memref<26x768xf32, #tpu.memory_space<vmem>>, vector<1x32xf32>
    %c15 = arith.constant 15 : index
    %c0_34 = arith.constant 0 : index
    %64 = vector.load %arg16[%c15, %c0_34] : memref<26x768xf32, #tpu.memory_space<vmem>>, vector<1x32xf32>
    %65 = vector.broadcast %63 : vector<1x32xf32> to vector<32x32xf32>
    %66 = arith.mulf %62, %65 : vector<32x32xf32>
    %67 = vector.broadcast %64 : vector<1x32xf32> to vector<32x32xf32>
    %68 = arith.addf %66, %67 : vector<32x32xf32>
    %cst_35 = arith.constant 0.000000e+00 : f32
    %69 = vector.broadcast %cst_35 : f32 to vector<32x32xf32>
    %70 = arith.maximumf %68, %69 : vector<32x32xf32>
    %c13 = arith.constant 13 : index
    %c0_36 = arith.constant 0 : index
    %71 = vector.load %arg16[%c13, %c0_36] : memref<26x768xf32, #tpu.memory_space<vmem>>, vector<1x16xf32>
    %72 = arith.truncf %70 : vector<32x32xf32> to vector<32x32xbf16>
    %c0_37 = arith.constant 0 : index
    %c0_38 = arith.constant 0 : index
    %73 = vector.load %arg7[%c0_37, %c0_38] : memref<32x16xbf16, #tpu.memory_space<vmem>>, vector<32x16xbf16>
    %cst_39 = arith.constant dense<0.000000e+00> : vector<32x16xf32>
    %74 = tpu.matmul %72, %73, %cst_39 {dimension_numbers = #tpu.dot_dimension_numbers<[1], [0], [0], [1], [0, 0, 1, 1], [], []>} : vector<32x32xbf16>, vector<32x16xbf16>, vector<32x16xf32> -> vector<32x16xf32>
    %75 = vector.broadcast %71 : vector<1x16xf32> to vector<32x16xf32>
    %76 = arith.addf %74, %75 : vector<32x16xf32>
    %c17 = arith.constant 17 : index
    %c0_40 = arith.constant 0 : index
    %77 = vector.load %arg16[%c17, %c0_40] : memref<26x768xf32, #tpu.memory_space<vmem>>, vector<1x16xf32>
    %c18 = arith.constant 18 : index
    %c0_41 = arith.constant 0 : index
    %78 = vector.load %arg16[%c18, %c0_41] : memref<26x768xf32, #tpu.memory_space<vmem>>, vector<1x16xf32>
    %79 = vector.broadcast %77 : vector<1x16xf32> to vector<32x16xf32>
    %80 = arith.mulf %76, %79 : vector<32x16xf32>
    %81 = vector.broadcast %78 : vector<1x16xf32> to vector<32x16xf32>
    %82 = arith.addf %80, %81 : vector<32x16xf32>
    %cst_42 = arith.constant 0.000000e+00 : f32
    %83 = vector.broadcast %cst_42 : f32 to vector<32x16xf32>
    %84 = arith.maximumf %82, %83 : vector<32x16xf32>
    %c16 = arith.constant 16 : index
    %c0_43 = arith.constant 0 : index
    %85 = vector.load %arg16[%c16, %c0_43] : memref<26x768xf32, #tpu.memory_space<vmem>>, vector<1x3xf32>
    %86 = arith.truncf %84 : vector<32x16xf32> to vector<32x16xbf16>
    %c0_44 = arith.constant 0 : index
    %c0_45 = arith.constant 0 : index
    %87 = vector.load %arg8[%c0_44, %c0_45] : memref<16x3xbf16, #tpu.memory_space<vmem>>, vector<16x3xbf16>
    %cst_46 = arith.constant dense<0.000000e+00> : vector<32x3xf32>
    %88 = tpu.matmul %86, %87, %cst_46 {dimension_numbers = #tpu.dot_dimension_numbers<[1], [0], [0], [1], [0, 0, 1, 1], [], []>} : vector<32x16xbf16>, vector<16x3xbf16>, vector<32x3xf32> -> vector<32x3xf32>
    %89 = vector.broadcast %85 : vector<1x3xf32> to vector<32x3xf32>
    %90 = arith.addf %88, %89 : vector<32x3xf32>
    %91 = arith.mulf %90, %90 : vector<32x3xf32>
    %cst_47 = arith.constant dense<0.000000e+00> : vector<32xf32>
    %92 = vector.multi_reduction <add>, %91, %cst_47 [1] : vector<32x3xf32> to vector<32xf32>
    %93 = vector.shape_cast %92 : vector<32xf32> to vector<32x1xf32>
    %cst_48 = arith.constant 1.000000e-24 : f32
    %94 = vector.broadcast %cst_48 : f32 to vector<32x1xf32>
    %95 = arith.addf %93, %94 : vector<32x1xf32>
    %96 = math.rsqrt %95 : vector<32x1xf32>
    %97 = vector.broadcast %96 : vector<32x1xf32> to vector<32x3xf32>
    %98 = arith.mulf %90, %97 : vector<32x3xf32>
    %c19 = arith.constant 19 : index
    %c0_49 = arith.constant 0 : index
    %99 = vector.load %arg16[%c19, %c0_49] : memref<26x768xf32, #tpu.memory_space<vmem>>, vector<1x16xf32>
    %100 = arith.truncf %98 : vector<32x3xf32> to vector<32x3xbf16>
    %c0_50 = arith.constant 0 : index
    %c0_51 = arith.constant 0 : index
    %101 = vector.load %arg9[%c0_50, %c0_51] : memref<3x16xbf16, #tpu.memory_space<vmem>>, vector<3x16xbf16>
    %cst_52 = arith.constant dense<0.000000e+00> : vector<32x16xf32>
    %102 = tpu.matmul %100, %101, %cst_52 {dimension_numbers = #tpu.dot_dimension_numbers<[1], [0], [0], [1], [0, 0, 1, 1], [], []>} : vector<32x3xbf16>, vector<3x16xbf16>, vector<32x16xf32> -> vector<32x16xf32>
    %103 = vector.broadcast %99 : vector<1x16xf32> to vector<32x16xf32>
    %104 = arith.addf %102, %103 : vector<32x16xf32>
    %cst_53 = arith.constant 0.000000e+00 : f32
    %105 = vector.broadcast %cst_53 : f32 to vector<32x16xf32>
    %106 = arith.maximumf %104, %105 : vector<32x16xf32>
    %c20 = arith.constant 20 : index
    %c0_54 = arith.constant 0 : index
    %107 = vector.load %arg16[%c20, %c0_54] : memref<26x768xf32, #tpu.memory_space<vmem>>, vector<1x32xf32>
    %108 = arith.truncf %106 : vector<32x16xf32> to vector<32x16xbf16>
    %c0_55 = arith.constant 0 : index
    %c0_56 = arith.constant 0 : index
    %109 = vector.load %arg10[%c0_55, %c0_56] : memref<16x32xbf16, #tpu.memory_space<vmem>>, vector<16x32xbf16>
    %cst_57 = arith.constant dense<0.000000e+00> : vector<32x32xf32>
    %110 = tpu.matmul %108, %109, %cst_57 {dimension_numbers = #tpu.dot_dimension_numbers<[1], [0], [0], [1], [0, 0, 1, 1], [], []>} : vector<32x16xbf16>, vector<16x32xbf16>, vector<32x32xf32> -> vector<32x32xf32>
    %111 = vector.broadcast %107 : vector<1x32xf32> to vector<32x32xf32>
    %112 = arith.addf %110, %111 : vector<32x32xf32>
    %cst_58 = arith.constant 0.000000e+00 : f32
    %113 = vector.broadcast %cst_58 : f32 to vector<32x32xf32>
    %114 = arith.maximumf %112, %113 : vector<32x32xf32>
    %c21 = arith.constant 21 : index
    %c0_59 = arith.constant 0 : index
    %115 = vector.load %arg16[%c21, %c0_59] : memref<26x768xf32, #tpu.memory_space<vmem>>, vector<1x64xf32>
    %116 = arith.truncf %114 : vector<32x32xf32> to vector<32x32xbf16>
    %c0_60 = arith.constant 0 : index
    %c0_61 = arith.constant 0 : index
    %117 = vector.load %arg11[%c0_60, %c0_61] : memref<32x64xbf16, #tpu.memory_space<vmem>>, vector<32x64xbf16>
    %cst_62 = arith.constant dense<0.000000e+00> : vector<32x64xf32>
    %118 = tpu.matmul %116, %117, %cst_62 {dimension_numbers = #tpu.dot_dimension_numbers<[1], [0], [0], [1], [0, 0, 1, 1], [], []>} : vector<32x32xbf16>, vector<32x64xbf16>, vector<32x64xf32> -> vector<32x64xf32>
    %119 = vector.broadcast %115 : vector<1x64xf32> to vector<32x64xf32>
    %120 = arith.addf %118, %119 : vector<32x64xf32>
    %cst_63 = arith.constant 0.000000e+00 : f32
    %121 = vector.broadcast %cst_63 : f32 to vector<32x64xf32>
    %122 = arith.maximumf %120, %121 : vector<32x64xf32>
    %c22 = arith.constant 22 : index
    %c0_64 = arith.constant 0 : index
    %123 = vector.load %arg16[%c22, %c0_64] : memref<26x768xf32, #tpu.memory_space<vmem>>, vector<1x128xf32>
    %124 = arith.truncf %122 : vector<32x64xf32> to vector<32x64xbf16>
    %c0_65 = arith.constant 0 : index
    %c0_66 = arith.constant 0 : index
    %125 = vector.load %arg12[%c0_65, %c0_66] : memref<64x128xbf16, #tpu.memory_space<vmem>>, vector<64x128xbf16>
    %cst_67 = arith.constant dense<0.000000e+00> : vector<32x128xf32>
    %126 = tpu.matmul %124, %125, %cst_67 {dimension_numbers = #tpu.dot_dimension_numbers<[1], [0], [0], [1], [0, 0, 1, 1], [], []>} : vector<32x64xbf16>, vector<64x128xbf16>, vector<32x128xf32> -> vector<32x128xf32>
    %127 = vector.broadcast %123 : vector<1x128xf32> to vector<32x128xf32>
    %128 = arith.addf %126, %127 : vector<32x128xf32>
    %cst_68 = arith.constant 0.000000e+00 : f32
    %129 = vector.broadcast %cst_68 : f32 to vector<32x128xf32>
    %130 = arith.maximumf %128, %129 : vector<32x128xf32>
    %c23 = arith.constant 23 : index
    %c0_69 = arith.constant 0 : index
    %131 = vector.load %arg16[%c23, %c0_69] : memref<26x768xf32, #tpu.memory_space<vmem>>, vector<1x256xf32>
    %132 = arith.truncf %130 : vector<32x128xf32> to vector<32x128xbf16>
    %c0_70 = arith.constant 0 : index
    %c0_71 = arith.constant 0 : index
    %133 = vector.load %arg13[%c0_70, %c0_71] : memref<128x256xbf16, #tpu.memory_space<vmem>>, vector<128x256xbf16>
    %cst_72 = arith.constant dense<0.000000e+00> : vector<32x256xf32>
    %134 = tpu.matmul %132, %133, %cst_72 {dimension_numbers = #tpu.dot_dimension_numbers<[1], [0], [0], [1], [0, 0, 1, 1], [], []>} : vector<32x128xbf16>, vector<128x256xbf16>, vector<32x256xf32> -> vector<32x256xf32>
    %135 = vector.broadcast %131 : vector<1x256xf32> to vector<32x256xf32>
    %136 = arith.addf %134, %135 : vector<32x256xf32>
    %cst_73 = arith.constant 0.000000e+00 : f32
    %137 = vector.broadcast %cst_73 : f32 to vector<32x256xf32>
    %138 = arith.maximumf %136, %137 : vector<32x256xf32>
    %c24 = arith.constant 24 : index
    %c0_74 = arith.constant 0 : index
    %139 = vector.load %arg16[%c24, %c0_74] : memref<26x768xf32, #tpu.memory_space<vmem>>, vector<1x512xf32>
    %140 = arith.truncf %138 : vector<32x256xf32> to vector<32x256xbf16>
    %c0_75 = arith.constant 0 : index
    %c0_76 = arith.constant 0 : index
    %141 = vector.load %arg14[%c0_75, %c0_76] : memref<256x512xbf16, #tpu.memory_space<vmem>>, vector<256x512xbf16>
    %cst_77 = arith.constant dense<0.000000e+00> : vector<32x512xf32>
    %142 = tpu.matmul %140, %141, %cst_77 {dimension_numbers = #tpu.dot_dimension_numbers<[1], [0], [0], [1], [0, 0, 1, 1], [], []>} : vector<32x256xbf16>, vector<256x512xbf16>, vector<32x512xf32> -> vector<32x512xf32>
    %143 = vector.broadcast %139 : vector<1x512xf32> to vector<32x512xf32>
    %144 = arith.addf %142, %143 : vector<32x512xf32>
    %cst_78 = arith.constant 0.000000e+00 : f32
    %145 = vector.broadcast %cst_78 : f32 to vector<32x512xf32>
    %146 = arith.maximumf %144, %145 : vector<32x512xf32>
    %c25 = arith.constant 25 : index
    %c0_79 = arith.constant 0 : index
    %147 = vector.load %arg16[%c25, %c0_79] : memref<26x768xf32, #tpu.memory_space<vmem>>, vector<1x768xf32>
    %148 = arith.truncf %146 : vector<32x512xf32> to vector<32x512xbf16>
    %c0_80 = arith.constant 0 : index
    %c0_81 = arith.constant 0 : index
    %149 = vector.load %arg15[%c0_80, %c0_81] : memref<512x768xbf16, #tpu.memory_space<vmem>>, vector<512x768xbf16>
    %cst_82 = arith.constant dense<0.000000e+00> : vector<32x768xf32>
    %150 = tpu.matmul %148, %149, %cst_82 {dimension_numbers = #tpu.dot_dimension_numbers<[1], [0], [0], [1], [0, 0, 1, 1], [], []>} : vector<32x512xbf16>, vector<512x768xbf16>, vector<32x768xf32> -> vector<32x768xf32>
    %151 = vector.broadcast %147 : vector<1x768xf32> to vector<32x768xf32>
    %152 = arith.addf %150, %151 : vector<32x768xf32>
    %153 = arith.mulf %152, %152 : vector<32x768xf32>
    %cst_83 = arith.constant dense<0.000000e+00> : vector<32xf32>
    %154 = vector.multi_reduction <add>, %153, %cst_83 [1] : vector<32x768xf32> to vector<32xf32>
    %155 = vector.shape_cast %154 : vector<32xf32> to vector<32x1xf32>
    %cst_84 = arith.constant 1.000000e-24 : f32
    %156 = vector.broadcast %cst_84 : f32 to vector<32x1xf32>
    %157 = arith.addf %155, %156 : vector<32x1xf32>
    %158 = math.rsqrt %157 : vector<32x1xf32>
    %159 = vector.broadcast %158 : vector<32x1xf32> to vector<32x768xf32>
    %160 = arith.mulf %152, %159 : vector<32x768xf32>
    %c0_85 = arith.constant 0 : index
    %c0_86 = arith.constant 0 : index
    %161 = vector.load %arg17[%c0_85, %c0_86] : memref<32x768xf32, #tpu.memory_space<vmem>>, vector<32x768xf32>
    tpu.vector_store %arg17[%c0_85, %c0_86], %160 {strides = array<i32>} : memref<32x768xf32, #tpu.memory_space<vmem>>, vector<32x768xf32>,
    return
  }
  func.func @transform_0(%arg0: i32) -> (i32, i32) {
    %c0_i32 = arith.constant 0 : i32
    %c0_i32_0 = arith.constant 0 : i32
    return %arg0, %c0_i32 : i32, i32
  }
  func.func @transform_1(%arg0: i32) -> (i32, i32) {
    %c0_i32 = arith.constant 0 : i32
    %c0_i32_0 = arith.constant 0 : i32
    %c0_i32_1 = arith.constant 0 : i32
    return %c0_i32, %c0_i32_0 : i32, i32
  }
  func.func @transform_2(%arg0: i32) -> (i32, i32) {
    %c0_i32 = arith.constant 0 : i32
    %c0_i32_0 = arith.constant 0 : i32
    %c0_i32_1 = arith.constant 0 : i32
    return %c0_i32, %c0_i32_0 : i32, i32
  }
  func.func @transform_3(%arg0: i32) -> (i32, i32) {
    %c0_i32 = arith.constant 0 : i32
    %c0_i32_0 = arith.constant 0 : i32
    %c0_i32_1 = arith.constant 0 : i32
    return %c0_i32, %c0_i32_0 : i32, i32
  }
  func.func @transform_4(%arg0: i32) -> (i32, i32) {
    %c0_i32 = arith.constant 0 : i32
    %c0_i32_0 = arith.constant 0 : i32
    %c0_i32_1 = arith.constant 0 : i32
    return %c0_i32, %c0_i32_0 : i32, i32
  }
  func.func @transform_5(%arg0: i32) -> (i32, i32) {
    %c0_i32 = arith.constant 0 : i32
    %c0_i32_0 = arith.constant 0 : i32
    %c0_i32_1 = arith.constant 0 : i32
    return %c0_i32, %c0_i32_0 : i32, i32
  }
  func.func @transform_6(%arg0: i32) -> (i32, i32) {
    %c0_i32 = arith.constant 0 : i32
    %c0_i32_0 = arith.constant 0 : i32
    %c0_i32_1 = arith.constant 0 : i32
    return %c0_i32, %c0_i32_0 : i32, i32
  }
  func.func @transform_7(%arg0: i32) -> (i32, i32) {
    %c0_i32 = arith.constant 0 : i32
    %c0_i32_0 = arith.constant 0 : i32
    %c0_i32_1 = arith.constant 0 : i32
    return %c0_i32, %c0_i32_0 : i32, i32
  }
  func.func @transform_8(%arg0: i32) -> (i32, i32) {
    %c0_i32 = arith.constant 0 : i32
    %c0_i32_0 = arith.constant 0 : i32
    %c0_i32_1 = arith.constant 0 : i32
    return %c0_i32, %c0_i32_0 : i32, i32
  }
  func.func @transform_9(%arg0: i32) -> (i32, i32) {
    %c0_i32 = arith.constant 0 : i32
    %c0_i32_0 = arith.constant 0 : i32
    %c0_i32_1 = arith.constant 0 : i32
    return %c0_i32, %c0_i32_0 : i32, i32
  }
  func.func @transform_10(%arg0: i32) -> (i32, i32) {
    %c0_i32 = arith.constant 0 : i32
    %c0_i32_0 = arith.constant 0 : i32
    %c0_i32_1 = arith.constant 0 : i32
    return %c0_i32, %c0_i32_0 : i32, i32
  }
  func.func @transform_11(%arg0: i32) -> (i32, i32) {
    %c0_i32 = arith.constant 0 : i32
    %c0_i32_0 = arith.constant 0 : i32
    %c0_i32_1 = arith.constant 0 : i32
    return %c0_i32, %c0_i32_0 : i32, i32
  }
  func.func @transform_12(%arg0: i32) -> (i32, i32) {
    %c0_i32 = arith.constant 0 : i32
    %c0_i32_0 = arith.constant 0 : i32
    %c0_i32_1 = arith.constant 0 : i32
    return %c0_i32, %c0_i32_0 : i32, i32
  }
  func.func @transform_13(%arg0: i32) -> (i32, i32) {
    %c0_i32 = arith.constant 0 : i32
    %c0_i32_0 = arith.constant 0 : i32
    %c0_i32_1 = arith.constant 0 : i32
    return %c0_i32, %c0_i32_0 : i32, i32
  }
  func.func @transform_14(%arg0: i32) -> (i32, i32) {
    %c0_i32 = arith.constant 0 : i32
    %c0_i32_0 = arith.constant 0 : i32
    %c0_i32_1 = arith.constant 0 : i32
    return %c0_i32, %c0_i32_0 : i32, i32
  }
  func.func @transform_15(%arg0: i32) -> (i32, i32) {
    %c0_i32 = arith.constant 0 : i32
    %c0_i32_0 = arith.constant 0 : i32
    %c0_i32_1 = arith.constant 0 : i32
    return %c0_i32, %c0_i32_0 : i32, i32
  }
  func.func @transform_16(%arg0: i32) -> (i32, i32) {
    %c0_i32 = arith.constant 0 : i32
    %c0_i32_0 = arith.constant 0 : i32
    return %arg0, %c0_i32 : i32, i32
  }
}

</mosaic_0001>

<llo_original>
// kernel: tpu_custom_call.1
$region0: #{tpu_custom_call.1}
  #allocation0 [shape = 'u32[]', space=smem, size = 0x4, offset = 0x4, fixed_abs, tag = 'smem constant byte address 0x4 - core index']
  #allocation1 [shape = 'u32[144,128]{1,0:T(1,128)}', space=vmem, size = 0x12000, scoped, tag = 'internal scratch']
  %s0 = inlined_call_operand.hbm [shape: f32[64,768], index: 0, kind: input, shape index: {}]
  %s1 = inlined_call_operand.hbm [shape: bf16[768,512], index: 1, kind: input, shape index: {}]
  %s2 = inlined_call_operand.hbm [shape: bf16[512,256], index: 2, kind: input, shape index: {}]
  %s3 = inlined_call_operand.hbm [shape: bf16[256,128], index: 3, kind: input, shape index: {}]
  %s4 = inlined_call_operand.vmem [shape: bf16[128,64], index: 4, kind: input, shape index: {}]
  %s5 = inlined_call_operand.vmem [shape: bf16[64,32], index: 5, kind: input, shape index: {}]
  %s6 = inlined_call_operand.vmem [shape: bf16[32,16], index: 6, kind: input, shape index: {}]
  %s7 = inlined_call_operand.vmem [shape: bf16[16,3], index: 7, kind: input, shape index: {}]
  %s8 = inlined_call_operand.vmem [shape: bf16[3,16], index: 8, kind: input, shape index: {}]
  %s9 = inlined_call_operand.vmem [shape: bf16[16,32], index: 9, kind: input, shape index: {}]
  %s10 = inlined_call_operand.hbm [shape: bf16[32,64], index: 10, kind: input, shape index: {}]
  %s11 = inlined_call_operand.hbm [shape: bf16[64,128], index: 11, kind: input, shape index: {}]
  %s12 = inlined_call_operand.hbm [shape: bf16[128,256], index: 12, kind: input, shape index: {}]
  %s13 = inlined_call_operand.hbm [shape: bf16[256,512], index: 13, kind: input, shape index: {}]
  %s14 = inlined_call_operand.hbm [shape: bf16[512,768], index: 14, kind: input, shape index: {}]
  %s15 = inlined_call_operand.vmem [shape: f32[26,768], index: 15, kind: input, shape index: {}]
  %s16 = inlined_call_operand.hbm [shape: f32[64,768], index: 16, kind: output, shape index: {}]
  %s17 = sld [smem:[#allocation0]]
  $region133: #{tpu_custom_call.1} parent=0
    _
  %s19 = ssub.s32 1, %s17
  %s20 = scalar_select 0, %s19, %s17
  $region1: #{tpu_custom_call.1} parent=0
    #allocation2 [shape = 'u8[196608]{0}', space=vmem, size = 0x30000, scoped, tag = 'input window, operand 0']
    #allocation3 [shape = 's32[2]{0}', space=sflag, size = 0x8, scoped, tag = 'scoped memory for tpu_custom_call.1']
    #allocation4 [shape = 's32[2]{0}', space=sflag, size = 0x8, scoped, tag = 'scoped memory for tpu_custom_call.1']
    #allocation5 [shape = 'u8[786432]{0}', space=vmem, size = 0xc0000, scoped, tag = 'input window, operand 1, single buffered']
    #allocation6 [shape = 's32[1]{0}', space=sflag, size = 0x4, scoped, tag = 'scoped memory for tpu_custom_call.1']
    #allocation7 [shape = 'u8[262144]{0}', space=vmem, size = 0x40000, scoped, tag = 'input window, operand 2, single buffered']
    #allocation8 [shape = 'u8[65536]{0}', space=vmem, size = 0x10000, scoped, tag = 'input window, operand 3, single buffered']
    #allocation9 [shape = 's32[1]{0}', space=sflag, size = 0x4, scoped, tag = 'scoped memory for tpu_custom_call.1']
    #allocation10 [shape = 'u8[8192]{0}', space=vmem, size = 0x2000, scoped, tag = 'input window, operand 10, single buffered']
    #allocation11 [shape = 'u8[16384]{0}', space=vmem, size = 0x4000, scoped, tag = 'input window, operand 11, single buffered']
    #allocation12 [shape = 's32[1]{0}', space=sflag, size = 0x4, scoped, tag = 'scoped memory for tpu_custom_call.1']
    #allocation13 [shape = 'u8[65536]{0}', space=vmem, size = 0x10000, scoped, tag = 'input window, operand 12, single buffered']
    #allocation14 [shape = 'u8[262144]{0}', space=vmem, size = 0x40000, scoped, tag = 'input window, operand 13, single buffered']
    #allocation15 [shape = 's32[1]{0}', space=sflag, size = 0x4, scoped, tag = 'scoped memory for tpu_custom_call.1']
    #allocation16 [shape = 'u8[786432]{0}', space=vmem, size = 0xc0000, scoped, tag = 'input window, operand 14, single buffered']
    #allocation17 [shape = 'u8[196608]{0}', space=vmem, size = 0x30000, scoped, tag = 'output window, operand 0']
    %21 = vsyncpa [#allocation3], 0
    %s22 = scalar_lea.sflag [#allocation3], 1
    %23 = vsyncpa %s22, 0
    %24 = vsyncpa [#allocation6], 0
    %25 = vsyncpa [#allocation9], 0
    %26 = vsyncpa [#allocation12], 0
    %27 = vsyncpa [#allocation15], 0
    %28 = vsyncpa [#allocation4], 0
    %s29 = scalar_lea.sflag [#allocation4], 1
    %30 = vsyncpa %s29, 0
    loop: start=0, step=1, limit=4
    $region2: #{tpu_custom_call.1} parent=1 // loop_pre_header
      _
    $region3: #{tpu_custom_call.1} parent=1 // loop_header
      %s32 = sphi 0, %s36
      %p33 = scmp.ge.s32.totalorder %s32, 4
      %s42 = sphi 0, %s44
      %s45 = sphi 0, %s42
      %s46 = sphi 0, %s45
      %s62 = sphi 0, %s46
      %s66 = sphi 0, %s66
      %s68 = sphi 0, %s66
      %s69 = sphi 0, %s68
      %s83 = sphi 0, %s69
      %s87 = sphi 0, %s87
      %s89 = sphi 0, %s87
      %s90 = sphi 0, %s89
      %s104 = sphi 0, %s90
      %s108 = sphi 0, %s108
      %s110 = sphi 0, %s108
      %s111 = sphi 0, %s110
      %s125 = sphi 0, %s111
      %s129 = sphi 0, %s129
      %s131 = sphi 0, %s129
      %s132 = sphi 0, %s131
      %s146 = sphi 0, %s132
      %s150 = sphi 0, %s150
      %s152 = sphi 0, %s150
      %s153 = sphi 0, %s152
      %s167 = sphi 0, %s153
      %s171 = sphi 0, %s171
      %s173 = sphi 0, %s171
      %s174 = sphi 0, %s173
      %s188 = sphi 0, %s174
      %s192 = sphi 0, %s192
      %s194 = sphi 0, %s192
      %s195 = sphi 0, %s194
      %s209 = sphi 0, %s195
      %s213 = sphi 0, %s213
      %s215 = sphi 0, %s213
      %s216 = sphi 0, %s215
      %s230 = sphi 0, %s216
      %s234 = sphi 0, %s234
      %s236 = sphi 0, %s234
      %s237 = sphi 0, %s236
      %s251 = sphi 0, %s237
      %s255 = sphi 0, %s255
      %s257 = sphi 0, %s255
      %s258 = sphi 0, %s257
      %s272 = sphi 0, %s258
      %s276 = sphi 0, %s276
      %s278 = sphi 0, %s276
      %s279 = sphi 0, %s278
      %s293 = sphi 0, %s279
      %s297 = sphi 0, %s297
      %s299 = sphi 0, %s297
      %s300 = sphi 0, %s299
      %s314 = sphi 0, %s300
      %s318 = sphi 0, %s318
      %s320 = sphi 0, %s318
      %s321 = sphi 0, %s320
      %s335 = sphi 0, %s321
      %s339 = sphi 0, %s339
      %s341 = sphi 0, %s339
      %s342 = sphi 0, %s341
      %s356 = sphi 0, %s342
      %s360 = sphi 0, %s360
      %s362 = sphi 0, %s360
      %s363 = sphi 0, %s362
      %s377 = sphi 0, %s363
      %s383 = sphi 0, %s385
      %s386 = sphi 0, %s383
      %s387 = sphi 0, %s386
      %s403 = sphi 0, %s387
    $region4: #{tpu_custom_call.1} parent=1 // loop_header_branch
      %35 = sbr.rel (%p33) target = $region8
    $region5: #{tpu_custom_call.1} parent=1 // loop_body
      %s37 = ssub.s32 %s32, 1
      %s38 = ssub.s32 %s32, 2
      %s39 = sadd.s32 %s32, 1
      %s40 = ssub.s32 %s32, %s39
      %p41 = scmp.eq.s32.totalorder %s40, 0
      %s43 = sadd.s32 %s42, 1
      %s44 = scalar_select %p41, %s42, %s43
      %p47 = pneg %p41
      %p48 = scmp.eq.s32.totalorder %s32, 1
      %p49 = por %p47, %p48
      %p50 = scmp.ne.s32.totalorder %s42, %s45
      %p51 = scmp.eq.s32.totalorder %s32, 0
      %p52 = por %p50, %p51
      %p53 = scmp.ne.s32.totalorder %s42, %s45
      %p54 = scmp.eq.s32.totalorder %s37, 1
      %p55 = por %p53, %p54
      %p56 = scmp.ne.s32.totalorder %s45, %s46
      %p57 = scmp.eq.s32.totalorder %s37, 0
      %p58 = por %p56, %p57
      %p59 = scmp.ne.s32.totalorder %s45, %s46
      %p60 = scmp.eq.s32.totalorder %s38, 1
      %p61 = por %p59, %p60
      %p63 = scmp.ne.s32.totalorder %s46, %s62
      %p64 = scmp.eq.s32.totalorder %s38, 0
      %p65 = por %p63, %p64
      %s67 = sadd.s32 %s66, 1
      %p70 = scmp.eq.s32.totalorder %s32, 1
      %p71 = scmp.ne.s32.totalorder %s66, %s68
      %p72 = scmp.eq.s32.totalorder %s32, 0
      %p73 = por %p71, %p72
      %p74 = scmp.ne.s32.totalorder %s66, %s68
      %p75 = scmp.eq.s32.totalorder %s37, 1
      %p76 = por %p74, %p75
      %p77 = scmp.ne.s32.totalorder %s68, %s69
      %p78 = scmp.eq.s32.totalorder %s37, 0
      %p79 = por %p77, %p78
      %p80 = scmp.ne.s32.totalorder %s68, %s69
      %p81 = scmp.eq.s32.totalorder %s38, 1
      %p82 = por %p80, %p81
      %p84 = scmp.ne.s32.totalorder %s69, %s83
      %p85 = scmp.eq.s32.totalorder %s38, 0
      %p86 = por %p84, %p85
      %s88 = sadd.s32 %s87, 1
      %p91 = scmp.eq.s32.totalorder %s32, 1
      %p92 = scmp.ne.s32.totalorder %s87, %s89
      %p93 = scmp.eq.s32.totalorder %s32, 0
      %p94 = por %p92, %p93
      %p95 = scmp.ne.s32.totalorder %s87, %s89
      %p96 = scmp.eq.s32.totalorder %s37, 1
      %p97 = por %p95, %p96
      %p98 = scmp.ne.s32.totalorder %s89, %s90
      %p99 = scmp.eq.s32.totalorder %s37, 0
      %p100 = por %p98, %p99
      %p101 = scmp.ne.s32.totalorder %s89, %s90
      %p102 = scmp.eq.s32.totalorder %s38, 1
      %p103 = por %p101, %p102
      %p105 = scmp.ne.s32.totalorder %s90, %s104
      %p106 = scmp.eq.s32.totalorder %s38, 0
      %p107 = por %p105, %p106
      %s109 = sadd.s32 %s108, 1
      %p112 = scmp.eq.s32.totalorder %s32, 1
      %p113 = scmp.ne.s32.totalorder %s108, %s110
      %p114 = scmp.eq.s32.totalorder %s32, 0
      %p115 = por %p113, %p114
      %p116 = scmp.ne.s32.totalorder %s108, %s110
      %p117 = scmp.eq.s32.totalorder %s37, 1
      %p118 = por %p116, %p117
      %p119 = scmp.ne.s32.totalorder %s110, %s111
      %p120 = scmp.eq.s32.totalorder %s37, 0
      %p121 = por %p119, %p120
      %p122 = scmp.ne.s32.totalorder %s110, %s111
      %p123 = scmp.eq.s32.totalorder %s38, 1
      %p124 = por %p122, %p123
      %p126 = scmp.ne.s32.totalorder %s111, %s125
      %p127 = scmp.eq.s32.totalorder %s38, 0
      %p128 = por %p126, %p127
      %s130 = sadd.s32 %s129, 1
      %p133 = scmp.eq.s32.totalorder %s32, 1
      %p134 = scmp.ne.s32.totalorder %s129, %s131
      %p135 = scmp.eq.s32.totalorder %s32, 0
      %p136 = por %p134, %p135
      %p137 = scmp.ne.s32.totalorder %s129, %s131
      %p138 = scmp.eq.s32.totalorder %s37, 1
      %p139 = por %p137, %p138
      %p140 = scmp.ne.s32.totalorder %s131, %s132
      %p141 = scmp.eq.s32.totalorder %s37, 0
      %p142 = por %p140, %p141
      %p143 = scmp.ne.s32.totalorder %s131, %s132
      %p144 = scmp.eq.s32.totalorder %s38, 1
      %p145 = por %p143, %p144
      %p147 = scmp.ne.s32.totalorder %s132, %s146
      %p148 = scmp.eq.s32.totalorder %s38, 0
      %p149 = por %p147, %p148
      %s151 = sadd.s32 %s150, 1
      %p154 = scmp.eq.s32.totalorder %s32, 1
      %p155 = scmp.ne.s32.totalorder %s150, %s152
      %p156 = scmp.eq.s32.totalorder %s32, 0
      %p157 = por %p155, %p156
      %p158 = scmp.ne.s32.totalorder %s150, %s152
      %p159 = scmp.eq.s32.totalorder %s37, 1
      %p160 = por %p158, %p159
      %p161 = scmp.ne.s32.totalorder %s152, %s153
      %p162 = scmp.eq.s32.totalorder %s37, 0
      %p163 = por %p161, %p162
      %p164 = scmp.ne.s32.totalorder %s152, %s153
      %p165 = scmp.eq.s32.totalorder %s38, 1
      %p166 = por %p164, %p165
      %p168 = scmp.ne.s32.totalorder %s153, %s167
      %p169 = scmp.eq.s32.totalorder %s38, 0
      %p170 = por %p168, %p169
      %s172 = sadd.s32 %s171, 1
      %p175 = scmp.eq.s32.totalorder %s32, 1
      %p176 = scmp.ne.s32.totalorder %s171, %s173
      %p177 = scmp.eq.s32.totalorder %s32, 0
      %p178 = por %p176, %p177
      %p179 = scmp.ne.s32.totalorder %s171, %s173
      %p180 = scmp.eq.s32.totalorder %s37, 1
      %p181 = por %p179, %p180
      %p182 = scmp.ne.s32.totalorder %s173, %s174
      %p183 = scmp.eq.s32.totalorder %s37, 0
      %p184 = por %p182, %p183
      %p185 = scmp.ne.s32.totalorder %s173, %s174
      %p186 = scmp.eq.s32.totalorder %s38, 1
      %p187 = por %p185, %p186
      %p189 = scmp.ne.s32.totalorder %s174, %s188
      %p190 = scmp.eq.s32.totalorder %s38, 0
      %p191 = por %p189, %p190
      %s193 = sadd.s32 %s192, 1
      %p196 = scmp.eq.s32.totalorder %s32, 1
      %p197 = scmp.ne.s32.totalorder %s192, %s194
      %p198 = scmp.eq.s32.totalorder %s32, 0
      %p199 = por %p197, %p198
      %p200 = scmp.ne.s32.totalorder %s192, %s194
      %p201 = scmp.eq.s32.totalorder %s37, 1
      %p202 = por %p200, %p201
      %p203 = scmp.ne.s32.totalorder %s194, %s195
      %p204 = scmp.eq.s32.totalorder %s37, 0
      %p205 = por %p203, %p204
      %p206 = scmp.ne.s32.totalorder %s194, %s195
      %p207 = scmp.eq.s32.totalorder %s38, 1
      %p208 = por %p206, %p207
      %p210 = scmp.ne.s32.totalorder %s195, %s209
      %p211 = scmp.eq.s32.totalorder %s38, 0
      %p212 = por %p210, %p211
      %s214 = sadd.s32 %s213, 1
      %p217 = scmp.eq.s32.totalorder %s32, 1
      %p218 = scmp.ne.s32.totalorder %s213, %s215
      %p219 = scmp.eq.s32.totalorder %s32, 0
      %p220 = por %p218, %p219
      %p221 = scmp.ne.s32.totalorder %s213, %s215
      %p222 = scmp.eq.s32.totalorder %s37, 1
      %p223 = por %p221, %p222
      %p224 = scmp.ne.s32.totalorder %s215, %s216
      %p225 = scmp.eq.s32.totalorder %s37, 0
      %p226 = por %p224, %p225
      %p227 = scmp.ne.s32.totalorder %s215, %s216
      %p228 = scmp.eq.s32.totalorder %s38, 1
      %p229 = por %p227, %p228
      %p231 = scmp.ne.s32.totalorder %s216, %s230
      %p232 = scmp.eq.s32.totalorder %s38, 0
      %p233 = por %p231, %p232
      %s235 = sadd.s32 %s234, 1
      %p238 = scmp.eq.s32.totalorder %s32, 1
      %p239 = scmp.ne.s32.totalorder %s234, %s236
      %p240 = scmp.eq.s32.totalorder %s32, 0
      %p241 = por %p239, %p240
      %p242 = scmp.ne.s32.totalorder %s234, %s236
      %p243 = scmp.eq.s32.totalorder %s37, 1
      %p244 = por %p242, %p243
      %p245 = scmp.ne.s32.totalorder %s236, %s237
      %p246 = scmp.eq.s32.totalorder %s37, 0
      %p247 = por %p245, %p246
      %p248 = scmp.ne.s32.totalorder %s236, %s237
      %p249 = scmp.eq.s32.totalorder %s38, 1
      %p250 = por %p248, %p249
      %p252 = scmp.ne.s32.totalorder %s237, %s251
      %p253 = scmp.eq.s32.totalorder %s38, 0
      %p254 = por %p252, %p253
      %s256 = sadd.s32 %s255, 1
      %p259 = scmp.eq.s32.totalorder %s32, 1
      %p260 = scmp.ne.s32.totalorder %s255, %s257
      %p261 = scmp.eq.s32.totalorder %s32, 0
      %p262 = por %p260, %p261
      %p263 = scmp.ne.s32.totalorder %s255, %s257
      %p264 = scmp.eq.s32.totalorder %s37, 1
      %p265 = por %p263, %p264
      %p266 = scmp.ne.s32.totalorder %s257, %s258
      %p267 = scmp.eq.s32.totalorder %s37, 0
      %p268 = por %p266, %p267
      %p269 = scmp.ne.s32.totalorder %s257, %s258
      %p270 = scmp.eq.s32.totalorder %s38, 1
      %p271 = por %p269, %p270
      %p273 = scmp.ne.s32.totalorder %s258, %s272
      %p274 = scmp.eq.s32.totalorder %s38, 0
      %p275 = por %p273, %p274
      %s277 = sadd.s32 %s276, 1
      %p280 = scmp.eq.s32.totalorder %s32, 1
      %p281 = scmp.ne.s32.totalorder %s276, %s278
      %p282 = scmp.eq.s32.totalorder %s32, 0
      %p283 = por %p281, %p282
      %p284 = scmp.ne.s32.totalorder %s276, %s278
      %p285 = scmp.eq.s32.totalorder %s37, 1
      %p286 = por %p284, %p285
      %p287 = scmp.ne.s32.totalorder %s278, %s279
      %p288 = scmp.eq.s32.totalorder %s37, 0
      %p289 = por %p287, %p288
      %p290 = scmp.ne.s32.totalorder %s278, %s279
      %p291 = scmp.eq.s32.totalorder %s38, 1
      %p292 = por %p290, %p291
      %p294 = scmp.ne.s32.totalorder %s279, %s293
      %p295 = scmp.eq.s32.totalorder %s38, 0
      %p296 = por %p294, %p295
      %s298 = sadd.s32 %s297, 1
      %p301 = scmp.eq.s32.totalorder %s32, 1
      %p302 = scmp.ne.s32.totalorder %s297, %s299
      %p303 = scmp.eq.s32.totalorder %s32, 0
      %p304 = por %p302, %p303
      %p305 = scmp.ne.s32.totalorder %s297, %s299
      %p306 = scmp.eq.s32.totalorder %s37, 1
      %p307 = por %p305, %p306
      %p308 = scmp.ne.s32.totalorder %s299, %s300
      %p309 = scmp.eq.s32.totalorder %s37, 0
      %p310 = por %p308, %p309
      %p311 = scmp.ne.s32.totalorder %s299, %s300
      %p312 = scmp.eq.s32.totalorder %s38, 1
      %p313 = por %p311, %p312
      %p315 = scmp.ne.s32.totalorder %s300, %s314
      %p316 = scmp.eq.s32.totalorder %s38, 0
      %p317 = por %p315, %p316
      %s319 = sadd.s32 %s318, 1
      %p322 = scmp.eq.s32.totalorder %s32, 1
      %p323 = scmp.ne.s32.totalorder %s318, %s320
      %p324 = scmp.eq.s32.totalorder %s32, 0
      %p325 = por %p323, %p324
      %p326 = scmp.ne.s32.totalorder %s318, %s320
      %p327 = scmp.eq.s32.totalorder %s37, 1
      %p328 = por %p326, %p327
      %p329 = scmp.ne.s32.totalorder %s320, %s321
      %p330 = scmp.eq.s32.totalorder %s37, 0
      %p331 = por %p329, %p330
      %p332 = scmp.ne.s32.totalorder %s320, %s321
      %p333 = scmp.eq.s32.totalorder %s38, 1
      %p334 = por %p332, %p333
      %p336 = scmp.ne.s32.totalorder %s321, %s335
      %p337 = scmp.eq.s32.totalorder %s38, 0
      %p338 = por %p336, %p337
      %s340 = sadd.s32 %s339, 1
      %p343 = scmp.eq.s32.totalorder %s32, 1
      %p344 = scmp.ne.s32.totalorder %s339, %s341
      %p345 = scmp.eq.s32.totalorder %s32, 0
      %p346 = por %p344, %p345
      %p347 = scmp.ne.s32.totalorder %s339, %s341
      %p348 = scmp.eq.s32.totalorder %s37, 1
      %p349 = por %p347, %p348
      %p350 = scmp.ne.s32.totalorder %s341, %s342
      %p351 = scmp.eq.s32.totalorder %s37, 0
      %p352 = por %p350, %p351
      %p353 = scmp.ne.s32.totalorder %s341, %s342
      %p354 = scmp.eq.s32.totalorder %s38, 1
      %p355 = por %p353, %p354
      %p357 = scmp.ne.s32.totalorder %s342, %s356
      %p358 = scmp.eq.s32.totalorder %s38, 0
      %p359 = por %p357, %p358
      %s361 = sadd.s32 %s360, 1
      %p364 = scmp.eq.s32.totalorder %s32, 1
      %p365 = scmp.ne.s32.totalorder %s360, %s362
      %p366 = scmp.eq.s32.totalorder %s32, 0
      %p367 = por %p365, %p366
      %p368 = scmp.ne.s32.totalorder %s360, %s362
      %p369 = scmp.eq.s32.totalorder %s37, 1
      %p370 = por %p368, %p369
      %p371 = scmp.ne.s32.totalorder %s362, %s363
      %p372 = scmp.eq.s32.totalorder %s37, 0
      %p373 = por %p371, %p372
      %p374 = scmp.ne.s32.totalorder %s362, %s363
      %p375 = scmp.eq.s32.totalorder %s38, 1
      %p376 = por %p374, %p375
      %p378 = scmp.ne.s32.totalorder %s363, %s377
      %p379 = scmp.eq.s32.totalorder %s38, 0
      %p380 = por %p378, %p379
      %s381 = ssub.s32 %s32, %s39
      %p382 = scmp.eq.s32.totalorder %s381, 0
      %s384 = sadd.s32 %s383, 1
      %s385 = scalar_select %p382, %s383, %s384
      %p388 = pneg %p382
      %p389 = scmp.eq.s32.totalorder %s32, 1
      %p390 = por %p388, %p389
      %p391 = scmp.ne.s32.totalorder %s383, %s386
      %p392 = scmp.eq.s32.totalorder %s32, 0
      %p393 = por %p391, %p392
      %p394 = scmp.ne.s32.totalorder %s383, %s386
      %p395 = scmp.eq.s32.totalorder %s37, 1
      %p396 = por %p394, %p395
      %p397 = scmp.ne.s32.totalorder %s386, %s387
      %p398 = scmp.eq.s32.totalorder %s37, 0
      %p399 = por %p397, %p398
      %p400 = scmp.ne.s32.totalorder %s386, %s387
      %p401 = scmp.eq.s32.totalorder %s38, 1
      %p402 = por %p400, %p401
      %p404 = scmp.ne.s32.totalorder %s387, %s403
      %p405 = scmp.eq.s32.totalorder %s38, 0
      %p406 = por %p404, %p405
      %p407 = scmp.le.s32.totalorder 1, %s32
      %p408 = scmp.lt.s32.totalorder %s32, 3
      %p409 = pnand %p407, %p408
      %p410 = pneg %p409
      // Predicated region
      $region9: #{tpu_custom_call.1} parent=5 // pred_check
        _
      $region10: #{tpu_custom_call.1} parent=5 // pred_check_branch
        %412 = sbr.rel (%p409) target = $region12
      $region11: #{tpu_custom_call.1} parent=5 // pred_region
        %s413 = ssub.s32 %s32, 1
        // Predicated region
        $region13: #{tpu_custom_call.1} parent=11 // pred_check
          %p414 = pneg %p79
        $region14: #{tpu_custom_call.1} parent=11 // pred_check_branch
          %416 = sbr.rel (%p414) target = $region16
        $region15: #{tpu_custom_call.1} parent=11 // pred_region
          %s418 = ssub.s32 24576, 24576
          %419 = vsyncadd [#allocation6], %s418
          %s420 = sshll.u32 [#allocation5], 4
          %s421 = int_to_ptr.vmem [resolvable:$true] %s420
          %426 = dma.hbm_to_vmem [thread:$0]  %s1, 24576, %s421, [#allocation6], 256, 256, 16
        $region16: #{tpu_custom_call.1} parent=11 // pred_fallthru
          _
        // Predicated region
        $region17: #{tpu_custom_call.1} parent=11 // pred_check
          %p427 = pneg %p100
        $region18: #{tpu_custom_call.1} parent=11 // pred_check_branch
          %429 = sbr.rel (%p427) target = $region20
        $region19: #{tpu_custom_call.1} parent=11 // pred_region
          %s431 = ssub.s32 8192, 8192
          %432 = vsyncadd [#allocation6], %s431
          %s433 = sshll.u32 [#allocation7], 4
          %s434 = int_to_ptr.vmem [resolvable:$true] %s433
          %439 = dma.hbm_to_vmem [thread:$0]  %s2, 8192, %s434, [#allocation6], 128, 128, 8
        $region20: #{tpu_custom_call.1} parent=11 // pred_fallthru
          _
        // Predicated region
        $region21: #{tpu_custom_call.1} parent=11 // pred_check
          %p440 = pneg %p121
        $region22: #{tpu_custom_call.1} parent=11 // pred_check_branch
          %442 = sbr.rel (%p440) target = $region24
        $region23: #{tpu_custom_call.1} parent=11 // pred_region
          %s444 = ssub.s32 2048, 2048
          %445 = vsyncadd [#allocation9], %s444
          %s446 = sshll.u32 [#allocation8], 4
          %s447 = int_to_ptr.vmem [resolvable:$true] %s446
          %452 = dma.hbm_to_vmem [thread:$0]  %s3, 2048, %s447, [#allocation9], 64, 64, 4
        $region24: #{tpu_custom_call.1} parent=11 // pred_fallthru
          _
        // Predicated region
        $region25: #{tpu_custom_call.1} parent=11 // pred_check
          %p453 = pneg %p142
        $region26: #{tpu_custom_call.1} parent=11 // pred_check_branch
          %455 = sbr.rel (%p453) target = $region28
        $region27: #{tpu_custom_call.1} parent=11 // pred_region
          _
        $region28: #{tpu_custom_call.1} parent=11 // pred_fallthru
          _
        // Predicated region
        $region29: #{tpu_custom_call.1} parent=11 // pred_check
          %p456 = pneg %p163
        $region30: #{tpu_custom_call.1} parent=11 // pred_check_branch
          %458 = sbr.rel (%p456) target = $region32
        $region31: #{tpu_custom_call.1} parent=11 // pred_region
          _
        $region32: #{tpu_custom_call.1} parent=11 // pred_fallthru
          _
        // Predicated region
        $region33: #{tpu_custom_call.1} parent=11 // pred_check
          %p459 = pneg %p184
        $region34: #{tpu_custom_call.1} parent=11 // pred_check_branch
          %461 = sbr.rel (%p459) target = $region36
        $region35: #{tpu_custom_call.1} parent=11 // pred_region
          _
        $region36: #{tpu_custom_call.1} parent=11 // pred_fallthru
          _
        // Predicated region
        $region37: #{tpu_custom_call.1} parent=11 // pred_check
          %p462 = pneg %p205
        $region38: #{tpu_custom_call.1} parent=11 // pred_check_branch
          %464 = sbr.rel (%p462) target = $region40
        $region39: #{tpu_custom_call.1} parent=11 // pred_region
          _
        $region40: #{tpu_custom_call.1} parent=11 // pred_fallthru
          _
        // Predicated region
        $region41: #{tpu_custom_call.1} parent=11 // pred_check
          %p465 = pneg %p226
        $region42: #{tpu_custom_call.1} parent=11 // pred_check_branch
          %467 = sbr.rel (%p465) target = $region44
        $region43: #{tpu_custom_call.1} parent=11 // pred_region
          _
        $region44: #{tpu_custom_call.1} parent=11 // pred_fallthru
          _
        // Predicated region
        $region45: #{tpu_custom_call.1} parent=11 // pred_check
          %p468 = pneg %p247
        $region46: #{tpu_custom_call.1} parent=11 // pred_check_branch
          %470 = sbr.rel (%p468) target = $region48
        $region47: #{tpu_custom_call.1} parent=11 // pred_region
          _
        $region48: #{tpu_custom_call.1} parent=11 // pred_fallthru
          _
        // Predicated region
        $region49: #{tpu_custom_call.1} parent=11 // pred_check
          %p471 = pneg %p268
        $region50: #{tpu_custom_call.1} parent=11 // pred_check_branch
          %473 = sbr.rel (%p471) target = $region52
        $region51: #{tpu_custom_call.1} parent=11 // pred_region
          %s475 = ssub.s32 256, 256
          %476 = vsyncadd [#allocation9], %s475
          %s477 = sshll.u32 [#allocation10], 4
          %s478 = int_to_ptr.vmem [resolvable:$true] %s477
          %483 = dma.hbm_to_vmem [thread:$0]  %s10, 256, %s478, [#allocation9], 64, 64, 4
        $region52: #{tpu_custom_call.1} parent=11 // pred_fallthru
          _
        // Predicated region
        $region53: #{tpu_custom_call.1} parent=11 // pred_check
          %p484 = pneg %p289
        $region54: #{tpu_custom_call.1} parent=11 // pred_check_branch
          %486 = sbr.rel (%p484) target = $region56
        $region55: #{tpu_custom_call.1} parent=11 // pred_region
          %s488 = ssub.s32 512, 512
          %489 = vsyncadd [#allocation12], %s488
          %s490 = sshll.u32 [#allocation11], 4
          %s491 = int_to_ptr.vmem [resolvable:$true] %s490
          %496 = dma.hbm_to_vmem [thread:$0]  %s11, 512, %s491, [#allocation12], 64, 64, 4
        $region56: #{tpu_custom_call.1} parent=11 // pred_fallthru
          _
        // Predicated region
        $region57: #{tpu_custom_call.1} parent=11 // pred_check
          %p497 = pneg %p310
        $region58: #{tpu_custom_call.1} parent=11 // pred_check_branch
          %499 = sbr.rel (%p497) target = $region60
        $region59: #{tpu_custom_call.1} parent=11 // pred_region
          %s501 = ssub.s32 2048, 2048
          %502 = vsyncadd [#allocation12], %s501
          %s503 = sshll.u32 [#allocation13], 4
          %s504 = int_to_ptr.vmem [resolvable:$true] %s503
          %509 = dma.hbm_to_vmem [thread:$0]  %s12, 2048, %s504, [#allocation12], 128, 128, 8
        $region60: #{tpu_custom_call.1} parent=11 // pred_fallthru
          _
        // Predicated region
        $region61: #{tpu_custom_call.1} parent=11 // pred_check
          %p510 = pneg %p331
        $region62: #{tpu_custom_call.1} parent=11 // pred_check_branch
          %512 = sbr.rel (%p510) target = $region64
        $region63: #{tpu_custom_call.1} parent=11 // pred_region
          %s514 = ssub.s32 8192, 8192
          %515 = vsyncadd [#allocation15], %s514
          %s516 = sshll.u32 [#allocation14], 4
          %s517 = int_to_ptr.vmem [resolvable:$true] %s516
          %522 = dma.hbm_to_vmem [thread:$0]  %s13, 8192, %s517, [#allocation15], 256, 256, 16
        $region64: #{tpu_custom_call.1} parent=11 // pred_fallthru
          _
        // Predicated region
        $region65: #{tpu_custom_call.1} parent=11 // pred_check
          %p523 = pneg %p352
        $region66: #{tpu_custom_call.1} parent=11 // pred_check_branch
          %525 = sbr.rel (%p523) target = $region68
        $region67: #{tpu_custom_call.1} parent=11 // pred_region
          %s527 = ssub.s32 24576, 24576
          %528 = vsyncadd [#allocation15], %s527
          %s529 = sshll.u32 [#allocation16], 4
          %s530 = int_to_ptr.vmem [resolvable:$true] %s529
          %535 = dma.hbm_to_vmem [thread:$0]  %s14, 24576, %s530, [#allocation15], 384, 384, 24
        $region68: #{tpu_custom_call.1} parent=11 // pred_fallthru
          _
        // Predicated region
        $region69: #{tpu_custom_call.1} parent=11 // pred_check
          %p536 = pneg %p373
        $region70: #{tpu_custom_call.1} parent=11 // pred_check_branch
          %538 = sbr.rel (%p536) target = $region72
        $region71: #{tpu_custom_call.1} parent=11 // pred_region
          _
        $region72: #{tpu_custom_call.1} parent=11 // pred_fallthru
          _
      $region12: #{tpu_custom_call.1} parent=5 // pred_fallthru
        _
      %p539 = scmp.lt.s32.totalorder %s32, 2
      // Predicated region
      $region73: #{tpu_custom_call.1} parent=5 // pred_check
        %p540 = pneg %p539
      $region74: #{tpu_custom_call.1} parent=5 // pred_check_branch
        %542 = sbr.rel (%p540) target = $region76
      $region75: #{tpu_custom_call.1} parent=5 // pred_region
        // Predicated region
        $region77: #{tpu_custom_call.1} parent=75 // pred_check
          %p543 = pneg %p52
        $region78: #{tpu_custom_call.1} parent=75 // pred_check_branch
          %545 = sbr.rel (%p543) target = $region80
        $region79: #{tpu_custom_call.1} parent=75 // pred_region
          %s546 = sand.u32 %s42, 1
          %s547 = scalar_lea.sflag [#allocation3], %s546
          %s548 = sand.u32 %s42, 1
          %s549 = smul.addr %s548, 192
          %s550 = scalar_lea.vmem [#allocation2], %s549
          %s551 = smul.u32 4, %s32
          %s553 = ssub.s32 3072, 3072
          %554 = vsyncadd %s547, %s553
          %s555 = smul.addr %s551, 6
          %s556 = smul.addr %s555, 128
          %s557 = scalar_lea.hbm %s0, %s556
          %s558 = sshll.u32 %s550, 4
          %s559 = int_to_ptr.vmem [resolvable:$true] %s558
          %564 = dma.hbm_to_vmem [thread:$0]  %s557, 3072, %s559, %s547, 768, 768, 48
        $region80: #{tpu_custom_call.1} parent=75 // pred_fallthru
          _
      $region76: #{tpu_custom_call.1} parent=5 // pred_fallthru
        _
      %p565 = scmp.le.s32.totalorder 1, %s32
      %p566 = scmp.lt.s32.totalorder %s32, 3
      %p567 = pnand %p565, %p566
      %p568 = pneg %p567
      // Predicated region
      $region81: #{tpu_custom_call.1} parent=5 // pred_check
        _
      $region82: #{tpu_custom_call.1} parent=5 // pred_check_branch
        %570 = sbr.rel (%p567) target = $region84
      $region83: #{tpu_custom_call.1} parent=5 // pred_region
        %s571 = ssub.s32 %s32, 1
        %s572 = sand.u32 %s45, 1
        %s573 = scalar_lea.sflag [#allocation3], %s572
        %s574 = sand.u32 %s45, 1
        %s575 = smul.addr %s574, 192
        %s576 = scalar_lea.vmem [#allocation2], %s575
        // Predicated region
        $region85: #{tpu_custom_call.1} parent=83 // pred_check
          %p577 = pneg %p58
        $region86: #{tpu_custom_call.1} parent=83 // pred_check_branch
          %579 = sbr.rel (%p577) target = $region88
        $region87: #{tpu_custom_call.1} parent=83 // pred_region
          %580 = dma.done %s573, 3072
        $region88: #{tpu_custom_call.1} parent=83 // pred_fallthru
          _
        // Predicated region
        $region89: #{tpu_custom_call.1} parent=83 // pred_check
          %p581 = pneg %p79
        $region90: #{tpu_custom_call.1} parent=83 // pred_check_branch
          %583 = sbr.rel (%p581) target = $region92
        $region91: #{tpu_custom_call.1} parent=83 // pred_region
          %584 = dma.done [#allocation6], 24576
        $region92: #{tpu_custom_call.1} parent=83 // pred_fallthru
          _
        // Predicated region
        $region93: #{tpu_custom_call.1} parent=83 // pred_check
          %p585 = pneg %p100
        $region94: #{tpu_custom_call.1} parent=83 // pred_check_branch
          %587 = sbr.rel (%p585) target = $region96
        $region95: #{tpu_custom_call.1} parent=83 // pred_region
          %588 = dma.done [#allocation6], 8192
        $region96: #{tpu_custom_call.1} parent=83 // pred_fallthru
          _
        // Predicated region
        $region97: #{tpu_custom_call.1} parent=83 // pred_check
          %p589 = pneg %p121
        $region98: #{tpu_custom_call.1} parent=83 // pred_check_branch
          %591 = sbr.rel (%p589) target = $region100
        $region99: #{tpu_custom_call.1} parent=83 // pred_region
          %592 = dma.done [#allocation9], 2048
        $region100: #{tpu_custom_call.1} parent=83 // pred_fallthru
          _
        // Predicated region
        $region101: #{tpu_custom_call.1} parent=83 // pred_check
          %p593 = pneg %p268
        $region102: #{tpu_custom_call.1} parent=83 // pred_check_branch
          %595 = sbr.rel (%p593) target = $region104
        $region103: #{tpu_custom_call.1} parent=83 // pred_region
          %596 = dma.done [#allocation9], 256
        $region104: #{tpu_custom_call.1} parent=83 // pred_fallthru
          _
        // Predicated region
        $region105: #{tpu_custom_call.1} parent=83 // pred_check
          %p597 = pneg %p289
        $region106: #{tpu_custom_call.1} parent=83 // pred_check_branch
          %599 = sbr.rel (%p597) target = $region108
        $region107: #{tpu_custom_call.1} parent=83 // pred_region
          %600 = dma.done [#allocation12], 512
        $region108: #{tpu_custom_call.1} parent=83 // pred_fallthru
          _
        // Predicated region
        $region109: #{tpu_custom_call.1} parent=83 // pred_check
          %p601 = pneg %p310
        $region110: #{tpu_custom_call.1} parent=83 // pred_check_branch
          %603 = sbr.rel (%p601) target = $region112
        $region111: #{tpu_custom_call.1} parent=83 // pred_region
          %604 = dma.done [#allocation12], 2048
        $region112: #{tpu_custom_call.1} parent=83 // pred_fallthru
          _
        // Predicated region
        $region113: #{tpu_custom_call.1} parent=83 // pred_check
          %p605 = pneg %p331
        $region114: #{tpu_custom_call.1} parent=83 // pred_check_branch
          %607 = sbr.rel (%p605) target = $region116
        $region115: #{tpu_custom_call.1} parent=83 // pred_region
          %608 = dma.done [#allocation15], 8192
        $region116: #{tpu_custom_call.1} parent=83 // pred_fallthru
          _
        // Predicated region
        $region117: #{tpu_custom_call.1} parent=83 // pred_check
          %p609 = pneg %p352
        $region118: #{tpu_custom_call.1} parent=83 // pred_check_branch
          %611 = sbr.rel (%p609) target = $region120
        $region119: #{tpu_custom_call.1} parent=83 // pred_region
          %612 = dma.done [#allocation15], 24576
        $region120: #{tpu_custom_call.1} parent=83 // pred_fallthru
          _
        %s613 = sand.u32 %s45, 1
        %s614 = scalar_lea.sflag [#allocation3], %s613
        %s615 = sand.u32 %s45, 1
        %s616 = smul.addr %s615, 192
        %s617 = scalar_lea.vmem [#allocation2], %s616
        %p618 = pneg %p58
        %p619 = pneg %p55
        %p620 = pneg %p79
        %p621 = pneg %p76
        %p622 = pneg %p100
        %p623 = pneg %p97
        %p624 = pneg %p121
        %p625 = pneg %p118
        %p626 = pneg %p142
        %p627 = pneg %p139
        %p628 = pneg %p163
        %p629 = pneg %p160
        %p630 = pneg %p184
        %p631 = pneg %p181
        %p632 = pneg %p205
        %p633 = pneg %p202
        %p634 = pneg %p226
        %p635 = pneg %p223
        %p636 = pneg %p247
        %p637 = pneg %p244
        %p638 = pneg %p268
        %p639 = pneg %p265
        %p640 = pneg %p289
        %p641 = pneg %p286
        %p642 = pneg %p310
        %p643 = pneg %p307
        %p644 = pneg %p331
        %p645 = pneg %p328
        %p646 = pneg %p352
        %p647 = pneg %p349
        %p648 = pneg %p373
        %p649 = pneg %p370
        %p650 = pneg %p399
        %p651 = pneg %p396
        %s652 = sand.u32 %s386, 1
        %s653 = scalar_lea.sflag [#allocation4], %s652
        %s654 = sand.u32 %s386, 1
        %s655 = smul.addr %s654, 192
        %s656 = scalar_lea.vmem [#allocation17], %s655
        %s657 = smul.u32 4, %s37
        %s658 = smul.u32 4, %s37
        %v660 = vld [vmem:[%s576] sm:$0xff]
        %v661 = vld [vmem:[%s576 + $0x8] sm:$0xff]
        %v662 = vld [vmem:[%s576 + $0x10] sm:$0xff]
        %v663 = vld [vmem:[%s576 + $0x18] sm:$0xff]
        %v664 = vld [vmem:[%s576 + $0x20] sm:$0xff]
        %v665 = vld [vmem:[%s576 + $0x28] sm:$0xff]
        %v666 = vld [vmem:[%s576 + $0x30] sm:$0xff]
        %v667 = vld [vmem:[%s576 + $0x38] sm:$0xff]
        %v668 = vld [vmem:[%s576 + $0x40] sm:$0xff]
        %v669 = vld [vmem:[%s576 + $0x48] sm:$0xff]
        %v670 = vld [vmem:[%s576 + $0x50] sm:$0xff]
        %v671 = vld [vmem:[%s576 + $0x58] sm:$0xff]
        %v672 = vld [vmem:[%s576 + $0x60] sm:$0xff]
        %v673 = vld [vmem:[%s576 + $0x68] sm:$0xff]
        %v674 = vld [vmem:[%s576 + $0x70] sm:$0xff]
        %v675 = vld [vmem:[%s576 + $0x78] sm:$0xff]
        %v676 = vld [vmem:[%s576 + $0x80] sm:$0xff]
        %v677 = vld [vmem:[%s576 + $0x88] sm:$0xff]
        %v678 = vld [vmem:[%s576 + $0x90] sm:$0xff]
        %v679 = vld [vmem:[%s576 + $0x98] sm:$0xff]
        %v680 = vld [vmem:[%s576 + $0xa0] sm:$0xff]
        %v681 = vld [vmem:[%s576 + $0xa8] sm:$0xff]
        %v682 = vld [vmem:[%s576 + $0xb0] sm:$0xff]
        %v683 = vld [vmem:[%s576 + $0xb8] sm:$0xff]
        %v684 = vld [vmem:[%s15] ss:$8 sm:$0xf]
        %v685 = vpack.c.bf16 %v666, %v660
        %v686 = vpack.c.bf16 %v667, %v661
        %v687 = vpack.c.bf16 %v668, %v662
        %v688 = vpack.c.bf16 %v669, %v663
        %v689 = vpack.c.bf16 %v670, %v664
        %v690 = vpack.c.bf16 %v671, %v665
        %v691 = vpack.c.bf16 %v678, %v672
        %v692 = vpack.c.bf16 %v679, %v673
        %v693 = vpack.c.bf16 %v680, %v674
        %v694 = vpack.c.bf16 %v681, %v675
        %v695 = vpack.c.bf16 %v682, %v676
        %v696 = vpack.c.bf16 %v683, %v677
        %v697 = vld [vmem:[#allocation5] sm:$0xff]
        %v698 = vld [vmem:[#allocation5 + $0x8] sm:$0xff]
        %v699 = vld [vmem:[#allocation5 + $0x10] sm:$0xff]
        %v700 = vld [vmem:[#allocation5 + $0x18] sm:$0xff]
        %v701 = vld [vmem:[#allocation5 + $0x20] sm:$0xff]
        %v702 = vld [vmem:[#allocation5 + $0x28] sm:$0xff]
        %v703 = vld [vmem:[#allocation5 + $0x30] sm:$0xff]
        %v704 = vld [vmem:[#allocation5 + $0x38] sm:$0xff]
        %v705 = vld [vmem:[#allocation5 + $0x40] sm:$0xff]
        %v706 = vld [vmem:[#allocation5 + $0x48] sm:$0xff]
        %v707 = vld [vmem:[#allocation5 + $0x50] sm:$0xff]
        %v708 = vld [vmem:[#allocation5 + $0x58] sm:$0xff]
        %v709 = vld [vmem:[#allocation5 + $0x60] sm:$0xff]
        %v710 = vld [vmem:[#allocation5 + $0x68] sm:$0xff]
        %v711 = vld [vmem:[#allocation5 + $0x70] sm:$0xff]
        %v712 = vld [vmem:[#allocation5 + $0x78] sm:$0xff]
        %v713 = vld [vmem:[#allocation5 + $0x80] sm:$0xff]
        %v714 = vld [vmem:[#allocation5 + $0x88] sm:$0xff]
        %v715 = vld [vmem:[#allocation5 + $0x90] sm:$0xff]
        %v716 = vld [vmem:[#allocation5 + $0x98] sm:$0xff]
        %v717 = vld [vmem:[#allocation5 + $0xa0] sm:$0xff]
        %v718 = vld [vmem:[#allocation5 + $0xa8] sm:$0xff]
        %v719 = vld [vmem:[#allocation5 + $0xb0] sm:$0xff]
        %v720 = vld [vmem:[#allocation5 + $0xb8] sm:$0xff]
        %v721 = vld [vmem:[#allocation5 + $0xc0] sm:$0xff]
        %v722 = vld [vmem:[#allocation5 + $0xc8] sm:$0xff]
        %v723 = vld [vmem:[#allocation5 + $0xd0] sm:$0xff]
        %v724 = vld [vmem:[#allocation5 + $0xd8] sm:$0xff]
        %v725 = vld [vmem:[#allocation5 + $0xe0] sm:$0xff]
        %v726 = vld [vmem:[#allocation5 + $0xe8] sm:$0xff]
        %v727 = vld [vmem:[#allocation5 + $0xf0] sm:$0xff]
        %v728 = vld [vmem:[#allocation5 + $0xf8] sm:$0xff]
        %v729 = vld [vmem:[#allocation5 + $0x100] sm:$0xff]
        %v730 = vld [vmem:[#allocation5 + $0x108] sm:$0xff]
        %v731 = vld [vmem:[#allocation5 + $0x110] sm:$0xff]
        %v732 = vld [vmem:[#allocation5 + $0x118] sm:$0xff]
        %v733 = vld [vmem:[#allocation5 + $0x120] sm:$0xff]
        %v734 = vld [vmem:[#allocation5 + $0x128] sm:$0xff]
        %v735 = vld [vmem:[#allocation5 + $0x130] sm:$0xff]
        %v736 = vld [vmem:[#allocation5 + $0x138] sm:$0xff]
        %v737 = vld [vmem:[#allocation5 + $0x140] sm:$0xff]
        %v738 = vld [vmem:[#allocation5 + $0x148] sm:$0xff]
        %v739 = vld [vmem:[#allocation5 + $0x150] sm:$0xff]
        %v740 = vld [vmem:[#allocation5 + $0x158] sm:$0xff]
        %v741 = vld [vmem:[#allocation5 + $0x160] sm:$0xff]
        %v742 = vld [vmem:[#allocation5 + $0x168] sm:$0xff]
        %v743 = vld [vmem:[#allocation5 + $0x170] sm:$0xff]
        %v744 = vld [vmem:[#allocation5 + $0x178] sm:$0xff]
        %v745 = vld [vmem:[#allocation5 + $0x180] sm:$0xff]
        %v746 = vld [vmem:[#allocation5 + $0x188] sm:$0xff]
        %v747 = vld [vmem:[#allocation5 + $0x190] sm:$0xff]
        %v748 = vld [vmem:[#allocation5 + $0x198] sm:$0xff]
        %v749 = vld [vmem:[#allocation5 + $0x1a0] sm:$0xff]
        %v750 = vld [vmem:[#allocation5 + $0x1a8] sm:$0xff]
        %v751 = vld [vmem:[#allocation5 + $0x1b0] sm:$0xff]
        %v752 = vld [vmem:[#allocation5 + $0x1b8] sm:$0xff]
        %v753 = vld [vmem:[#allocation5 + $0x1c0] sm:$0xff]
        %v754 = vld [vmem:[#allocation5 + $0x1c8] sm:$0xff]
        %v755 = vld [vmem:[#allocation5 + $0x1d0] sm:$0xff]
        %v756 = vld [vmem:[#allocation5 + $0x1d8] sm:$0xff]
        %v757 = vld [vmem:[#allocation5 + $0x1e0] sm:$0xff]
        %v758 = vld [vmem:[#allocation5 + $0x1e8] sm:$0xff]
        %v759 = vld [vmem:[#allocation5 + $0x1f0] sm:$0xff]
        %v760 = vld [vmem:[#allocation5 + $0x1f8] sm:$0xff]
        %v761 = vld [vmem:[#allocation5 + $0x200] sm:$0xff]
        %v762 = vld [vmem:[#allocation5 + $0x208] sm:$0xff]
        %v763 = vld [vmem:[#allocation5 + $0x210] sm:$0xff]
        %v764 = vld [vmem:[#allocation5 + $0x218] sm:$0xff]
        %v765 = vld [vmem:[#allocation5 + $0x220] sm:$0xff]
        %v766 = vld [vmem:[#allocation5 + $0x228] sm:$0xff]
        %v767 = vld [vmem:[#allocation5 + $0x230] sm:$0xff]
        %v768 = vld [vmem:[#allocation5 + $0x238] sm:$0xff]
        %v769 = vld [vmem:[#allocation5 + $0x240] sm:$0xff]
        %v770 = vld [vmem:[#allocation5 + $0x248] sm:$0xff]
        %v771 = vld [vmem:[#allocation5 + $0x250] sm:$0xff]
        %v772 = vld [vmem:[#allocation5 + $0x258] sm:$0xff]
        %v773 = vld [vmem:[#allocation5 + $0x260] sm:$0xff]
        %v774 = vld [vmem:[#allocation5 + $0x268] sm:$0xff]
        %v775 = vld [vmem:[#allocation5 + $0x270] sm:$0xff]
        %v776 = vld [vmem:[#allocation5 + $0x278] sm:$0xff]
        %v777 = vld [vmem:[#allocation5 + $0x280] sm:$0xff]
        %v778 = vld [vmem:[#allocation5 + $0x288] sm:$0xff]
        %v779 = vld [vmem:[#allocation5 + $0x290] sm:$0xff]
        %v780 = vld [vmem:[#allocation5 + $0x298] sm:$0xff]
        %v781 = vld [vmem:[#allocation5 + $0x2a0] sm:$0xff]
        %v782 = vld [vmem:[#allocation5 + $0x2a8] sm:$0xff]
        %v783 = vld [vmem:[#allocation5 + $0x2b0] sm:$0xff]
        %v784 = vld [vmem:[#allocation5 + $0x2b8] sm:$0xff]
        %v785 = vld [vmem:[#allocation5 + $0x2c0] sm:$0xff]
        %v786 = vld [vmem:[#allocation5 + $0x2c8] sm:$0xff]
        %v787 = vld [vmem:[#allocation5 + $0x2d0] sm:$0xff]
        %v788 = vld [vmem:[#allocation5 + $0x2d8] sm:$0xff]
        %v789 = vld [vmem:[#allocation5 + $0x2e0] sm:$0xff]
        %v790 = vld [vmem:[#allocation5 + $0x2e8] sm:$0xff]
        %v791 = vld [vmem:[#allocation5 + $0x2f0] sm:$0xff]
        %v792 = vld [vmem:[#allocation5 + $0x2f8] sm:$0xff]
        %v793 = vld [vmem:[#allocation5 + $0x300] sm:$0xff]
        %v794 = vld [vmem:[#allocation5 + $0x308] sm:$0xff]
        %v795 = vld [vmem:[#allocation5 + $0x310] sm:$0xff]
        %v796 = vld [vmem:[#allocation5 + $0x318] sm:$0xff]
        %v797 = vld [vmem:[#allocation5 + $0x320] sm:$0xff]
        %v798 = vld [vmem:[#allocation5 + $0x328] sm:$0xff]
        %v799 = vld [vmem:[#allocation5 + $0x330] sm:$0xff]
        %v800 = vld [vmem:[#allocation5 + $0x338] sm:$0xff]
        %v801 = vld [vmem:[#allocation5 + $0x340] sm:$0xff]
        %v802 = vld [vmem:[#allocation5 + $0x348] sm:$0xff]
        %v803 = vld [vmem:[#allocation5 + $0x350] sm:$0xff]
        %v804 = vld [vmem:[#allocation5 + $0x358] sm:$0xff]
        %v805 = vld [vmem:[#allocation5 + $0x360] sm:$0xff]
        %v806 = vld [vmem:[#allocation5 + $0x368] sm:$0xff]
        %v807 = vld [vmem:[#allocation5 + $0x370] sm:$0xff]
        %v808 = vld [vmem:[#allocation5 + $0x378] sm:$0xff]
        %v809 = vld [vmem:[#allocation5 + $0x380] sm:$0xff]
        %v810 = vld [vmem:[#allocation5 + $0x388] sm:$0xff]
        %v811 = vld [vmem:[#allocation5 + $0x390] sm:$0xff]
        %v812 = vld [vmem:[#allocation5 + $0x398] sm:$0xff]
        %v813 = vld [vmem:[#allocation5 + $0x3a0] sm:$0xff]
        %v814 = vld [vmem:[#allocation5 + $0x3a8] sm:$0xff]
        %v815 = vld [vmem:[#allocation5 + $0x3b0] sm:$0xff]
        %v816 = vld [vmem:[#allocation5 + $0x3b8] sm:$0xff]
        %v817 = vld [vmem:[#allocation5 + $0x3c0] sm:$0xff]
        %v818 = vld [vmem:[#allocation5 + $0x3c8] sm:$0xff]
        %v819 = vld [vmem:[#allocation5 + $0x3d0] sm:$0xff]
        %v820 = vld [vmem:[#allocation5 + $0x3d8] sm:$0xff]
        %v821 = vld [vmem:[#allocation5 + $0x3e0] sm:$0xff]
        %v822 = vld [vmem:[#allocation5 + $0x3e8] sm:$0xff]
        %v823 = vld [vmem:[#allocation5 + $0x3f0] sm:$0xff]
        %v824 = vld [vmem:[#allocation5 + $0x3f8] sm:$0xff]
        %v825 = vld [vmem:[#allocation5 + $0x400] sm:$0xff]
        %v826 = vld [vmem:[#allocation5 + $0x408] sm:$0xff]
        %v827 = vld [vmem:[#allocation5 + $0x410] sm:$0xff]
        %v828 = vld [vmem:[#allocation5 + $0x418] sm:$0xff]
        %v829 = vld [vmem:[#allocation5 + $0x420] sm:$0xff]
        %v830 = vld [vmem:[#allocation5 + $0x428] sm:$0xff]
        %v831 = vld [vmem:[#allocation5 + $0x430] sm:$0xff]
        %v832 = vld [vmem:[#allocation5 + $0x438] sm:$0xff]
        %v833 = vld [vmem:[#allocation5 + $0x440] sm:$0xff]
        %v834 = vld [vmem:[#allocation5 + $0x448] sm:$0xff]
        %v835 = vld [vmem:[#allocation5 + $0x450] sm:$0xff]
        %v836 = vld [vmem:[#allocation5 + $0x458] sm:$0xff]
        %v837 = vld [vmem:[#allocation5 + $0x460] sm:$0xff]
        %v838 = vld [vmem:[#allocation5 + $0x468] sm:$0xff]
        %v839 = vld [vmem:[#allocation5 + $0x470] sm:$0xff]
        %v840 = vld [vmem:[#allocation5 + $0x478] sm:$0xff]
        %v841 = vld [vmem:[#allocation5 + $0x480] sm:$0xff]
        %v842 = vld [vmem:[#allocation5 + $0x488] sm:$0xff]
        %v843 = vld [vmem:[#allocation5 + $0x490] sm:$0xff]
        %v844 = vld [vmem:[#allocation5 + $0x498] sm:$0xff]
        %v845 = vld [vmem:[#allocation5 + $0x4a0] sm:$0xff]
        %v846 = vld [vmem:[#allocation5 + $0x4a8] sm:$0xff]
        %v847 = vld [vmem:[#allocation5 + $0x4b0] sm:$0xff]
        %v848 = vld [vmem:[#allocation5 + $0x4b8] sm:$0xff]
        %v849 = vld [vmem:[#allocation5 + $0x4c0] sm:$0xff]
        %v850 = vld [vmem:[#allocation5 + $0x4c8] sm:$0xff]
        %v851 = vld [vmem:[#allocation5 + $0x4d0] sm:$0xff]
        %v852 = vld [vmem:[#allocation5 + $0x4d8] sm:$0xff]
        %v853 = vld [vmem:[#allocation5 + $0x4e0] sm:$0xff]
        %v854 = vld [vmem:[#allocation5 + $0x4e8] sm:$0xff]
        %v855 = vld [vmem:[#allocation5 + $0x4f0] sm:$0xff]
        %v856 = vld [vmem:[#allocation5 + $0x4f8] sm:$0xff]
        %v857 = vld [vmem:[#allocation5 + $0x500] sm:$0xff]
        %v858 = vld [vmem:[#allocation5 + $0x508] sm:$0xff]
        %v859 = vld [vmem:[#allocation5 + $0x510] sm:$0xff]
        %v860 = vld [vmem:[#allocation5 + $0x518] sm:$0xff]
        %v861 = vld [vmem:[#allocation5 + $0x520] sm:$0xff]
        %v862 = vld [vmem:[#allocation5 + $0x528] sm:$0xff]
        %v863 = vld [vmem:[#allocation5 + $0x530] sm:$0xff]
        %v864 = vld [vmem:[#allocation5 + $0x538] sm:$0xff]
        %v865 = vld [vmem:[#allocation5 + $0x540] sm:$0xff]
        %v866 = vld [vmem:[#allocation5 + $0x548] sm:$0xff]
        %v867 = vld [vmem:[#allocation5 + $0x550] sm:$0xff]
        %v868 = vld [vmem:[#allocation5 + $0x558] sm:$0xff]
        %v869 = vld [vmem:[#allocation5 + $0x560] sm:$0xff]
        %v870 = vld [vmem:[#allocation5 + $0x568] sm:$0xff]
        %v871 = vld [vmem:[#allocation5 + $0x570] sm:$0xff]
        %v872 = vld [vmem:[#allocation5 + $0x578] sm:$0xff]
        %v873 = vld [vmem:[#allocation5 + $0x580] sm:$0xff]
        %v874 = vld [vmem:[#allocation5 + $0x588] sm:$0xff]
        %v875 = vld [vmem:[#allocation5 + $0x590] sm:$0xff]
        %v876 = vld [vmem:[#allocation5 + $0x598] sm:$0xff]
        %v877 = vld [vmem:[#allocation5 + $0x5a0] sm:$0xff]
        %v878 = vld [vmem:[#allocation5 + $0x5a8] sm:$0xff]
        %v879 = vld [vmem:[#allocation5 + $0x5b0] sm:$0xff]
        %v880 = vld [vmem:[#allocation5 + $0x5b8] sm:$0xff]
        %v881 = vld [vmem:[#allocation5 + $0x5c0] sm:$0xff]
        %v882 = vld [vmem:[#allocation5 + $0x5c8] sm:$0xff]
        %v883 = vld [vmem:[#allocation5 + $0x5d0] sm:$0xff]
        %v884 = vld [vmem:[#allocation5 + $0x5d8] sm:$0xff]
        %v885 = vld [vmem:[#allocation5 + $0x5e0] sm:$0xff]
        %v886 = vld [vmem:[#allocation5 + $0x5e8] sm:$0xff]
        %v887 = vld [vmem:[#allocation5 + $0x5f0] sm:$0xff]
        %v888 = vld [vmem:[#allocation5 + $0x5f8] sm:$0xff]
        %v890 = vlaneseq
        %v891 = vshrl.u32 %v890, 7
        %v892 = vsub.s32 0, %v891
        %v893 = vrot.slane %v684, %v892
        %v894 = vlaneseq
        %v895 = vshrl.u32 %v894, 7
        %v896 = vsub.s32 1, %v895
        %v897 = vrot.slane %v684, %v896
        %v898 = vlaneseq
        %v899 = vshrl.u32 %v898, 7
        %v900 = vsub.s32 2, %v899
        %v901 = vrot.slane %v684, %v900
        %v902 = vlaneseq
        %v903 = vshrl.u32 %v902, 7
        %v904 = vsub.s32 3, %v903
        %v905 = vrot.slane %v684, %v904
        %v1102 = vunpack.c.l.b16 %v697
        %v1103 = vunpack.c.h.b16 %v697
        %v1104 = vunpack.c.l.b16 %v698
        %v1105 = vunpack.c.h.b16 %v698
        %v1106 = vunpack.c.l.b16 %v699
        %v1107 = vunpack.c.h.b16 %v699
        %v1108 = vunpack.c.l.b16 %v700
        %v1109 = vunpack.c.h.b16 %v700
        %v1110 = vunpack.c.l.b16 %v701
        %v1111 = vunpack.c.h.b16 %v701
        %v1112 = vunpack.c.l.b16 %v702
        %v1113 = vunpack.c.h.b16 %v702
        %v1114 = vunpack.c.l.b16 %v703
        %v1115 = vunpack.c.h.b16 %v703
        %v1116 = vunpack.c.l.b16 %v704
        %v1117 = vunpack.c.h.b16 %v704
        %v1118 = vunpack.c.l.b16 %v705
        %v1119 = vunpack.c.h.b16 %v705
        %v1120 = vunpack.c.l.b16 %v706
        %v1121 = vunpack.c.h.b16 %v706
        %v1122 = vunpack.c.l.b16 %v707
        %v1123 = vunpack.c.h.b16 %v707
        %v1124 = vunpack.c.l.b16 %v708
        %v1125 = vunpack.c.h.b16 %v708
        %v1126 = vunpack.c.l.b16 %v709
        %v1127 = vunpack.c.h.b16 %v709
        %v1128 = vunpack.c.l.b16 %v710
        %v1129 = vunpack.c.h.b16 %v710
        %v1130 = vunpack.c.l.b16 %v711
        %v1131 = vunpack.c.h.b16 %v711
        %v1132 = vunpack.c.l.b16 %v712
        %v1133 = vunpack.c.h.b16 %v712
        %v1134 = vunpack.c.l.b16 %v713
        %v1135 = vunpack.c.h.b16 %v713
        %v1136 = vunpack.c.l.b16 %v714
        %v1137 = vunpack.c.h.b16 %v714
        %v1138 = vunpack.c.l.b16 %v715
        %v1139 = vunpack.c.h.b16 %v715
        %v1140 = vunpack.c.l.b16 %v716
        %v1141 = vunpack.c.h.b16 %v716
        %v1142 = vunpack.c.l.b16 %v717
        %v1143 = vunpack.c.h.b16 %v717
        %v1144 = vunpack.c.l.b16 %v718
        %v1145 = vunpack.c.h.b16 %v718
        %v1146 = vunpack.c.l.b16 %v719
        %v1147 = vunpack.c.h.b16 %v719
        %v1148 = vunpack.c.l.b16 %v720
        %v1149 = vunpack.c.h.b16 %v720
        %v1150 = vunpack.c.l.b16 %v721
        %v1151 = vunpack.c.h.b16 %v721
        %v1152 = vunpack.c.l.b16 %v722
        %v1153 = vunpack.c.h.b16 %v722
        %v1154 = vunpack.c.l.b16 %v723
        %v1155 = vunpack.c.h.b16 %v723
        %v1156 = vunpack.c.l.b16 %v724
        %v1157 = vunpack.c.h.b16 %v724
        %v1158 = vunpack.c.l.b16 %v725
        %v1159 = vunpack.c.h.b16 %v725
        %v1160 = vunpack.c.l.b16 %v726
        %v1161 = vunpack.c.h.b16 %v726
        %v1162 = vunpack.c.l.b16 %v727
        %v1163 = vunpack.c.h.b16 %v727
        %v1164 = vunpack.c.l.b16 %v728
        %v1165 = vunpack.c.h.b16 %v728
        %v1166 = vunpack.c.l.b16 %v729
        %v1167 = vunpack.c.h.b16 %v729
        %v1168 = vunpack.c.l.b16 %v730
        %v1169 = vunpack.c.h.b16 %v730
        %v1170 = vunpack.c.l.b16 %v731
        %v1171 = vunpack.c.h.b16 %v731
        %v1172 = vunpack.c.l.b16 %v732
        %v1173 = vunpack.c.h.b16 %v732
        %v1174 = vunpack.c.l.b16 %v733
        %v1175 = vunpack.c.h.b16 %v733
        %v1176 = vunpack.c.l.b16 %v734
        %v1177 = vunpack.c.h.b16 %v734
        %v1178 = vunpack.c.l.b16 %v735
        %v1179 = vunpack.c.h.b16 %v735
        %v1180 = vunpack.c.l.b16 %v736
        %v1181 = vunpack.c.h.b16 %v736
        %v1182 = vunpack.c.l.b16 %v737
        %v1183 = vunpack.c.h.b16 %v737
        %v1184 = vunpack.c.l.b16 %v738
        %v1185 = vunpack.c.h.b16 %v738
        %v1186 = vunpack.c.l.b16 %v739
        %v1187 = vunpack.c.h.b16 %v739
        %v1188 = vunpack.c.l.b16 %v740
        %v1189 = vunpack.c.h.b16 %v740
        %v1190 = vunpack.c.l.b16 %v741
        %v1191 = vunpack.c.h.b16 %v741
        %v1192 = vunpack.c.l.b16 %v742
        %v1193 = vunpack.c.h.b16 %v742
        %v1194 = vunpack.c.l.b16 %v743
        %v1195 = vunpack.c.h.b16 %v743
        %v1196 = vunpack.c.l.b16 %v744
        %v1197 = vunpack.c.h.b16 %v744
        %v1198 = vunpack.c.l.b16 %v745
        %v1199 = vunpack.c.h.b16 %v745
        %v1200 = vunpack.c.l.b16 %v746
        %v1201 = vunpack.c.h.b16 %v746
        %v1202 = vunpack.c.l.b16 %v747
        %v1203 = vunpack.c.h.b16 %v747
        %v1204 = vunpack.c.l.b16 %v748
        %v1205 = vunpack.c.h.b16 %v748
        %v1206 = vunpack.c.l.b16 %v749
        %v1207 = vunpack.c.h.b16 %v749
        %v1208 = vunpack.c.l.b16 %v750
        %v1209 = vunpack.c.h.b16 %v750
        %v1210 = vunpack.c.l.b16 %v751
        %v1211 = vunpack.c.h.b16 %v751
        %v1212 = vunpack.c.l.b16 %v752
        %v1213 = vunpack.c.h.b16 %v752
        %v1214 = vunpack.c.l.b16 %v753
        %v1215 = vunpack.c.h.b16 %v753
        %v1216 = vunpack.c.l.b16 %v754
        %v1217 = vunpack.c.h.b16 %v754
        %v1218 = vunpack.c.l.b16 %v755
        %v1219 = vunpack.c.h.b16 %v755
        %v1220 = vunpack.c.l.b16 %v756
        %v1221 = vunpack.c.h.b16 %v756
        %v1222 = vunpack.c.l.b16 %v757
        %v1223 = vunpack.c.h.b16 %v757
        %v1224 = vunpack.c.l.b16 %v758
        %v1225 = vunpack.c.h.b16 %v758
        %v1226 = vunpack.c.l.b16 %v759
        %v1227 = vunpack.c.h.b16 %v759
        %v1228 = vunpack.c.l.b16 %v760
        %v1229 = vunpack.c.h.b16 %v760
        %v1230 = vunpack.c.l.b16 %v761
        %v1231 = vunpack.c.h.b16 %v761
        %v1232 = vunpack.c.l.b16 %v762
        %v1233 = vunpack.c.h.b16 %v762
        %v1234 = vunpack.c.l.b16 %v763
        %v1235 = vunpack.c.h.b16 %v763
        %v1236 = vunpack.c.l.b16 %v764
        %v1237 = vunpack.c.h.b16 %v764
        %v1238 = vunpack.c.l.b16 %v765
        %v1239 = vunpack.c.h.b16 %v765
        %v1240 = vunpack.c.l.b16 %v766
        %v1241 = vunpack.c.h.b16 %v766
        %v1242 = vunpack.c.l.b16 %v767
        %v1243 = vunpack.c.h.b16 %v767
        %v1244 = vunpack.c.l.b16 %v768
        %v1245 = vunpack.c.h.b16 %v768
        %v1246 = vunpack.c.l.b16 %v769
        %v1247 = vunpack.c.h.b16 %v769
        %v1248 = vunpack.c.l.b16 %v770
        %v1249 = vunpack.c.h.b16 %v770
        %v1250 = vunpack.c.l.b16 %v771
        %v1251 = vunpack.c.h.b16 %v771
        %v1252 = vunpack.c.l.b16 %v772
        %v1253 = vunpack.c.h.b16 %v772
        %v1254 = vunpack.c.l.b16 %v773
        %v1255 = vunpack.c.h.b16 %v773
        %v1256 = vunpack.c.l.b16 %v774
        %v1257 = vunpack.c.h.b16 %v774
        %v1258 = vunpack.c.l.b16 %v775
        %v1259 = vunpack.c.h.b16 %v775
        %v1260 = vunpack.c.l.b16 %v776
        %v1261 = vunpack.c.h.b16 %v776
        %v1262 = vunpack.c.l.b16 %v777
        %v1263 = vunpack.c.h.b16 %v777
        %v1264 = vunpack.c.l.b16 %v778
        %v1265 = vunpack.c.h.b16 %v778
        %v1266 = vunpack.c.l.b16 %v779
        %v1267 = vunpack.c.h.b16 %v779
        %v1268 = vunpack.c.l.b16 %v780
        %v1269 = vunpack.c.h.b16 %v780
        %v1270 = vunpack.c.l.b16 %v781
        %v1271 = vunpack.c.h.b16 %v781
        %v1272 = vunpack.c.l.b16 %v782
        %v1273 = vunpack.c.h.b16 %v782
        %v1274 = vunpack.c.l.b16 %v783
        %v1275 = vunpack.c.h.b16 %v783
        %v1276 = vunpack.c.l.b16 %v784
        %v1277 = vunpack.c.h.b16 %v784
        %v1278 = vunpack.c.l.b16 %v785
        %v1279 = vunpack.c.h.b16 %v785
        %v1280 = vunpack.c.l.b16 %v786
        %v1281 = vunpack.c.h.b16 %v786
        %v1282 = vunpack.c.l.b16 %v787
        %v1283 = vunpack.c.h.b16 %v787
        %v1284 = vunpack.c.l.b16 %v788
        %v1285 = vunpack.c.h.b16 %v788
        %v1286 = vunpack.c.l.b16 %v789
        %v1287 = vunpack.c.h.b16 %v789
        %v1288 = vunpack.c.l.b16 %v790
        %v1289 = vunpack.c.h.b16 %v790
        %v1290 = vunpack.c.l.b16 %v791
        %v1291 = vunpack.c.h.b16 %v791
        %v1292 = vunpack.c.l.b16 %v792
        %v1293 = vunpack.c.h.b16 %v792
        %v1294 = vunpack.c.l.b16 %v793
        %v1295 = vunpack.c.h.b16 %v793
        %v1296 = vunpack.c.l.b16 %v794
        %v1297 = vunpack.c.h.b16 %v794
        %v1298 = vunpack.c.l.b16 %v795
        %v1299 = vunpack.c.h.b16 %v795
        %v1300 = vunpack.c.l.b16 %v796
        %v1301 = vunpack.c.h.b16 %v796
        %v1302 = vunpack.c.l.b16 %v797
        %v1303 = vunpack.c.h.b16 %v797
        %v1304 = vunpack.c.l.b16 %v798
        %v1305 = vunpack.c.h.b16 %v798
        %v1306 = vunpack.c.l.b16 %v799
        %v1307 = vunpack.c.h.b16 %v799
        %v1308 = vunpack.c.l.b16 %v800
        %v1309 = vunpack.c.h.b16 %v800
        %v1310 = vunpack.c.l.b16 %v801
        %v1311 = vunpack.c.h.b16 %v801
        %v1312 = vunpack.c.l.b16 %v802
        %v1313 = vunpack.c.h.b16 %v802
        %v1314 = vunpack.c.l.b16 %v803
        %v1315 = vunpack.c.h.b16 %v803
        %v1316 = vunpack.c.l.b16 %v804
        %v1317 = vunpack.c.h.b16 %v804
        %v1318 = vunpack.c.l.b16 %v805
        %v1319 = vunpack.c.h.b16 %v805
        %v1320 = vunpack.c.l.b16 %v806
        %v1321 = vunpack.c.h.b16 %v806
        %v1322 = vunpack.c.l.b16 %v807
        %v1323 = vunpack.c.h.b16 %v807
        %v1324 = vunpack.c.l.b16 %v808
        %v1325 = vunpack.c.h.b16 %v808
        %v1326 = vunpack.c.l.b16 %v809
        %v1327 = vunpack.c.h.b16 %v809
        %v1328 = vunpack.c.l.b16 %v810
        %v1329 = vunpack.c.h.b16 %v810
        %v1330 = vunpack.c.l.b16 %v811
        %v1331 = vunpack.c.h.b16 %v811
        %v1332 = vunpack.c.l.b16 %v812
        %v1333 = vunpack.c.h.b16 %v812
        %v1334 = vunpack.c.l.b16 %v813
        %v1335 = vunpack.c.h.b16 %v813
        %v1336 = vunpack.c.l.b16 %v814
        %v1337 = vunpack.c.h.b16 %v814
        %v1338 = vunpack.c.l.b16 %v815
        %v1339 = vunpack.c.h.b16 %v815
        %v1340 = vunpack.c.l.b16 %v816
        %v1341 = vunpack.c.h.b16 %v816
        %v1342 = vunpack.c.l.b16 %v817
        %v1343 = vunpack.c.h.b16 %v817
        %v1344 = vunpack.c.l.b16 %v818
        %v1345 = vunpack.c.h.b16 %v818
        %v1346 = vunpack.c.l.b16 %v819
        %v1347 = vunpack.c.h.b16 %v819
        %v1348 = vunpack.c.l.b16 %v820
        %v1349 = vunpack.c.h.b16 %v820
        %v1350 = vunpack.c.l.b16 %v821
        %v1351 = vunpack.c.h.b16 %v821
        %v1352 = vunpack.c.l.b16 %v822
        %v1353 = vunpack.c.h.b16 %v822
        %v1354 = vunpack.c.l.b16 %v823
        %v1355 = vunpack.c.h.b16 %v823
        %v1356 = vunpack.c.l.b16 %v824
        %v1357 = vunpack.c.h.b16 %v824
        %v1358 = vunpack.c.l.b16 %v825
        %v1359 = vunpack.c.h.b16 %v825
        %v1360 = vunpack.c.l.b16 %v826
        %v1361 = vunpack.c.h.b16 %v826
        %v1362 = vunpack.c.l.b16 %v827
        %v1363 = vunpack.c.h.b16 %v827
        %v1364 = vunpack.c.l.b16 %v828
        %v1365 = vunpack.c.h.b16 %v828
        %v1366 = vunpack.c.l.b16 %v829
        %v1367 = vunpack.c.h.b16 %v829
        %v1368 = vunpack.c.l.b16 %v830
        %v1369 = vunpack.c.h.b16 %v830
        %v1370 = vunpack.c.l.b16 %v831
        %v1371 = vunpack.c.h.b16 %v831
        %v1372 = vunpack.c.l.b16 %v832
        %v1373 = vunpack.c.h.b16 %v832
        %v1374 = vunpack.c.l.b16 %v833
        %v1375 = vunpack.c.h.b16 %v833
        %v1376 = vunpack.c.l.b16 %v834
        %v1377 = vunpack.c.h.b16 %v834
        %v1378 = vunpack.c.l.b16 %v835
        %v1379 = vunpack.c.h.b16 %v835
        %v1380 = vunpack.c.l.b16 %v836
        %v1381 = vunpack.c.h.b16 %v836
        %v1382 = vunpack.c.l.b16 %v837
        %v1383 = vunpack.c.h.b16 %v837
        %v1384 = vunpack.c.l.b16 %v838
        %v1385 = vunpack.c.h.b16 %v838
        %v1386 = vunpack.c.l.b16 %v839
        %v1387 = vunpack.c.h.b16 %v839
        %v1388 = vunpack.c.l.b16 %v840
        %v1389 = vunpack.c.h.b16 %v840
        %v1390 = vunpack.c.l.b16 %v841
        %v1391 = vunpack.c.h.b16 %v841
        %v1392 = vunpack.c.l.b16 %v842
        %v1393 = vunpack.c.h.b16 %v842
        %v1394 = vunpack.c.l.b16 %v843
        %v1395 = vunpack.c.h.b16 %v843
        %v1396 = vunpack.c.l.b16 %v844
        %v1397 = vunpack.c.h.b16 %v844
        %v1398 = vunpack.c.l.b16 %v845
        %v1399 = vunpack.c.h.b16 %v845
        %v1400 = vunpack.c.l.b16 %v846
        %v1401 = vunpack.c.h.b16 %v846
        %v1402 = vunpack.c.l.b16 %v847
        %v1403 = vunpack.c.h.b16 %v847
        %v1404 = vunpack.c.l.b16 %v848
        %v1405 = vunpack.c.h.b16 %v848
        %v1406 = vunpack.c.l.b16 %v849
        %v1407 = vunpack.c.h.b16 %v849
        %v1408 = vunpack.c.l.b16 %v850
        %v1409 = vunpack.c.h.b16 %v850
        %v1410 = vunpack.c.l.b16 %v851
        %v1411 = vunpack.c.h.b16 %v851
        %v1412 = vunpack.c.l.b16 %v852
        %v1413 = vunpack.c.h.b16 %v852
        %v1414 = vunpack.c.l.b16 %v853
        %v1415 = vunpack.c.h.b16 %v853
        %v1416 = vunpack.c.l.b16 %v854
        %v1417 = vunpack.c.h.b16 %v854
        %v1418 = vunpack.c.l.b16 %v855
        %v1419 = vunpack.c.h.b16 %v855
        %v1420 = vunpack.c.l.b16 %v856
        %v1421 = vunpack.c.h.b16 %v856
        %v1422 = vunpack.c.l.b16 %v857
        %v1423 = vunpack.c.h.b16 %v857
        %v1424 = vunpack.c.l.b16 %v858
        %v1425 = vunpack.c.h.b16 %v858
        %v1426 = vunpack.c.l.b16 %v859
        %v1427 = vunpack.c.h.b16 %v859
        %v1428 = vunpack.c.l.b16 %v860
        %v1429 = vunpack.c.h.b16 %v860
        %v1430 = vunpack.c.l.b16 %v861
        %v1431 = vunpack.c.h.b16 %v861
        %v1432 = vunpack.c.l.b16 %v862
        %v1433 = vunpack.c.h.b16 %v862
        %v1434 = vunpack.c.l.b16 %v863
        %v1435 = vunpack.c.h.b16 %v863
        %v1436 = vunpack.c.l.b16 %v864
        %v1437 = vunpack.c.h.b16 %v864
        %v1438 = vunpack.c.l.b16 %v865
        %v1439 = vunpack.c.h.b16 %v865
        %v1440 = vunpack.c.l.b16 %v866
        %v1441 = vunpack.c.h.b16 %v866
        %v1442 = vunpack.c.l.b16 %v867
        %v1443 = vunpack.c.h.b16 %v867
        %v1444 = vunpack.c.l.b16 %v868
        %v1445 = vunpack.c.h.b16 %v868
        %v1446 = vunpack.c.l.b16 %v869
        %v1447 = vunpack.c.h.b16 %v869
        %v1448 = vunpack.c.l.b16 %v870
        %v1449 = vunpack.c.h.b16 %v870
        %v1450 = vunpack.c.l.b16 %v871
        %v1451 = vunpack.c.h.b16 %v871
        %v1452 = vunpack.c.l.b16 %v872
        %v1453 = vunpack.c.h.b16 %v872
        %v1454 = vunpack.c.l.b16 %v873
        %v1455 = vunpack.c.h.b16 %v873
        %v1456 = vunpack.c.l.b16 %v874
        %v1457 = vunpack.c.h.b16 %v874
        %v1458 = vunpack.c.l.b16 %v875
        %v1459 = vunpack.c.h.b16 %v875
        %v1460 = vunpack.c.l.b16 %v876
        %v1461 = vunpack.c.h.b16 %v876
        %v1462 = vunpack.c.l.b16 %v877
        %v1463 = vunpack.c.h.b16 %v877
        %v1464 = vunpack.c.l.b16 %v878
        %v1465 = vunpack.c.h.b16 %v878
        %v1466 = vunpack.c.l.b16 %v879
        %v1467 = vunpack.c.h.b16 %v879
        %v1468 = vunpack.c.l.b16 %v880
        %v1469 = vunpack.c.h.b16 %v880
        %v1470 = vunpack.c.l.b16 %v881
        %v1471 = vunpack.c.h.b16 %v881
        %v1472 = vunpack.c.l.b16 %v882
        %v1473 = vunpack.c.h.b16 %v882
        %v1474 = vunpack.c.l.b16 %v883
        %v1475 = vunpack.c.h.b16 %v883
        %v1476 = vunpack.c.l.b16 %v884
        %v1477 = vunpack.c.h.b16 %v884
        %v1478 = vunpack.c.l.b16 %v885
        %v1479 = vunpack.c.h.b16 %v885
        %v1480 = vunpack.c.l.b16 %v886
        %v1481 = vunpack.c.h.b16 %v886
        %v1482 = vunpack.c.l.b16 %v887
        %v1483 = vunpack.c.h.b16 %v887
        %v1484 = vunpack.c.l.b16 %v888
        %v1485 = vunpack.c.h.b16 %v888
        %v1486 = vpack.c.b16 %v1106, %v1102
        %v1487 = vpack.c.b16 %v1107, %v1103
        %v1488 = vpack.c.b16 %v1108, %v1104
        %v1489 = vpack.c.b16 %v1109, %v1105
        %v1490 = vpack.c.b16 %v1114, %v1110
        %v1491 = vpack.c.b16 %v1115, %v1111
        %v1492 = vpack.c.b16 %v1116, %v1112
        %v1493 = vpack.c.b16 %v1117, %v1113
        %v1494 = vpack.c.b16 %v1122, %v1118
        %v1495 = vpack.c.b16 %v1123, %v1119
        %v1496 = vpack.c.b16 %v1124, %v1120
        %v1497 = vpack.c.b16 %v1125, %v1121
        %v1498 = vpack.c.b16 %v1130, %v1126
        %v1499 = vpack.c.b16 %v1131, %v1127
        %v1500 = vpack.c.b16 %v1132, %v1128
        %v1501 = vpack.c.b16 %v1133, %v1129
        %v1502 = vpack.c.b16 %v1138, %v1134
        %v1503 = vpack.c.b16 %v1139, %v1135
        %v1504 = vpack.c.b16 %v1140, %v1136
        %v1505 = vpack.c.b16 %v1141, %v1137
        %v1506 = vpack.c.b16 %v1146, %v1142
        %v1507 = vpack.c.b16 %v1147, %v1143
        %v1508 = vpack.c.b16 %v1148, %v1144
        %v1509 = vpack.c.b16 %v1149, %v1145
        %v1510 = vpack.c.b16 %v1154, %v1150
        %v1511 = vpack.c.b16 %v1155, %v1151
        %v1512 = vpack.c.b16 %v1156, %v1152
        %v1513 = vpack.c.b16 %v1157, %v1153
        %v1514 = vpack.c.b16 %v1162, %v1158
        %v1515 = vpack.c.b16 %v1163, %v1159
        %v1516 = vpack.c.b16 %v1164, %v1160
        %v1517 = vpack.c.b16 %v1165, %v1161
        %v1518 = vpack.c.b16 %v1170, %v1166
        %v1519 = vpack.c.b16 %v1171, %v1167
        %v1520 = vpack.c.b16 %v1172, %v1168
        %v1521 = vpack.c.b16 %v1173, %v1169
        %v1522 = vpack.c.b16 %v1178, %v1174
        %v1523 = vpack.c.b16 %v1179, %v1175
        %v1524 = vpack.c.b16 %v1180, %v1176
        %v1525 = vpack.c.b16 %v1181, %v1177
        %v1526 = vpack.c.b16 %v1186, %v1182
        %v1527 = vpack.c.b16 %v1187, %v1183
        %v1528 = vpack.c.b16 %v1188, %v1184
        %v1529 = vpack.c.b16 %v1189, %v1185
        %v1530 = vpack.c.b16 %v1194, %v1190
        %v1531 = vpack.c.b16 %v1195, %v1191
        %v1532 = vpack.c.b16 %v1196, %v1192
        %v1533 = vpack.c.b16 %v1197, %v1193
        %v1534 = vpack.c.b16 %v1202, %v1198
        %v1535 = vpack.c.b16 %v1203, %v1199
        %v1536 = vpack.c.b16 %v1204, %v1200
        %v1537 = vpack.c.b16 %v1205, %v1201
        %v1538 = vpack.c.b16 %v1210, %v1206
        %v1539 = vpack.c.b16 %v1211, %v1207
        %v1540 = vpack.c.b16 %v1212, %v1208
        %v1541 = vpack.c.b16 %v1213, %v1209
        %v1542 = vpack.c.b16 %v1218, %v1214
        %v1543 = vpack.c.b16 %v1219, %v1215
        %v1544 = vpack.c.b16 %v1220, %v1216
        %v1545 = vpack.c.b16 %v1221, %v1217
        %v1546 = vpack.c.b16 %v1226, %v1222
        %v1547 = vpack.c.b16 %v1227, %v1223
        %v1548 = vpack.c.b16 %v1228, %v1224
        %v1549 = vpack.c.b16 %v1229, %v1225
        %v1550 = vpack.c.b16 %v1234, %v1230
        %v1551 = vpack.c.b16 %v1235, %v1231
        %v1552 = vpack.c.b16 %v1236, %v1232
        %v1553 = vpack.c.b16 %v1237, %v1233
        %v1554 = vpack.c.b16 %v1242, %v1238
        %v1555 = vpack.c.b16 %v1243, %v1239
        %v1556 = vpack.c.b16 %v1244, %v1240
        %v1557 = vpack.c.b16 %v1245, %v1241
        %v1558 = vpack.c.b16 %v1250, %v1246
        %v1559 = vpack.c.b16 %v1251, %v1247
        %v1560 = vpack.c.b16 %v1252, %v1248
        %v1561 = vpack.c.b16 %v1253, %v1249
        %v1562 = vpack.c.b16 %v1258, %v1254
        %v1563 = vpack.c.b16 %v1259, %v1255
        %v1564 = vpack.c.b16 %v1260, %v1256
        %v1565 = vpack.c.b16 %v1261, %v1257
        %v1566 = vpack.c.b16 %v1266, %v1262
        %v1567 = vpack.c.b16 %v1267, %v1263
        %v1568 = vpack.c.b16 %v1268, %v1264
        %v1569 = vpack.c.b16 %v1269, %v1265
        %v1570 = vpack.c.b16 %v1274, %v1270
        %v1571 = vpack.c.b16 %v1275, %v1271
        %v1572 = vpack.c.b16 %v1276, %v1272
        %v1573 = vpack.c.b16 %v1277, %v1273
        %v1574 = vpack.c.b16 %v1282, %v1278
        %v1575 = vpack.c.b16 %v1283, %v1279
        %v1576 = vpack.c.b16 %v1284, %v1280
        %v1577 = vpack.c.b16 %v1285, %v1281
        %v1578 = vpack.c.b16 %v1290, %v1286
        %v1579 = vpack.c.b16 %v1291, %v1287
        %v1580 = vpack.c.b16 %v1292, %v1288
        %v1581 = vpack.c.b16 %v1293, %v1289
        %v1582 = vpack.c.b16 %v1298, %v1294
        %v1583 = vpack.c.b16 %v1299, %v1295
        %v1584 = vpack.c.b16 %v1300, %v1296
        %v1585 = vpack.c.b16 %v1301, %v1297
        %v1586 = vpack.c.b16 %v1306, %v1302
        %v1587 = vpack.c.b16 %v1307, %v1303
        %v1588 = vpack.c.b16 %v1308, %v1304
        %v1589 = vpack.c.b16 %v1309, %v1305
        %v1590 = vpack.c.b16 %v1314, %v1310
        %v1591 = vpack.c.b16 %v1315, %v1311
        %v1592 = vpack.c.b16 %v1316, %v1312
        %v1593 = vpack.c.b16 %v1317, %v1313
        %v1594 = vpack.c.b16 %v1322, %v1318
        %v1595 = vpack.c.b16 %v1323, %v1319
        %v1596 = vpack.c.b16 %v1324, %v1320
        %v1597 = vpack.c.b16 %v1325, %v1321
        %v1598 = vpack.c.b16 %v1330, %v1326
        %v1599 = vpack.c.b16 %v1331, %v1327
        %v1600 = vpack.c.b16 %v1332, %v1328
        %v1601 = vpack.c.b16 %v1333, %v1329
        %v1602 = vpack.c.b16 %v1338, %v1334
        %v1603 = vpack.c.b16 %v1339, %v1335
        %v1604 = vpack.c.b16 %v1340, %v1336
        %v1605 = vpack.c.b16 %v1341, %v1337
        %v1606 = vpack.c.b16 %v1346, %v1342
        %v1607 = vpack.c.b16 %v1347, %v1343
        %v1608 = vpack.c.b16 %v1348, %v1344
        %v1609 = vpack.c.b16 %v1349, %v1345
        %v1610 = vpack.c.b16 %v1354, %v1350
        %v1611 = vpack.c.b16 %v1355, %v1351
        %v1612 = vpack.c.b16 %v1356, %v1352
        %v1613 = vpack.c.b16 %v1357, %v1353
        %v1614 = vpack.c.b16 %v1362, %v1358
        %v1615 = vpack.c.b16 %v1363, %v1359
        %v1616 = vpack.c.b16 %v1364, %v1360
        %v1617 = vpack.c.b16 %v1365, %v1361
        %v1618 = vpack.c.b16 %v1370, %v1366
        %v1619 = vpack.c.b16 %v1371, %v1367
        %v1620 = vpack.c.b16 %v1372, %v1368
        %v1621 = vpack.c.b16 %v1373, %v1369
        %v1622 = vpack.c.b16 %v1378, %v1374
        %v1623 = vpack.c.b16 %v1379, %v1375
        %v1624 = vpack.c.b16 %v1380, %v1376
        %v1625 = vpack.c.b16 %v1381, %v1377
        %v1626 = vpack.c.b16 %v1386, %v1382
        %v1627 = vpack.c.b16 %v1387, %v1383
        %v1628 = vpack.c.b16 %v1388, %v1384
        %v1629 = vpack.c.b16 %v1389, %v1385
        %v1630 = vpack.c.b16 %v1394, %v1390
        %v1631 = vpack.c.b16 %v1395, %v1391
        %v1632 = vpack.c.b16 %v1396, %v1392
        %v1633 = vpack.c.b16 %v1397, %v1393
        %v1634 = vpack.c.b16 %v1402, %v1398
        %v1635 = vpack.c.b16 %v1403, %v1399
        %v1636 = vpack.c.b16 %v1404, %v1400
        %v1637 = vpack.c.b16 %v1405, %v1401
        %v1638 = vpack.c.b16 %v1410, %v1406
        %v1639 = vpack.c.b16 %v1411, %v1407
        %v1640 = vpack.c.b16 %v1412, %v1408
        %v1641 = vpack.c.b16 %v1413, %v1409
        %v1642 = vpack.c.b16 %v1418, %v1414
        %v1643 = vpack.c.b16 %v1419, %v1415
        %v1644 = vpack.c.b16 %v1420, %v1416
        %v1645 = vpack.c.b16 %v1421, %v1417
        %v1646 = vpack.c.b16 %v1426, %v1422
        %v1647 = vpack.c.b16 %v1427, %v1423
        %v1648 = vpack.c.b16 %v1428, %v1424
        %v1649 = vpack.c.b16 %v1429, %v1425
        %v1650 = vpack.c.b16 %v1434, %v1430
        %v1651 = vpack.c.b16 %v1435, %v1431
        %v1652 = vpack.c.b16 %v1436, %v1432
        %v1653 = vpack.c.b16 %v1437, %v1433
        %v1654 = vpack.c.b16 %v1442, %v1438
        %v1655 = vpack.c.b16 %v1443, %v1439
        %v1656 = vpack.c.b16 %v1444, %v1440
        %v1657 = vpack.c.b16 %v1445, %v1441
        %v1658 = vpack.c.b16 %v1450, %v1446
        %v1659 = vpack.c.b16 %v1451, %v1447
        %v1660 = vpack.c.b16 %v1452, %v1448
        %v1661 = vpack.c.b16 %v1453, %v1449
        %v1662 = vpack.c.b16 %v1458, %v1454
        %v1663 = vpack.c.b16 %v1459, %v1455
        %v1664 = vpack.c.b16 %v1460, %v1456
        %v1665 = vpack.c.b16 %v1461, %v1457
        %v1666 = vpack.c.b16 %v1466, %v1462
        %v1667 = vpack.c.b16 %v1467, %v1463
        %v1668 = vpack.c.b16 %v1468, %v1464
        %v1669 = vpack.c.b16 %v1469, %v1465
        %v1670 = vpack.c.b16 %v1474, %v1470
        %v1671 = vpack.c.b16 %v1475, %v1471
        %v1672 = vpack.c.b16 %v1476, %v1472
        %v1673 = vpack.c.b16 %v1477, %v1473
        %v1674 = vpack.c.b16 %v1482, %v1478
        %v1675 = vpack.c.b16 %v1483, %v1479
        %v1676 = vpack.c.b16 %v1484, %v1480
        %v1677 = vpack.c.b16 %v1485, %v1481
        %1870 = vmatprep.subr.bf16.mxu0 %v1515
        %1871 = vmatpush1.bf16.msra.mxu0 %v1514
        %1872 = vmatprep.subr.bf16.mxu0 %v1511
        %1873 = vmatpush1.bf16.msra.mxu0 %v1510
        %1874 = vmatprep.subr.bf16.mxu0 %v1507
        %1875 = vmatpush1.bf16.msra.mxu0 %v1506
        %1876 = vmatprep.subr.bf16.mxu0 %v1503
        %1877 = vmatpush1.bf16.msra.mxu0 %v1502
        %1878 = vmatprep.subr.bf16.mxu0 %v1499
        %1879 = vmatpush1.bf16.msra.mxu0 %v1498
        %1880 = vmatprep.subr.bf16.mxu0 %v1495
        %1881 = vmatpush1.bf16.msra.mxu0 %v1494
        %1882 = vmatprep.subr.bf16.mxu0 %v1491
        %1883 = vmatpush1.bf16.msra.mxu0 %v1490
        %1884 = vmatprep.subr.bf16.mxu0 %v1487
        %1885 = vmatpush1.bf16.msra.mxu0 %v1486
        %1886 = vmatprep.subr.bf16.mxu0 %v1547
        %1887 = vmatpush2.bf16.msra.mxu0 %v1546
        %1888 = vmatprep.subr.bf16.mxu0 %v1543
        %1889 = vmatpush2.bf16.msra.mxu0 %v1542
        %1890 = vmatprep.subr.bf16.mxu0 %v1539
        %1891 = vmatpush2.bf16.msra.mxu0 %v1538
        %1892 = vmatprep.subr.bf16.mxu0 %v1535
        %1893 = vmatpush2.bf16.msra.mxu0 %v1534
        %1894 = vmatprep.subr.bf16.mxu0 %v1531
        %1895 = vmatpush2.bf16.msra.mxu0 %v1530
        %1896 = vmatprep.subr.bf16.mxu0 %v1527
        %1897 = vmatpush2.bf16.msra.mxu0 %v1526
        %1898 = vmatprep.subr.bf16.mxu0 %v1523
        %1899 = vmatpush2.bf16.msra.mxu0 %v1522
        %1900 = vmatprep.subr.bf16.mxu0 %v1519
        %1901 = vmatpush2.bf16.msra.mxu0 %v1518
        %1902 = vmatprep.mubr.bf16.mxu0 %v686
        %1903 = vmatmul.mubr.bf16.gmra.mxu0 %v685
        %v1904 = vpop.f32.mrf.mxu0
        %v1905 = vadd.f32 %v893, %v1904
        %v1906 = vpop.f32.mrf.mxu0
        %v1907 = vadd.f32 %v897, %v1906
        %v1908 = vpop.f32.mrf.mxu0
        %v1909 = vadd.f32 %v893, %v1908
        %v1910 = vpop.f32.mrf.mxu0
        %v1911 = vadd.f32 %v897, %v1910
        %1912 = vmatprep.mubr.bf16.mxu0 %v692
        %1913 = vmatmul.mubr.bf16.gmra.mxu0 %v691
        %v1914 = vpop.f32.mrf.mxu0
        %v1915 = vadd.f32 %v893, %v1914
        %v1916 = vpop.f32.mrf.mxu0
        %v1917 = vadd.f32 %v897, %v1916
        %v1918 = vpop.f32.mrf.mxu0
        %v1919 = vadd.f32 %v893, %v1918
        %v1920 = vpop.f32.mrf.mxu0
        %v1921 = vadd.f32 %v897, %v1920
        %1922 = vdwg.mxu0
        %1923 = vmatprep.subr.bf16.mxu0 %v1579
        %1924 = vmatpush1.bf16.msra.mxu0 %v1578
        %1925 = vmatprep.subr.bf16.mxu0 %v1575
        %1926 = vmatpush1.bf16.msra.mxu0 %v1574
        %1927 = vmatprep.subr.bf16.mxu0 %v1571
        %1928 = vmatpush1.bf16.msra.mxu0 %v1570
        %1929 = vmatprep.subr.bf16.mxu0 %v1567
        %1930 = vmatpush1.bf16.msra.mxu0 %v1566
        %1931 = vmatprep.subr.bf16.mxu0 %v1563
        %1932 = vmatpush1.bf16.msra.mxu0 %v1562
        %1933 = vmatprep.subr.bf16.mxu0 %v1559
        %1934 = vmatpush1.bf16.msra.mxu0 %v1558
        %1935 = vmatprep.subr.bf16.mxu0 %v1555
        %1936 = vmatpush1.bf16.msra.mxu0 %v1554
        %1937 = vmatprep.subr.bf16.mxu0 %v1551
        %1938 = vmatpush1.bf16.msra.mxu0 %v1550
        %1939 = vmatprep.subr.bf16.mxu0 %v1611
        %1940 = vmatpush2.bf16.msra.mxu0 %v1610
        %1941 = vmatprep.subr.bf16.mxu0 %v1607
        %1942 = vmatpush2.bf16.msra.mxu0 %v1606
        %1943 = vmatprep.subr.bf16.mxu0 %v1603
        %1944 = vmatpush2.bf16.msra.mxu0 %v1602
        %1945 = vmatprep.subr.bf16.mxu0 %v1599
        %1946 = vmatpush2.bf16.msra.mxu0 %v1598
        %1947 = vmatprep.subr.bf16.mxu0 %v1595
        %1948 = vmatpush2.bf16.msra.mxu0 %v1594
        %1949 = vmatprep.subr.bf16.mxu0 %v1591
        %1950 = vmatpush2.bf16.msra.mxu0 %v1590
        %1951 = vmatprep.subr.bf16.mxu0 %v1587
        %1952 = vmatpush2.bf16.msra.mxu0 %v1586
        %1953 = vmatprep.subr.bf16.mxu0 %v1583
        %1954 = vmatpush2.bf16.msra.mxu0 %v1582
        %1955 = vmatprep.mubr.bf16.mxu0 %v688
        %1956 = vmatmul.mubr.bf16.gmra.mxu0 %v687
        %v1957 = vpop.f32.mrf.mxu0
        %v1958 = vadd.f32 %v1905, %v1957
        %v1959 = vpop.f32.mrf.mxu0
        %v1960 = vadd.f32 %v1907, %v1959
        %v1961 = vpop.f32.mrf.mxu0
        %v1962 = vadd.f32 %v1909, %v1961
        %v1963 = vpop.f32.mrf.mxu0
        %v1964 = vadd.f32 %v1911, %v1963
        %1965 = vmatprep.mubr.bf16.mxu0 %v694
        %1966 = vmatmul.mubr.bf16.gmra.mxu0 %v693
        %v1967 = vpop.f32.mrf.mxu0
        %v1968 = vadd.f32 %v1915, %v1967
        %v1969 = vpop.f32.mrf.mxu0
        %v1970 = vadd.f32 %v1917, %v1969
        %v1971 = vpop.f32.mrf.mxu0
        %v1972 = vadd.f32 %v1919, %v1971
        %v1973 = vpop.f32.mrf.mxu0
        %v1974 = vadd.f32 %v1921, %v1973
        %1975 = vdwg.mxu0
        %1976 = vmatprep.subr.bf16.mxu0 %v1643
        %1977 = vmatpush1.bf16.msra.mxu0 %v1642
        %1978 = vmatprep.subr.bf16.mxu0 %v1639
        %1979 = vmatpush1.bf16.msra.mxu0 %v1638
        %1980 = vmatprep.subr.bf16.mxu0 %v1635
        %1981 = vmatpush1.bf16.msra.mxu0 %v1634
        %1982 = vmatprep.subr.bf16.mxu0 %v1631
        %1983 = vmatpush1.bf16.msra.mxu0 %v1630
        %1984 = vmatprep.subr.bf16.mxu0 %v1627
        %1985 = vmatpush1.bf16.msra.mxu0 %v1626
        %1986 = vmatprep.subr.bf16.mxu0 %v1623
        %1987 = vmatpush1.bf16.msra.mxu0 %v1622
        %1988 = vmatprep.subr.bf16.mxu0 %v1619
        %1989 = vmatpush1.bf16.msra.mxu0 %v1618
        %1990 = vmatprep.subr.bf16.mxu0 %v1615
        %1991 = vmatpush1.bf16.msra.mxu0 %v1614
        %1992 = vmatprep.subr.bf16.mxu0 %v1675
        %1993 = vmatpush2.bf16.msra.mxu0 %v1674
        %1994 = vmatprep.subr.bf16.mxu0 %v1671
        %1995 = vmatpush2.bf16.msra.mxu0 %v1670
        %1996 = vmatprep.subr.bf16.mxu0 %v1667
        %1997 = vmatpush2.bf16.msra.mxu0 %v1666
        %1998 = vmatprep.subr.bf16.mxu0 %v1663
        %1999 = vmatpush2.bf16.msra.mxu0 %v1662
        %2000 = vmatprep.subr.bf16.mxu0 %v1659
        %2001 = vmatpush2.bf16.msra.mxu0 %v1658
        %2002 = vmatprep.subr.bf16.mxu0 %v1655
        %2003 = vmatpush2.bf16.msra.mxu0 %v1654
        %2004 = vmatprep.subr.bf16.mxu0 %v1651
        %2005 = vmatpush2.bf16.msra.mxu0 %v1650
        %2006 = vmatprep.subr.bf16.mxu0 %v1647
        %2007 = vmatpush2.bf16.msra.mxu0 %v1646
        %2008 = vmatprep.mubr.bf16.mxu0 %v690
        %2009 = vmatmul.mubr.bf16.gmra.mxu0 %v689
        %v2010 = vpop.f32.mrf.mxu0
        %v2011 = vadd.f32 %v1958, %v2010
        %v2012 = vpop.f32.mrf.mxu0
        %v2013 = vadd.f32 %v1960, %v2012
        %v2014 = vpop.f32.mrf.mxu0
        %v2015 = vadd.f32 %v1962, %v2014
        %v2016 = vpop.f32.mrf.mxu0
        %v2017 = vadd.f32 %v1964, %v2016
        %2018 = vmatprep.mubr.bf16.mxu0 %v696
        %2019 = vmatmul.mubr.bf16.gmra.mxu0 %v695
        %v2020 = vpop.f32.mrf.mxu0
        %v2021 = vadd.f32 %v1968, %v2020
        %v2022 = vpop.f32.mrf.mxu0
        %v2023 = vadd.f32 %v1970, %v2022
        %v2024 = vpop.f32.mrf.mxu0
        %v2025 = vadd.f32 %v1972, %v2024
        %v2026 = vpop.f32.mrf.mxu0
        %v2027 = vadd.f32 %v1974, %v2026
        %2028 = vdwg.mxu0
        %2029 = vmatprep.subr.bf16.mxu0 %v1517
        %2030 = vmatpush1.bf16.msra.mxu0 %v1516
        %2031 = vmatprep.subr.bf16.mxu0 %v1513
        %2032 = vmatpush1.bf16.msra.mxu0 %v1512
        %2033 = vmatprep.subr.bf16.mxu0 %v1509
        %2034 = vmatpush1.bf16.msra.mxu0 %v1508
        %2035 = vmatprep.subr.bf16.mxu0 %v1505
        %2036 = vmatpush1.bf16.msra.mxu0 %v1504
        %2037 = vmatprep.subr.bf16.mxu0 %v1501
        %2038 = vmatpush1.bf16.msra.mxu0 %v1500
        %2039 = vmatprep.subr.bf16.mxu0 %v1497
        %2040 = vmatpush1.bf16.msra.mxu0 %v1496
        %2041 = vmatprep.subr.bf16.mxu0 %v1493
        %2042 = vmatpush1.bf16.msra.mxu0 %v1492
        %2043 = vmatprep.subr.bf16.mxu0 %v1489
        %2044 = vmatpush1.bf16.msra.mxu0 %v1488
        %2045 = vmatprep.subr.bf16.mxu0 %v1549
        %2046 = vmatpush2.bf16.msra.mxu0 %v1548
        %2047 = vmatprep.subr.bf16.mxu0 %v1545
        %2048 = vmatpush2.bf16.msra.mxu0 %v1544
        %2049 = vmatprep.subr.bf16.mxu0 %v1541
        %2050 = vmatpush2.bf16.msra.mxu0 %v1540
        %2051 = vmatprep.subr.bf16.mxu0 %v1537
        %2052 = vmatpush2.bf16.msra.mxu0 %v1536
        %2053 = vmatprep.subr.bf16.mxu0 %v1533
        %2054 = vmatpush2.bf16.msra.mxu0 %v1532
        %2055 = vmatprep.subr.bf16.mxu0 %v1529
        %2056 = vmatpush2.bf16.msra.mxu0 %v1528
        %2057 = vmatprep.subr.bf16.mxu0 %v1525
        %2058 = vmatpush2.bf16.msra.mxu0 %v1524
        %2059 = vmatprep.subr.bf16.mxu0 %v1521
        %2060 = vmatpush2.bf16.msra.mxu0 %v1520
        %2061 = vmatprep.mubr.bf16.mxu0 %v686
        %2062 = vmatmul.mubr.bf16.gmra.mxu0 %v685
        %v2063 = vpop.f32.mrf.mxu0
        %v2064 = vadd.f32 %v901, %v2063
        %v2065 = vpop.f32.mrf.mxu0
        %v2066 = vadd.f32 %v905, %v2065
        %v2067 = vpop.f32.mrf.mxu0
        %v2068 = vadd.f32 %v901, %v2067
        %v2069 = vpop.f32.mrf.mxu0
        %v2070 = vadd.f32 %v905, %v2069
        %2071 = vmatprep.mubr.bf16.mxu0 %v692
        %2072 = vmatmul.mubr.bf16.gmra.mxu0 %v691
        %v2073 = vpop.f32.mrf.mxu0
        %v2074 = vadd.f32 %v901, %v2073
        %v2075 = vpop.f32.mrf.mxu0
        %v2076 = vadd.f32 %v905, %v2075
        %v2077 = vpop.f32.mrf.mxu0
        %v2078 = vadd.f32 %v901, %v2077
        %v2079 = vpop.f32.mrf.mxu0
        %v2080 = vadd.f32 %v905, %v2079
        %2081 = vdwg.mxu0
        %2082 = vmatprep.subr.bf16.mxu0 %v1581
        %2083 = vmatpush1.bf16.msra.mxu0 %v1580
        %2084 = vmatprep.subr.bf16.mxu0 %v1577
        %2085 = vmatpush1.bf16.msra.mxu0 %v1576
        %2086 = vmatprep.subr.bf16.mxu0 %v1573
        %2087 = vmatpush1.bf16.msra.mxu0 %v1572
        %2088 = vmatprep.subr.bf16.mxu0 %v1569
        %2089 = vmatpush1.bf16.msra.mxu0 %v1568
        %2090 = vmatprep.subr.bf16.mxu0 %v1565
        %2091 = vmatpush1.bf16.msra.mxu0 %v1564
        %2092 = vmatprep.subr.bf16.mxu0 %v1561
        %2093 = vmatpush1.bf16.msra.mxu0 %v1560
        %2094 = vmatprep.subr.bf16.mxu0 %v1557
        %2095 = vmatpush1.bf16.msra.mxu0 %v1556
        %2096 = vmatprep.subr.bf16.mxu0 %v1553
        %2097 = vmatpush1.bf16.msra.mxu0 %v1552
        %2098 = vmatprep.subr.bf16.mxu0 %v1613
        %2099 = vmatpush2.bf16.msra.mxu0 %v1612
        %2100 = vmatprep.subr.bf16.mxu0 %v1609
        %2101 = vmatpush2.bf16.msra.mxu0 %v1608
        %2102 = vmatprep.subr.bf16.mxu0 %v1605
        %2103 = vmatpush2.bf16.msra.mxu0 %v1604
        %2104 = vmatprep.subr.bf16.mxu0 %v1601
        %2105 = vmatpush2.bf16.msra.mxu0 %v1600
        %2106 = vmatprep.subr.bf16.mxu0 %v1597
        %2107 = vmatpush2.bf16.msra.mxu0 %v1596
        %2108 = vmatprep.subr.bf16.mxu0 %v1593
        %2109 = vmatpush2.bf16.msra.mxu0 %v1592
        %2110 = vmatprep.subr.bf16.mxu0 %v1589
        %2111 = vmatpush2.bf16.msra.mxu0 %v1588
        %2112 = vmatprep.subr.bf16.mxu0 %v1585
        %2113 = vmatpush2.bf16.msra.mxu0 %v1584
        %2114 = vmatprep.mubr.bf16.mxu0 %v688
        %2115 = vmatmul.mubr.bf16.gmra.mxu0 %v687
        %v2116 = vpop.f32.mrf.mxu0
        %v2117 = vadd.f32 %v2064, %v2116
        %v2118 = vpop.f32.mrf.mxu0
        %v2119 = vadd.f32 %v2066, %v2118
        %v2120 = vpop.f32.mrf.mxu0
        %v2121 = vadd.f32 %v2068, %v2120
        %v2122 = vpop.f32.mrf.mxu0
        %v2123 = vadd.f32 %v2070, %v2122
        %2124 = vmatprep.mubr.bf16.mxu0 %v694
        %2125 = vmatmul.mubr.bf16.gmra.mxu0 %v693
        %v2126 = vpop.f32.mrf.mxu0
        %v2127 = vadd.f32 %v2074, %v2126
        %v2128 = vpop.f32.mrf.mxu0
        %v2129 = vadd.f32 %v2076, %v2128
        %v2130 = vpop.f32.mrf.mxu0
        %v2131 = vadd.f32 %v2078, %v2130
        %v2132 = vpop.f32.mrf.mxu0
        %v2133 = vadd.f32 %v2080, %v2132
        %2134 = vdwg.mxu0
        %2135 = vmatprep.subr.bf16.mxu0 %v1645
        %2136 = vmatpush1.bf16.msra.mxu0 %v1644
        %2137 = vmatprep.subr.bf16.mxu0 %v1641
        %2138 = vmatpush1.bf16.msra.mxu0 %v1640
        %2139 = vmatprep.subr.bf16.mxu0 %v1637
        %2140 = vmatpush1.bf16.msra.mxu0 %v1636
        %2141 = vmatprep.subr.bf16.mxu0 %v1633
        %2142 = vmatpush1.bf16.msra.mxu0 %v1632
        %2143 = vmatprep.subr.bf16.mxu0 %v1629
        %2144 = vmatpush1.bf16.msra.mxu0 %v1628
        %2145 = vmatprep.subr.bf16.mxu0 %v1625
        %2146 = vmatpush1.bf16.msra.mxu0 %v1624
        %2147 = vmatprep.subr.bf16.mxu0 %v1621
        %2148 = vmatpush1.bf16.msra.mxu0 %v1620
        %2149 = vmatprep.subr.bf16.mxu0 %v1617
        %2150 = vmatpush1.bf16.msra.mxu0 %v1616
        %2151 = vmatprep.subr.bf16.mxu0 %v1677
        %2152 = vmatpush2.bf16.msra.mxu0 %v1676
        %2153 = vmatprep.subr.bf16.mxu0 %v1673
        %2154 = vmatpush2.bf16.msra.mxu0 %v1672
        %2155 = vmatprep.subr.bf16.mxu0 %v1669
        %2156 = vmatpush2.bf16.msra.mxu0 %v1668
        %2157 = vmatprep.subr.bf16.mxu0 %v1665
        %2158 = vmatpush2.bf16.msra.mxu0 %v1664
        %2159 = vmatprep.subr.bf16.mxu0 %v1661
        %2160 = vmatpush2.bf16.msra.mxu0 %v1660
        %2161 = vmatprep.subr.bf16.mxu0 %v1657
        %2162 = vmatpush2.bf16.msra.mxu0 %v1656
        %2163 = vmatprep.subr.bf16.mxu0 %v1653
        %2164 = vmatpush2.bf16.msra.mxu0 %v1652
        %2165 = vmatprep.subr.bf16.mxu0 %v1649
        %2166 = vmatpush2.bf16.msra.mxu0 %v1648
        %2167 = vmatprep.mubr.bf16.mxu0 %v690
        %2168 = vmatmul.mubr.bf16.gmra.mxu0 %v689
        %v2169 = vpop.f32.mrf.mxu0
        %v2170 = vadd.f32 %v2117, %v2169
        %v2171 = vpop.f32.mrf.mxu0
        %v2172 = vadd.f32 %v2119, %v2171
        %v2173 = vpop.f32.mrf.mxu0
        %v2174 = vadd.f32 %v2121, %v2173
        %v2175 = vpop.f32.mrf.mxu0
        %v2176 = vadd.f32 %v2123, %v2175
        %2177 = vmatprep.mubr.bf16.mxu0 %v696
        %2178 = vmatmul.mubr.bf16.gmra.mxu0 %v695
        %v2179 = vpop.f32.mrf.mxu0
        %v2180 = vadd.f32 %v2127, %v2179
        %v2181 = vpop.f32.mrf.mxu0
        %v2182 = vadd.f32 %v2129, %v2181
        %v2183 = vpop.f32.mrf.mxu0
        %v2184 = vadd.f32 %v2131, %v2183
        %v2185 = vpop.f32.mrf.mxu0
        %v2186 = vadd.f32 %v2133, %v2185
        %2187 = vdwg.mxu0
        %s2188 = scalar_lea.vmem %s15, 2
        %v2189 = vld [vmem:[%s2188] ss:$8 sm:$0xf]
        %s2190 = scalar_lea.vmem %s15, 3
        %v2191 = vld [vmem:[%s2190] ss:$8 sm:$0xf]
        %v2193 = vlaneseq
        %v2194 = vshrl.u32 %v2193, 7
        %v2195 = vsub.s32 0, %v2194
        %v2196 = vrot.slane %v2189, %v2195
        %v2197 = vlaneseq
        %v2198 = vshrl.u32 %v2197, 7
        %v2199 = vsub.s32 1, %v2198
        %v2200 = vrot.slane %v2189, %v2199
        %v2201 = vlaneseq
        %v2202 = vshrl.u32 %v2201, 7
        %v2203 = vsub.s32 2, %v2202
        %v2204 = vrot.slane %v2189, %v2203
        %v2205 = vlaneseq
        %v2206 = vshrl.u32 %v2205, 7
        %v2207 = vsub.s32 3, %v2206
        %v2208 = vrot.slane %v2189, %v2207
        %v2213 = vmul.f32 %v2011, %v2196
        %v2214 = vmul.f32 %v2013, %v2200
        %v2215 = vmul.f32 %v2170, %v2204
        %v2216 = vmul.f32 %v2172, %v2208
        %v2217 = vmul.f32 %v2015, %v2196
        %v2218 = vmul.f32 %v2017, %v2200
        %v2219 = vmul.f32 %v2174, %v2204
        %v2220 = vmul.f32 %v2176, %v2208
        %v2221 = vmul.f32 %v2021, %v2196
        %v2222 = vmul.f32 %v2023, %v2200
        %v2223 = vmul.f32 %v2180, %v2204
        %v2224 = vmul.f32 %v2182, %v2208
        %v2225 = vmul.f32 %v2025, %v2196
        %v2226 = vmul.f32 %v2027, %v2200
        %v2227 = vmul.f32 %v2184, %v2204
        %v2228 = vmul.f32 %v2186, %v2208
        %v2230 = vlaneseq
        %v2231 = vshrl.u32 %v2230, 7
        %v2232 = vsub.s32 0, %v2231
        %v2233 = vrot.slane %v2191, %v2232
        %v2234 = vlaneseq
        %v2235 = vshrl.u32 %v2234, 7
        %v2236 = vsub.s32 1, %v2235
        %v2237 = vrot.slane %v2191, %v2236
        %v2238 = vlaneseq
        %v2239 = vshrl.u32 %v2238, 7
        %v2240 = vsub.s32 2, %v2239
        %v2241 = vrot.slane %v2191, %v2240
        %v2242 = vlaneseq
        %v2243 = vshrl.u32 %v2242, 7
        %v2244 = vsub.s32 3, %v2243
        %v2245 = vrot.slane %v2191, %v2244
        %v2250 = vadd.f32 %v2213, %v2233
        %v2251 = vadd.f32 %v2214, %v2237
        %v2252 = vadd.f32 %v2215, %v2241
        %v2253 = vadd.f32 %v2216, %v2245
        %v2254 = vadd.f32 %v2217, %v2233
        %v2255 = vadd.f32 %v2218, %v2237
        %v2256 = vadd.f32 %v2219, %v2241
        %v2257 = vadd.f32 %v2220, %v2245
        %v2258 = vadd.f32 %v2221, %v2233
        %v2259 = vadd.f32 %v2222, %v2237
        %v2260 = vadd.f32 %v2223, %v2241
        %v2261 = vadd.f32 %v2224, %v2245
        %v2262 = vadd.f32 %v2225, %v2233
        %v2263 = vadd.f32 %v2226, %v2237
        %v2264 = vadd.f32 %v2227, %v2241
        %v2265 = vadd.f32 %v2228, %v2245
        %v2266 = vmax.f32 %v2250, 0.0
        %v2267 = vmax.f32 %v2251, 0.0
        %v2268 = vmax.f32 %v2252, 0.0
        %v2269 = vmax.f32 %v2253, 0.0
        %v2270 = vmax.f32 %v2254, 0.0
        %v2271 = vmax.f32 %v2255, 0.0
        %v2272 = vmax.f32 %v2256, 0.0
        %v2273 = vmax.f32 %v2257, 0.0
        %v2274 = vmax.f32 %v2258, 0.0
        %v2275 = vmax.f32 %v2259, 0.0
        %v2276 = vmax.f32 %v2260, 0.0
        %v2277 = vmax.f32 %v2261, 0.0
        %v2278 = vmax.f32 %v2262, 0.0
        %v2279 = vmax.f32 %v2263, 0.0
        %v2280 = vmax.f32 %v2264, 0.0
        %v2281 = vmax.f32 %v2265, 0.0
        %s2282 = scalar_lea.vmem %s15, 1
        %v2283 = vld [vmem:[%s2282] ss:$8 sm:$0x3]
        %v2284 = vpack.c.bf16 %v2270, %v2266
        %v2285 = vpack.c.bf16 %v2271, %v2267
        %v2286 = vpack.c.bf16 %v2272, %v2268
        %v2287 = vpack.c.bf16 %v2273, %v2269
        %v2288 = vpack.c.bf16 %v2278, %v2274
        %v2289 = vpack.c.bf16 %v2279, %v2275
        %v2290 = vpack.c.bf16 %v2280, %v2276
        %v2291 = vpack.c.bf16 %v2281, %v2277
        %v2292 = vld [vmem:[#allocation7] sm:$0xff]
        %v2293 = vld [vmem:[#allocation7 + $0x8] sm:$0xff]
        %v2294 = vld [vmem:[#allocation7 + $0x10] sm:$0xff]
        %v2295 = vld [vmem:[#allocation7 + $0x18] sm:$0xff]
        %v2296 = vld [vmem:[#allocation7 + $0x20] sm:$0xff]
        %v2297 = vld [vmem:[#allocation7 + $0x28] sm:$0xff]
        %v2298 = vld [vmem:[#allocation7 + $0x30] sm:$0xff]
        %v2299 = vld [vmem:[#allocation7 + $0x38] sm:$0xff]
        %v2300 = vld [vmem:[#allocation7 + $0x40] sm:$0xff]
        %v2301 = vld [vmem:[#allocation7 + $0x48] sm:$0xff]
        %v2302 = vld [vmem:[#allocation7 + $0x50] sm:$0xff]
        %v2303 = vld [vmem:[#allocation7 + $0x58] sm:$0xff]
        %v2304 = vld [vmem:[#allocation7 + $0x60] sm:$0xff]
        %v2305 = vld [vmem:[#allocation7 + $0x68] sm:$0xff]
        %v2306 = vld [vmem:[#allocation7 + $0x70] sm:$0xff]
        %v2307 = vld [vmem:[#allocation7 + $0x78] sm:$0xff]
        %v2308 = vld [vmem:[#allocation7 + $0x80] sm:$0xff]
        %v2309 = vld [vmem:[#allocation7 + $0x88] sm:$0xff]
        %v2310 = vld [vmem:[#allocation7 + $0x90] sm:$0xff]
        %v2311 = vld [vmem:[#allocation7 + $0x98] sm:$0xff]
        %v2312 = vld [vmem:[#allocation7 + $0xa0] sm:$0xff]
        %v2313 = vld [vmem:[#allocation7 + $0xa8] sm:$0xff]
        %v2314 = vld [vmem:[#allocation7 + $0xb0] sm:$0xff]
        %v2315 = vld [vmem:[#allocation7 + $0xb8] sm:$0xff]
        %v2316 = vld [vmem:[#allocation7 + $0xc0] sm:$0xff]
        %v2317 = vld [vmem:[#allocation7 + $0xc8] sm:$0xff]
        %v2318 = vld [vmem:[#allocation7 + $0xd0] sm:$0xff]
        %v2319 = vld [vmem:[#allocation7 + $0xd8] sm:$0xff]
        %v2320 = vld [vmem:[#allocation7 + $0xe0] sm:$0xff]
        %v2321 = vld [vmem:[#allocation7 + $0xe8] sm:$0xff]
        %v2322 = vld [vmem:[#allocation7 + $0xf0] sm:$0xff]
        %v2323 = vld [vmem:[#allocation7 + $0xf8] sm:$0xff]
        %v2324 = vld [vmem:[#allocation7 + $0x100] sm:$0xff]
        %v2325 = vld [vmem:[#allocation7 + $0x108] sm:$0xff]
        %v2326 = vld [vmem:[#allocation7 + $0x110] sm:$0xff]
        %v2327 = vld [vmem:[#allocation7 + $0x118] sm:$0xff]
        %v2328 = vld [vmem:[#allocation7 + $0x120] sm:$0xff]
        %v2329 = vld [vmem:[#allocation7 + $0x128] sm:$0xff]
        %v2330 = vld [vmem:[#allocation7 + $0x130] sm:$0xff]
        %v2331 = vld [vmem:[#allocation7 + $0x138] sm:$0xff]
        %v2332 = vld [vmem:[#allocation7 + $0x140] sm:$0xff]
        %v2333 = vld [vmem:[#allocation7 + $0x148] sm:$0xff]
        %v2334 = vld [vmem:[#allocation7 + $0x150] sm:$0xff]
        %v2335 = vld [vmem:[#allocation7 + $0x158] sm:$0xff]
        %v2336 = vld [vmem:[#allocation7 + $0x160] sm:$0xff]
        %v2337 = vld [vmem:[#allocation7 + $0x168] sm:$0xff]
        %v2338 = vld [vmem:[#allocation7 + $0x170] sm:$0xff]
        %v2339 = vld [vmem:[#allocation7 + $0x178] sm:$0xff]
        %v2340 = vld [vmem:[#allocation7 + $0x180] sm:$0xff]
        %v2341 = vld [vmem:[#allocation7 + $0x188] sm:$0xff]
        %v2342 = vld [vmem:[#allocation7 + $0x190] sm:$0xff]
        %v2343 = vld [vmem:[#allocation7 + $0x198] sm:$0xff]
        %v2344 = vld [vmem:[#allocation7 + $0x1a0] sm:$0xff]
        %v2345 = vld [vmem:[#allocation7 + $0x1a8] sm:$0xff]
        %v2346 = vld [vmem:[#allocation7 + $0x1b0] sm:$0xff]
        %v2347 = vld [vmem:[#allocation7 + $0x1b8] sm:$0xff]
        %v2348 = vld [vmem:[#allocation7 + $0x1c0] sm:$0xff]
        %v2349 = vld [vmem:[#allocation7 + $0x1c8] sm:$0xff]
        %v2350 = vld [vmem:[#allocation7 + $0x1d0] sm:$0xff]
        %v2351 = vld [vmem:[#allocation7 + $0x1d8] sm:$0xff]
        %v2352 = vld [vmem:[#allocation7 + $0x1e0] sm:$0xff]
        %v2353 = vld [vmem:[#allocation7 + $0x1e8] sm:$0xff]
        %v2354 = vld [vmem:[#allocation7 + $0x1f0] sm:$0xff]
        %v2355 = vld [vmem:[#allocation7 + $0x1f8] sm:$0xff]
        %v2357 = vlaneseq
        %v2358 = vshrl.u32 %v2357, 7
        %v2359 = vsub.s32 0, %v2358
        %v2360 = vrot.slane %v2283, %v2359
        %v2361 = vlaneseq
        %v2362 = vshrl.u32 %v2361, 7
        %v2363 = vsub.s32 1, %v2362
        %v2364 = vrot.slane %v2283, %v2363
        %v2431 = vunpack.c.l.b16 %v2292
        %v2432 = vunpack.c.h.b16 %v2292
        %v2433 = vunpack.c.l.b16 %v2293
        %v2434 = vunpack.c.h.b16 %v2293
        %v2435 = vunpack.c.l.b16 %v2294
        %v2436 = vunpack.c.h.b16 %v2294
        %v2437 = vunpack.c.l.b16 %v2295
        %v2438 = vunpack.c.h.b16 %v2295
        %v2439 = vunpack.c.l.b16 %v2296
        %v2440 = vunpack.c.h.b16 %v2296
        %v2441 = vunpack.c.l.b16 %v2297
        %v2442 = vunpack.c.h.b16 %v2297
        %v2443 = vunpack.c.l.b16 %v2298
        %v2444 = vunpack.c.h.b16 %v2298
        %v2445 = vunpack.c.l.b16 %v2299
        %v2446 = vunpack.c.h.b16 %v2299
        %v2447 = vunpack.c.l.b16 %v2300
        %v2448 = vunpack.c.h.b16 %v2300
        %v2449 = vunpack.c.l.b16 %v2301
        %v2450 = vunpack.c.h.b16 %v2301
        %v2451 = vunpack.c.l.b16 %v2302
        %v2452 = vunpack.c.h.b16 %v2302
        %v2453 = vunpack.c.l.b16 %v2303
        %v2454 = vunpack.c.h.b16 %v2303
        %v2455 = vunpack.c.l.b16 %v2304
        %v2456 = vunpack.c.h.b16 %v2304
        %v2457 = vunpack.c.l.b16 %v2305
        %v2458 = vunpack.c.h.b16 %v2305
        %v2459 = vunpack.c.l.b16 %v2306
        %v2460 = vunpack.c.h.b16 %v2306
        %v2461 = vunpack.c.l.b16 %v2307
        %v2462 = vunpack.c.h.b16 %v2307
        %v2463 = vunpack.c.l.b16 %v2308
        %v2464 = vunpack.c.h.b16 %v2308
        %v2465 = vunpack.c.l.b16 %v2309
        %v2466 = vunpack.c.h.b16 %v2309
        %v2467 = vunpack.c.l.b16 %v2310
        %v2468 = vunpack.c.h.b16 %v2310
        %v2469 = vunpack.c.l.b16 %v2311
        %v2470 = vunpack.c.h.b16 %v2311
        %v2471 = vunpack.c.l.b16 %v2312
        %v2472 = vunpack.c.h.b16 %v2312
        %v2473 = vunpack.c.l.b16 %v2313
        %v2474 = vunpack.c.h.b16 %v2313
        %v2475 = vunpack.c.l.b16 %v2314
        %v2476 = vunpack.c.h.b16 %v2314
        %v2477 = vunpack.c.l.b16 %v2315
        %v2478 = vunpack.c.h.b16 %v2315
        %v2479 = vunpack.c.l.b16 %v2316
        %v2480 = vunpack.c.h.b16 %v2316
        %v2481 = vunpack.c.l.b16 %v2317
        %v2482 = vunpack.c.h.b16 %v2317
        %v2483 = vunpack.c.l.b16 %v2318
        %v2484 = vunpack.c.h.b16 %v2318
        %v2485 = vunpack.c.l.b16 %v2319
        %v2486 = vunpack.c.h.b16 %v2319
        %v2487 = vunpack.c.l.b16 %v2320
        %v2488 = vunpack.c.h.b16 %v2320
        %v2489 = vunpack.c.l.b16 %v2321
        %v2490 = vunpack.c.h.b16 %v2321
        %v2491 = vunpack.c.l.b16 %v2322
        %v2492 = vunpack.c.h.b16 %v2322
        %v2493 = vunpack.c.l.b16 %v2323
        %v2494 = vunpack.c.h.b16 %v2323
        %v2495 = vunpack.c.l.b16 %v2324
        %v2496 = vunpack.c.h.b16 %v2324
        %v2497 = vunpack.c.l.b16 %v2325
        %v2498 = vunpack.c.h.b16 %v2325
        %v2499 = vunpack.c.l.b16 %v2326
        %v2500 = vunpack.c.h.b16 %v2326
        %v2501 = vunpack.c.l.b16 %v2327
        %v2502 = vunpack.c.h.b16 %v2327
        %v2503 = vunpack.c.l.b16 %v2328
        %v2504 = vunpack.c.h.b16 %v2328
        %v2505 = vunpack.c.l.b16 %v2329
        %v2506 = vunpack.c.h.b16 %v2329
        %v2507 = vunpack.c.l.b16 %v2330
        %v2508 = vunpack.c.h.b16 %v2330
        %v2509 = vunpack.c.l.b16 %v2331
        %v2510 = vunpack.c.h.b16 %v2331
        %v2511 = vunpack.c.l.b16 %v2332
        %v2512 = vunpack.c.h.b16 %v2332
        %v2513 = vunpack.c.l.b16 %v2333
        %v2514 = vunpack.c.h.b16 %v2333
        %v2515 = vunpack.c.l.b16 %v2334
        %v2516 = vunpack.c.h.b16 %v2334
        %v2517 = vunpack.c.l.b16 %v2335
        %v2518 = vunpack.c.h.b16 %v2335
        %v2519 = vunpack.c.l.b16 %v2336
        %v2520 = vunpack.c.h.b16 %v2336
        %v2521 = vunpack.c.l.b16 %v2337
        %v2522 = vunpack.c.h.b16 %v2337
        %v2523 = vunpack.c.l.b16 %v2338
        %v2524 = vunpack.c.h.b16 %v2338
        %v2525 = vunpack.c.l.b16 %v2339
        %v2526 = vunpack.c.h.b16 %v2339
        %v2527 = vunpack.c.l.b16 %v2340
        %v2528 = vunpack.c.h.b16 %v2340
        %v2529 = vunpack.c.l.b16 %v2341
        %v2530 = vunpack.c.h.b16 %v2341
        %v2531 = vunpack.c.l.b16 %v2342
        %v2532 = vunpack.c.h.b16 %v2342
        %v2533 = vunpack.c.l.b16 %v2343
        %v2534 = vunpack.c.h.b16 %v2343
        %v2535 = vunpack.c.l.b16 %v2344
        %v2536 = vunpack.c.h.b16 %v2344
        %v2537 = vunpack.c.l.b16 %v2345
        %v2538 = vunpack.c.h.b16 %v2345
        %v2539 = vunpack.c.l.b16 %v2346
        %v2540 = vunpack.c.h.b16 %v2346
        %v2541 = vunpack.c.l.b16 %v2347
        %v2542 = vunpack.c.h.b16 %v2347
        %v2543 = vunpack.c.l.b16 %v2348
        %v2544 = vunpack.c.h.b16 %v2348
        %v2545 = vunpack.c.l.b16 %v2349
        %v2546 = vunpack.c.h.b16 %v2349
        %v2547 = vunpack.c.l.b16 %v2350
        %v2548 = vunpack.c.h.b16 %v2350
        %v2549 = vunpack.c.l.b16 %v2351
        %v2550 = vunpack.c.h.b16 %v2351
        %v2551 = vunpack.c.l.b16 %v2352
        %v2552 = vunpack.c.h.b16 %v2352
        %v2553 = vunpack.c.l.b16 %v2353
        %v2554 = vunpack.c.h.b16 %v2353
        %v2555 = vunpack.c.l.b16 %v2354
        %v2556 = vunpack.c.h.b16 %v2354
        %v2557 = vunpack.c.l.b16 %v2355
        %v2558 = vunpack.c.h.b16 %v2355
        %v2559 = vpack.c.b16 %v2433, %v2431
        %v2560 = vpack.c.b16 %v2434, %v2432
        %v2561 = vpack.c.b16 %v2437, %v2435
        %v2562 = vpack.c.b16 %v2438, %v2436
        %v2563 = vpack.c.b16 %v2441, %v2439
        %v2564 = vpack.c.b16 %v2442, %v2440
        %v2565 = vpack.c.b16 %v2445, %v2443
        %v2566 = vpack.c.b16 %v2446, %v2444
        %v2567 = vpack.c.b16 %v2449, %v2447
        %v2568 = vpack.c.b16 %v2450, %v2448
        %v2569 = vpack.c.b16 %v2453, %v2451
        %v2570 = vpack.c.b16 %v2454, %v2452
        %v2571 = vpack.c.b16 %v2457, %v2455
        %v2572 = vpack.c.b16 %v2458, %v2456
        %v2573 = vpack.c.b16 %v2461, %v2459
        %v2574 = vpack.c.b16 %v2462, %v2460
        %v2575 = vpack.c.b16 %v2465, %v2463
        %v2576 = vpack.c.b16 %v2466, %v2464
        %v2577 = vpack.c.b16 %v2469, %v2467
        %v2578 = vpack.c.b16 %v2470, %v2468
        %v2579 = vpack.c.b16 %v2473, %v2471
        %v2580 = vpack.c.b16 %v2474, %v2472
        %v2581 = vpack.c.b16 %v2477, %v2475
        %v2582 = vpack.c.b16 %v2478, %v2476
        %v2583 = vpack.c.b16 %v2481, %v2479
        %v2584 = vpack.c.b16 %v2482, %v2480
        %v2585 = vpack.c.b16 %v2485, %v2483
        %v2586 = vpack.c.b16 %v2486, %v2484
        %v2587 = vpack.c.b16 %v2489, %v2487
        %v2588 = vpack.c.b16 %v2490, %v2488
        %v2589 = vpack.c.b16 %v2493, %v2491
        %v2590 = vpack.c.b16 %v2494, %v2492
        %v2591 = vpack.c.b16 %v2497, %v2495
        %v2592 = vpack.c.b16 %v2498, %v2496
        %v2593 = vpack.c.b16 %v2501, %v2499
        %v2594 = vpack.c.b16 %v2502, %v2500
        %v2595 = vpack.c.b16 %v2505, %v2503
        %v2596 = vpack.c.b16 %v2506, %v2504
        %v2597 = vpack.c.b16 %v2509, %v2507
        %v2598 = vpack.c.b16 %v2510, %v2508
        %v2599 = vpack.c.b16 %v2513, %v2511
        %v2600 = vpack.c.b16 %v2514, %v2512
        %v2601 = vpack.c.b16 %v2517, %v2515
        %v2602 = vpack.c.b16 %v2518, %v2516
        %v2603 = vpack.c.b16 %v2521, %v2519
        %v2604 = vpack.c.b16 %v2522, %v2520
        %v2605 = vpack.c.b16 %v2525, %v2523
        %v2606 = vpack.c.b16 %v2526, %v2524
        %v2607 = vpack.c.b16 %v2529, %v2527
        %v2608 = vpack.c.b16 %v2530, %v2528
        %v2609 = vpack.c.b16 %v2533, %v2531
        %v2610 = vpack.c.b16 %v2534, %v2532
        %v2611 = vpack.c.b16 %v2537, %v2535
        %v2612 = vpack.c.b16 %v2538, %v2536
        %v2613 = vpack.c.b16 %v2541, %v2539
        %v2614 = vpack.c.b16 %v2542, %v2540
        %v2615 = vpack.c.b16 %v2545, %v2543
        %v2616 = vpack.c.b16 %v2546, %v2544
        %v2617 = vpack.c.b16 %v2549, %v2547
        %v2618 = vpack.c.b16 %v2550, %v2548
        %v2619 = vpack.c.b16 %v2553, %v2551
        %v2620 = vpack.c.b16 %v2554, %v2552
        %v2621 = vpack.c.b16 %v2557, %v2555
        %v2622 = vpack.c.b16 %v2558, %v2556
        %2687 = vmatprep.subr.bf16.mxu0 %v2574
        %2688 = vmatpush1.bf16.msra.mxu0 %v2573
        %2689 = vmatprep.subr.bf16.mxu0 %v2572
        %2690 = vmatpush1.bf16.msra.mxu0 %v2571
        %2691 = vmatprep.subr.bf16.mxu0 %v2570
        %2692 = vmatpush1.bf16.msra.mxu0 %v2569
        %2693 = vmatprep.subr.bf16.mxu0 %v2568
        %2694 = vmatpush1.bf16.msra.mxu0 %v2567
        %2695 = vmatprep.subr.bf16.mxu0 %v2566
        %2696 = vmatpush1.bf16.msra.mxu0 %v2565
        %2697 = vmatprep.subr.bf16.mxu0 %v2564
        %2698 = vmatpush1.bf16.msra.mxu0 %v2563
        %2699 = vmatprep.subr.bf16.mxu0 %v2562
        %2700 = vmatpush1.bf16.msra.mxu0 %v2561
        %2701 = vmatprep.subr.bf16.mxu0 %v2560
        %2702 = vmatpush1.bf16.msra.mxu0 %v2559
        %2703 = vmatprep.subr.bf16.mxu0 %v2590
        %2704 = vmatpush2.bf16.msra.mxu0 %v2589
        %2705 = vmatprep.subr.bf16.mxu0 %v2588
        %2706 = vmatpush2.bf16.msra.mxu0 %v2587
        %2707 = vmatprep.subr.bf16.mxu0 %v2586
        %2708 = vmatpush2.bf16.msra.mxu0 %v2585
        %2709 = vmatprep.subr.bf16.mxu0 %v2584
        %2710 = vmatpush2.bf16.msra.mxu0 %v2583
        %2711 = vmatprep.subr.bf16.mxu0 %v2582
        %2712 = vmatpush2.bf16.msra.mxu0 %v2581
        %2713 = vmatprep.subr.bf16.mxu0 %v2580
        %2714 = vmatpush2.bf16.msra.mxu0 %v2579
        %2715 = vmatprep.subr.bf16.mxu0 %v2578
        %2716 = vmatpush2.bf16.msra.mxu0 %v2577
        %2717 = vmatprep.subr.bf16.mxu0 %v2576
        %2718 = vmatpush2.bf16.msra.mxu0 %v2575
        %2719 = vmatprep.mubr.bf16.mxu0 %v2285
        %2720 = vmatmul.mubr.bf16.gmra.mxu0 %v2284
        %v2721 = vpop.f32.mrf.mxu0
        %v2722 = vadd.f32 %v2360, %v2721
        %v2723 = vpop.f32.mrf.mxu0
        %v2724 = vadd.f32 %v2364, %v2723
        %v2725 = vpop.f32.mrf.mxu0
        %v2726 = vadd.f32 %v2360, %v2725
        %v2727 = vpop.f32.mrf.mxu0
        %v2728 = vadd.f32 %v2364, %v2727
        %2729 = vmatprep.mubr.bf16.mxu0 %v2289
        %2730 = vmatmul.mubr.bf16.gmra.mxu0 %v2288
        %v2731 = vpop.f32.mrf.mxu0
        %v2732 = vadd.f32 %v2360, %v2731
        %v2733 = vpop.f32.mrf.mxu0
        %v2734 = vadd.f32 %v2364, %v2733
        %v2735 = vpop.f32.mrf.mxu0
        %v2736 = vadd.f32 %v2360, %v2735
        %v2737 = vpop.f32.mrf.mxu0
        %v2738 = vadd.f32 %v2364, %v2737
        %2739 = vdwg.mxu0
        %2740 = vmatprep.subr.bf16.mxu0 %v2606
        %2741 = vmatpush1.bf16.msra.mxu0 %v2605
        %2742 = vmatprep.subr.bf16.mxu0 %v2604
        %2743 = vmatpush1.bf16.msra.mxu0 %v2603
        %2744 = vmatprep.subr.bf16.mxu0 %v2602
        %2745 = vmatpush1.bf16.msra.mxu0 %v2601
        %2746 = vmatprep.subr.bf16.mxu0 %v2600
        %2747 = vmatpush1.bf16.msra.mxu0 %v2599
        %2748 = vmatprep.subr.bf16.mxu0 %v2598
        %2749 = vmatpush1.bf16.msra.mxu0 %v2597
        %2750 = vmatprep.subr.bf16.mxu0 %v2596
        %2751 = vmatpush1.bf16.msra.mxu0 %v2595
        %2752 = vmatprep.subr.bf16.mxu0 %v2594
        %2753 = vmatpush1.bf16.msra.mxu0 %v2593
        %2754 = vmatprep.subr.bf16.mxu0 %v2592
        %2755 = vmatpush1.bf16.msra.mxu0 %v2591
        %2756 = vmatprep.subr.bf16.mxu0 %v2622
        %2757 = vmatpush2.bf16.msra.mxu0 %v2621
        %2758 = vmatprep.subr.bf16.mxu0 %v2620
        %2759 = vmatpush2.bf16.msra.mxu0 %v2619
        %2760 = vmatprep.subr.bf16.mxu0 %v2618
        %2761 = vmatpush2.bf16.msra.mxu0 %v2617
        %2762 = vmatprep.subr.bf16.mxu0 %v2616
        %2763 = vmatpush2.bf16.msra.mxu0 %v2615
        %2764 = vmatprep.subr.bf16.mxu0 %v2614
        %2765 = vmatpush2.bf16.msra.mxu0 %v2613
        %2766 = vmatprep.subr.bf16.mxu0 %v2612
        %2767 = vmatpush2.bf16.msra.mxu0 %v2611
        %2768 = vmatprep.subr.bf16.mxu0 %v2610
        %2769 = vmatpush2.bf16.msra.mxu0 %v2609
        %2770 = vmatprep.subr.bf16.mxu0 %v2608
        %2771 = vmatpush2.bf16.msra.mxu0 %v2607
        %2772 = vmatprep.mubr.bf16.mxu0 %v2287
        %2773 = vmatmul.mubr.bf16.gmra.mxu0 %v2286
        %v2774 = vpop.f32.mrf.mxu0
        %v2775 = vadd.f32 %v2722, %v2774
        %v2776 = vpop.f32.mrf.mxu0
        %v2777 = vadd.f32 %v2724, %v2776
        %v2778 = vpop.f32.mrf.mxu0
        %v2779 = vadd.f32 %v2726, %v2778
        %v2780 = vpop.f32.mrf.mxu0
        %v2781 = vadd.f32 %v2728, %v2780
        %2782 = vmatprep.mubr.bf16.mxu0 %v2291
        %2783 = vmatmul.mubr.bf16.gmra.mxu0 %v2290
        %v2784 = vpop.f32.mrf.mxu0
        %v2785 = vadd.f32 %v2732, %v2784
        %v2786 = vpop.f32.mrf.mxu0
        %v2787 = vadd.f32 %v2734, %v2786
        %v2788 = vpop.f32.mrf.mxu0
        %v2789 = vadd.f32 %v2736, %v2788
        %v2790 = vpop.f32.mrf.mxu0
        %v2791 = vadd.f32 %v2738, %v2790
        %2792 = vdwg.mxu0
        %s2793 = scalar_lea.vmem %s15, 5
        %v2794 = vld [vmem:[%s2793] ss:$8 sm:$0x3]
        %s2795 = scalar_lea.vmem %s15, 6
        %v2796 = vld [vmem:[%s2795] ss:$8 sm:$0x3]
        %v2798 = vlaneseq
        %v2799 = vshrl.u32 %v2798, 7
        %v2800 = vsub.s32 0, %v2799
        %v2801 = vrot.slane %v2794, %v2800
        %v2802 = vlaneseq
        %v2803 = vshrl.u32 %v2802, 7
        %v2804 = vsub.s32 1, %v2803
        %v2805 = vrot.slane %v2794, %v2804
        %v2808 = vmul.f32 %v2775, %v2801
        %v2809 = vmul.f32 %v2777, %v2805
        %v2810 = vmul.f32 %v2779, %v2801
        %v2811 = vmul.f32 %v2781, %v2805
        %v2812 = vmul.f32 %v2785, %v2801
        %v2813 = vmul.f32 %v2787, %v2805
        %v2814 = vmul.f32 %v2789, %v2801
        %v2815 = vmul.f32 %v2791, %v2805
        %v2817 = vlaneseq
        %v2818 = vshrl.u32 %v2817, 7
        %v2819 = vsub.s32 0, %v2818
        %v2820 = vrot.slane %v2796, %v2819
        %v2821 = vlaneseq
        %v2822 = vshrl.u32 %v2821, 7
        %v2823 = vsub.s32 1, %v2822
        %v2824 = vrot.slane %v2796, %v2823
        %v2827 = vadd.f32 %v2808, %v2820
        %v2828 = vadd.f32 %v2809, %v2824
        %v2829 = vadd.f32 %v2810, %v2820
        %v2830 = vadd.f32 %v2811, %v2824
        %v2831 = vadd.f32 %v2812, %v2820
        %v2832 = vadd.f32 %v2813, %v2824
        %v2833 = vadd.f32 %v2814, %v2820
        %v2834 = vadd.f32 %v2815, %v2824
        %v2835 = vmax.f32 %v2827, 0.0
        %v2836 = vmax.f32 %v2828, 0.0
        %v2837 = vmax.f32 %v2829, 0.0
        %v2838 = vmax.f32 %v2830, 0.0
        %v2839 = vmax.f32 %v2831, 0.0
        %v2840 = vmax.f32 %v2832, 0.0
        %v2841 = vmax.f32 %v2833, 0.0
        %v2842 = vmax.f32 %v2834, 0.0
        %v2843 = vld [vmem:[%s15 + $0x4] ss:$0 sm:$0xff]
        %v2844 = vpack.c.bf16 %v2837, %v2835
        %v2845 = vpack.c.bf16 %v2838, %v2836
        %v2846 = vpack.c.bf16 %v2841, %v2839
        %v2847 = vpack.c.bf16 %v2842, %v2840
        %v2848 = vld [vmem:[#allocation8] sm:$0xf]
        %v2849 = vld [vmem:[#allocation8 + $0x4] sm:$0xf]
        %v2850 = vld [vmem:[#allocation8 + $0x8] sm:$0xf]
        %v2851 = vld [vmem:[#allocation8 + $0xc] sm:$0xf]
        %v2852 = vld [vmem:[#allocation8 + $0x10] sm:$0xf]
        %v2853 = vld [vmem:[#allocation8 + $0x14] sm:$0xf]
        %v2854 = vld [vmem:[#allocation8 + $0x18] sm:$0xf]
        %v2855 = vld [vmem:[#allocation8 + $0x1c] sm:$0xf]
        %v2856 = vld [vmem:[#allocation8 + $0x20] sm:$0xf]
        %v2857 = vld [vmem:[#allocation8 + $0x24] sm:$0xf]
        %v2858 = vld [vmem:[#allocation8 + $0x28] sm:$0xf]
        %v2859 = vld [vmem:[#allocation8 + $0x2c] sm:$0xf]
        %v2860 = vld [vmem:[#allocation8 + $0x30] sm:$0xf]
        %v2861 = vld [vmem:[#allocation8 + $0x34] sm:$0xf]
        %v2862 = vld [vmem:[#allocation8 + $0x38] sm:$0xf]
        %v2863 = vld [vmem:[#allocation8 + $0x3c] sm:$0xf]
        %v2864 = vld [vmem:[#allocation8 + $0x40] sm:$0xf]
        %v2865 = vld [vmem:[#allocation8 + $0x44] sm:$0xf]
        %v2866 = vld [vmem:[#allocation8 + $0x48] sm:$0xf]
        %v2867 = vld [vmem:[#allocation8 + $0x4c] sm:$0xf]
        %v2868 = vld [vmem:[#allocation8 + $0x50] sm:$0xf]
        %v2869 = vld [vmem:[#allocation8 + $0x54] sm:$0xf]
        %v2870 = vld [vmem:[#allocation8 + $0x58] sm:$0xf]
        %v2871 = vld [vmem:[#allocation8 + $0x5c] sm:$0xf]
        %v2872 = vld [vmem:[#allocation8 + $0x60] sm:$0xf]
        %v2873 = vld [vmem:[#allocation8 + $0x64] sm:$0xf]
        %v2874 = vld [vmem:[#allocation8 + $0x68] sm:$0xf]
        %v2875 = vld [vmem:[#allocation8 + $0x6c] sm:$0xf]
        %v2876 = vld [vmem:[#allocation8 + $0x70] sm:$0xf]
        %v2877 = vld [vmem:[#allocation8 + $0x74] sm:$0xf]
        %v2878 = vld [vmem:[#allocation8 + $0x78] sm:$0xf]
        %v2879 = vld [vmem:[#allocation8 + $0x7c] sm:$0xf]
        %v2912 = vunpack.c.l.b16 %v2848
        %v2913 = vunpack.c.l.b16 %v2849
        %v2914 = vunpack.c.l.b16 %v2850
        %v2915 = vunpack.c.l.b16 %v2851
        %v2916 = vunpack.c.l.b16 %v2852
        %v2917 = vunpack.c.l.b16 %v2853
        %v2918 = vunpack.c.l.b16 %v2854
        %v2919 = vunpack.c.l.b16 %v2855
        %v2920 = vunpack.c.l.b16 %v2856
        %v2921 = vunpack.c.l.b16 %v2857
        %v2922 = vunpack.c.l.b16 %v2858
        %v2923 = vunpack.c.l.b16 %v2859
        %v2924 = vunpack.c.l.b16 %v2860
        %v2925 = vunpack.c.l.b16 %v2861
        %v2926 = vunpack.c.l.b16 %v2862
        %v2927 = vunpack.c.l.b16 %v2863
        %v2928 = vunpack.c.l.b16 %v2864
        %v2929 = vunpack.c.l.b16 %v2865
        %v2930 = vunpack.c.l.b16 %v2866
        %v2931 = vunpack.c.l.b16 %v2867
        %v2932 = vunpack.c.l.b16 %v2868
        %v2933 = vunpack.c.l.b16 %v2869
        %v2934 = vunpack.c.l.b16 %v2870
        %v2935 = vunpack.c.l.b16 %v2871
        %v2936 = vunpack.c.l.b16 %v2872
        %v2937 = vunpack.c.l.b16 %v2873
        %v2938 = vunpack.c.l.b16 %v2874
        %v2939 = vunpack.c.l.b16 %v2875
        %v2940 = vunpack.c.l.b16 %v2876
        %v2941 = vunpack.c.l.b16 %v2877
        %v2942 = vunpack.c.l.b16 %v2878
        %v2943 = vunpack.c.l.b16 %v2879
        %v2944 = vpack.c.b16 %v2913, %v2912
        %v2945 = vpack.c.b16 %v2915, %v2914
        %v2946 = vpack.c.b16 %v2917, %v2916
        %v2947 = vpack.c.b16 %v2919, %v2918
        %v2948 = vpack.c.b16 %v2921, %v2920
        %v2949 = vpack.c.b16 %v2923, %v2922
        %v2950 = vpack.c.b16 %v2925, %v2924
        %v2951 = vpack.c.b16 %v2927, %v2926
        %v2952 = vpack.c.b16 %v2929, %v2928
        %v2953 = vpack.c.b16 %v2931, %v2930
        %v2954 = vpack.c.b16 %v2933, %v2932
        %v2955 = vpack.c.b16 %v2935, %v2934
        %v2956 = vpack.c.b16 %v2937, %v2936
        %v2957 = vpack.c.b16 %v2939, %v2938
        %v2958 = vpack.c.b16 %v2941, %v2940
        %v2959 = vpack.c.b16 %v2943, %v2942
        %2976 = vmatprep.subr.bf16.mxu0 0
        %2977 = vmatpush1.bf16.msra.mxu0 %v2951
        %2978 = vmatprep.subr.bf16.mxu0 0
        %2979 = vmatpush1.bf16.msra.mxu0 %v2950
        %2980 = vmatprep.subr.bf16.mxu0 0
        %2981 = vmatpush1.bf16.msra.mxu0 %v2949
        %2982 = vmatprep.subr.bf16.mxu0 0
        %2983 = vmatpush1.bf16.msra.mxu0 %v2948
        %2984 = vmatprep.subr.bf16.mxu0 0
        %2985 = vmatpush1.bf16.msra.mxu0 %v2947
        %2986 = vmatprep.subr.bf16.mxu0 0
        %2987 = vmatpush1.bf16.msra.mxu0 %v2946
        %2988 = vmatprep.subr.bf16.mxu0 0
        %2989 = vmatpush1.bf16.msra.mxu0 %v2945
        %2990 = vmatprep.subr.bf16.mxu0 0
        %2991 = vmatpush1.bf16.msra.mxu0 %v2944
        %2992 = vmatprep.subr.bf16.mxu0 0
        %2993 = vmatpush2.bf16.msra.mxu0 %v2959
        %2994 = vmatprep.subr.bf16.mxu0 0
        %2995 = vmatpush2.bf16.msra.mxu0 %v2958
        %2996 = vmatprep.subr.bf16.mxu0 0
        %2997 = vmatpush2.bf16.msra.mxu0 %v2957
        %2998 = vmatprep.subr.bf16.mxu0 0
        %2999 = vmatpush2.bf16.msra.mxu0 %v2956
        %3000 = vmatprep.subr.bf16.mxu0 0
        %3001 = vmatpush2.bf16.msra.mxu0 %v2955
        %3002 = vmatprep.subr.bf16.mxu0 0
        %3003 = vmatpush2.bf16.msra.mxu0 %v2954
        %3004 = vmatprep.subr.bf16.mxu0 0
        %3005 = vmatpush2.bf16.msra.mxu0 %v2953
        %3006 = vmatprep.subr.bf16.mxu0 0
        %3007 = vmatpush2.bf16.msra.mxu0 %v2952
        %3008 = vmatprep.mubr.bf16.mxu0 %v2845
        %3009 = vmatmul.mubr.bf16.gmra.mxu0 %v2844
        %v3010 = vpop.f32.mrf.mxu0
        %v3011 = vadd.f32 %v2843, %v3010
        %v3012 = vpop.f32.mrf.mxu0
        %v3013 = vpop.f32.mrf.mxu0
        %v3014 = vadd.f32 %v2843, %v3013
        %v3015 = vpop.f32.mrf.mxu0
        %3016 = vmatprep.mubr.bf16.mxu0 %v2847
        %3017 = vmatmul.mubr.bf16.gmra.mxu0 %v2846
        %v3018 = vpop.f32.mrf.mxu0
        %v3019 = vadd.f32 %v2843, %v3018
        %v3020 = vpop.f32.mrf.mxu0
        %v3021 = vpop.f32.mrf.mxu0
        %v3022 = vadd.f32 %v2843, %v3021
        %v3023 = vpop.f32.mrf.mxu0
        %3024 = vdwg.mxu0
        %v3025 = vld [vmem:[%s15 + $0x30] ss:$0 sm:$0xff]
        %v3026 = vld [vmem:[%s15 + $0x31] ss:$0 sm:$0xff]
        %v3027 = vmul.f32 %v3011, %v3025
        %v3028 = vmul.f32 %v3014, %v3025
        %v3029 = vmul.f32 %v3019, %v3025
        %v3030 = vmul.f32 %v3022, %v3025
        %v3031 = vadd.f32 %v3027, %v3026
        %v3032 = vadd.f32 %v3028, %v3026
        %v3033 = vadd.f32 %v3029, %v3026
        %v3034 = vadd.f32 %v3030, %v3026
        %v3035 = vmax.f32 %v3031, 0.0
        %v3036 = vmax.f32 %v3032, 0.0
        %v3037 = vmax.f32 %v3033, 0.0
        %v3038 = vmax.f32 %v3034, 0.0
        %v3039 = vld [vmem:[%s15 + $0x7] ss:$0 sm:$0xff]
        %v3040 = vpack.c.bf16 %v3036, %v3035
        %v3041 = vpack.c.bf16 %v3038, %v3037
        %v3042 = vld [vmem:[%s4] sm:$0xf]
        %v3043 = vld [vmem:[%s4 + $0x4] sm:$0xf]
        %v3044 = vld [vmem:[%s4 + $0x8] sm:$0xf]
        %v3045 = vld [vmem:[%s4 + $0xc] sm:$0xf]
        %v3046 = vld [vmem:[%s4 + $0x10] sm:$0xf]
        %v3047 = vld [vmem:[%s4 + $0x14] sm:$0xf]
        %v3048 = vld [vmem:[%s4 + $0x18] sm:$0xf]
        %v3049 = vld [vmem:[%s4 + $0x1c] sm:$0xf]
        %v3050 = vld [vmem:[%s4 + $0x20] sm:$0xf]
        %v3051 = vld [vmem:[%s4 + $0x24] sm:$0xf]
        %v3052 = vld [vmem:[%s4 + $0x28] sm:$0xf]
        %v3053 = vld [vmem:[%s4 + $0x2c] sm:$0xf]
        %v3054 = vld [vmem:[%s4 + $0x30] sm:$0xf]
        %v3055 = vld [vmem:[%s4 + $0x34] sm:$0xf]
        %v3056 = vld [vmem:[%s4 + $0x38] sm:$0xf]
        %v3057 = vld [vmem:[%s4 + $0x3c] sm:$0xf]
        %v3074 = vunpack.c.l.b16 %v3042
        %v3075 = vunpack.c.l.b16 %v3043
        %v3076 = vunpack.c.l.b16 %v3044
        %v3077 = vunpack.c.l.b16 %v3045
        %v3078 = vunpack.c.l.b16 %v3046
        %v3079 = vunpack.c.l.b16 %v3047
        %v3080 = vunpack.c.l.b16 %v3048
        %v3081 = vunpack.c.l.b16 %v3049
        %v3082 = vunpack.c.l.b16 %v3050
        %v3083 = vunpack.c.l.b16 %v3051
        %v3084 = vunpack.c.l.b16 %v3052
        %v3085 = vunpack.c.l.b16 %v3053
        %v3086 = vunpack.c.l.b16 %v3054
        %v3087 = vunpack.c.l.b16 %v3055
        %v3088 = vunpack.c.l.b16 %v3056
        %v3089 = vunpack.c.l.b16 %v3057
        %v3090 = vpack.c.b16 %v3075, %v3074
        %v3091 = vpack.c.b16 %v3077, %v3076
        %v3092 = vpack.c.b16 %v3079, %v3078
        %v3093 = vpack.c.b16 %v3081, %v3080
        %v3094 = vpack.c.b16 %v3083, %v3082
        %v3095 = vpack.c.b16 %v3085, %v3084
        %v3096 = vpack.c.b16 %v3087, %v3086
        %v3097 = vpack.c.b16 %v3089, %v3088
        %3106 = vmatprep.subr.bf16.mxu0 0
        %3107 = vmatpush1.bf16.msra.mxu0 %v3097
        %3108 = vmatprep.subr.bf16.mxu0 0
        %3109 = vmatpush1.bf16.msra.mxu0 %v3096
        %3110 = vmatprep.subr.bf16.mxu0 0
        %3111 = vmatpush1.bf16.msra.mxu0 %v3095
        %3112 = vmatprep.subr.bf16.mxu0 0
        %3113 = vmatpush1.bf16.msra.mxu0 %v3094
        %3114 = vmatprep.subr.bf16.mxu0 0
        %3115 = vmatpush1.bf16.msra.mxu0 %v3093
        %3116 = vmatprep.subr.bf16.mxu0 0
        %3117 = vmatpush1.bf16.msra.mxu0 %v3092
        %3118 = vmatprep.subr.bf16.mxu0 0
        %3119 = vmatpush1.bf16.msra.mxu0 %v3091
        %3120 = vmatprep.subr.bf16.mxu0 0
        %3121 = vmatpush1.bf16.msra.mxu0 %v3090
        %3122 = vmatprep.subr.bf16.mxu0 0
        %3123 = vmatpush2.bf16.msra.mxu0 0
        %3124 = vmatprep.subr.bf16.mxu0 0
        %3125 = vmatpush2.bf16.msra.mxu0 0
        %3126 = vmatprep.subr.bf16.mxu0 0
        %3127 = vmatpush2.bf16.msra.mxu0 0
        %3128 = vmatprep.subr.bf16.mxu0 0
        %3129 = vmatpush2.bf16.msra.mxu0 0
        %3130 = vmatprep.subr.bf16.mxu0 0
        %3131 = vmatpush2.bf16.msra.mxu0 0
        %3132 = vmatprep.subr.bf16.mxu0 0
        %3133 = vmatpush2.bf16.msra.mxu0 0
        %3134 = vmatprep.subr.bf16.mxu0 0
        %3135 = vmatpush2.bf16.msra.mxu0 0
        %3136 = vmatprep.subr.bf16.mxu0 0
        %3137 = vmatpush2.bf16.msra.mxu0 0
        %3138 = vmatprep.mubr.bf16.mxu0 0
        %3139 = vmatmul.mubr.bf16.gmra.mxu0 %v3040
        %v3140 = vpop.f32.mrf.mxu0
        %v3141 = vadd.f32 %v3039, %v3140
        %v3142 = vpop.f32.mrf.mxu0
        %v3143 = vpop.f32.mrf.mxu0
        %v3144 = vadd.f32 %v3039, %v3143
        %v3145 = vpop.f32.mrf.mxu0
        %3146 = vmatprep.mubr.bf16.mxu0 0
        %3147 = vmatmul.mubr.bf16.gmra.mxu0 %v3041
        %v3148 = vpop.f32.mrf.mxu0
        %v3149 = vadd.f32 %v3039, %v3148
        %v3150 = vpop.f32.mrf.mxu0
        %v3151 = vpop.f32.mrf.mxu0
        %v3152 = vadd.f32 %v3039, %v3151
        %v3153 = vpop.f32.mrf.mxu0
        %3154 = vdwg.mxu0
        %v3155 = vld [vmem:[%s15 + $0x33] ss:$0 sm:$0xff]
        %v3156 = vld [vmem:[%s15 + $0x34] ss:$0 sm:$0xff]
        %v3157 = vmul.f32 %v3141, %v3155
        %v3158 = vmul.f32 %v3144, %v3155
        %v3159 = vmul.f32 %v3149, %v3155
        %v3160 = vmul.f32 %v3152, %v3155
        %v3161 = vadd.f32 %v3157, %v3156
        %v3162 = vadd.f32 %v3158, %v3156
        %v3163 = vadd.f32 %v3159, %v3156
        %v3164 = vadd.f32 %v3160, %v3156
        %v3165 = vmax.f32 %v3161, 0.0
        %v3166 = vmax.f32 %v3162, 0.0
        %v3167 = vmax.f32 %v3163, 0.0
        %v3168 = vmax.f32 %v3164, 0.0
        %v3169 = vld [vmem:[%s15 + $0x32] ss:$0 sm:$0xff]
        %v3170 = vpack.c.bf16 %v3166, %v3165
        %v3171 = vpack.c.bf16 %v3168, %v3167
        %v3172 = vld [vmem:[%s5] sm:$0xf]
        %v3173 = vld [vmem:[%s5 + $0x4] sm:$0xf]
        %v3174 = vld [vmem:[%s5 + $0x8] sm:$0xf]
        %v3175 = vld [vmem:[%s5 + $0xc] sm:$0xf]
        %v3176 = vld [vmem:[%s5 + $0x10] sm:$0xf]
        %v3177 = vld [vmem:[%s5 + $0x14] sm:$0xf]
        %v3178 = vld [vmem:[%s5 + $0x18] sm:$0xf]
        %v3179 = vld [vmem:[%s5 + $0x1c] sm:$0xf]
        %v3188 = vunpack.c.l.b16 %v3172
        %v3189 = vunpack.c.l.b16 %v3173
        %v3190 = vunpack.c.l.b16 %v3174
        %v3191 = vunpack.c.l.b16 %v3175
        %v3192 = vunpack.c.l.b16 %v3176
        %v3193 = vunpack.c.l.b16 %v3177
        %v3194 = vunpack.c.l.b16 %v3178
        %v3195 = vunpack.c.l.b16 %v3179
        %v3196 = vpack.c.b16 %v3189, %v3188
        %v3197 = vpack.c.b16 %v3191, %v3190
        %v3198 = vpack.c.b16 %v3193, %v3192
        %v3199 = vpack.c.b16 %v3195, %v3194
        %vm3204 = vcmask 523264
        %v3206 = vsel %vm3204, %v3170, 0
        %v3209 = vsel %vm3204, %v3171, 0
        %3211 = vmatprep.subr.bf16.mxu0 0
        %3212 = vmatpush1.bf16.msra.mxu0 0
        %3213 = vmatprep.subr.bf16.mxu0 0
        %3214 = vmatpush1.bf16.msra.mxu0 0
        %3215 = vmatprep.subr.bf16.mxu0 0
        %3216 = vmatpush1.bf16.msra.mxu0 0
        %3217 = vmatprep.subr.bf16.mxu0 0
        %3218 = vmatpush1.bf16.msra.mxu0 0
        %3219 = vmatprep.subr.bf16.mxu0 0
        %3220 = vmatpush1.bf16.msra.mxu0 %v3199
        %3221 = vmatprep.subr.bf16.mxu0 0
        %3222 = vmatpush1.bf16.msra.mxu0 %v3198
        %3223 = vmatprep.subr.bf16.mxu0 0
        %3224 = vmatpush1.bf16.msra.mxu0 %v3197
        %3225 = vmatprep.subr.bf16.mxu0 0
        %3226 = vmatpush1.bf16.msra.mxu0 %v3196
        %3227 = vmatprep.subr.bf16.mxu0 0
        %3228 = vmatpush2.bf16.msra.mxu0 0
        %3229 = vmatprep.subr.bf16.mxu0 0
        %3230 = vmatpush2.bf16.msra.mxu0 0
        %3231 = vmatprep.subr.bf16.mxu0 0
        %3232 = vmatpush2.bf16.msra.mxu0 0
        %3233 = vmatprep.subr.bf16.mxu0 0
        %3234 = vmatpush2.bf16.msra.mxu0 0
        %3235 = vmatprep.subr.bf16.mxu0 0
        %3236 = vmatpush2.bf16.msra.mxu0 0
        %3237 = vmatprep.subr.bf16.mxu0 0
        %3238 = vmatpush2.bf16.msra.mxu0 0
        %3239 = vmatprep.subr.bf16.mxu0 0
        %3240 = vmatpush2.bf16.msra.mxu0 0
        %3241 = vmatprep.subr.bf16.mxu0 0
        %3242 = vmatpush2.bf16.msra.mxu0 0
        %3243 = vmatprep.mubr.bf16.mxu0 0
        %3244 = vmatmul.mubr.bf16.gmra.mxu0 %v3206
        %v3245 = vpop.f32.mrf.mxu0
        %v3246 = vadd.f32 %v3169, %v3245
        %v3247 = vpop.f32.mrf.mxu0
        %v3248 = vpop.f32.mrf.mxu0
        %v3249 = vadd.f32 %v3169, %v3248
        %v3250 = vpop.f32.mrf.mxu0
        %3251 = vmatprep.mubr.bf16.mxu0 0
        %3252 = vmatmul.mubr.bf16.gmra.mxu0 %v3209
        %v3253 = vpop.f32.mrf.mxu0
        %v3254 = vadd.f32 %v3169, %v3253
        %v3255 = vpop.f32.mrf.mxu0
        %v3256 = vpop.f32.mrf.mxu0
        %v3257 = vadd.f32 %v3169, %v3256
        %v3258 = vpop.f32.mrf.mxu0
        %3259 = vdwg.mxu0
        %v3260 = vld [vmem:[%s15 + $0x36] ss:$0 sm:$0xff]
        %v3261 = vld [vmem:[%s15 + $0x37] ss:$0 sm:$0xff]
        %v3262 = vmul.f32 %v3246, %v3260
        %v3263 = vmul.f32 %v3249, %v3260
        %v3264 = vmul.f32 %v3254, %v3260
        %v3265 = vmul.f32 %v3257, %v3260
        %v3266 = vadd.f32 %v3262, %v3261
        %v3267 = vadd.f32 %v3263, %v3261
        %v3268 = vadd.f32 %v3264, %v3261
        %v3269 = vadd.f32 %v3265, %v3261
        %v3270 = vmax.f32 %v3266, 0.0
        %v3271 = vmax.f32 %v3267, 0.0
        %v3272 = vmax.f32 %v3268, 0.0
        %v3273 = vmax.f32 %v3269, 0.0
        %v3274 = vld [vmem:[%s15 + $0x35] ss:$0 sm:$0xff]
        %v3275 = vpack.c.bf16 %v3271, %v3270
        %v3276 = vpack.c.bf16 %v3273, %v3272
        %v3277 = vld [vmem:[%s6] sm:$0xf]
        %v3278 = vld [vmem:[%s6 + $0x4] sm:$0xf]
        %v3279 = vld [vmem:[%s6 + $0x8] sm:$0xf]
        %v3280 = vld [vmem:[%s6 + $0xc] sm:$0xf]
        %v3285 = vunpack.c.l.b16 %v3277
        %v3286 = vunpack.c.l.b16 %v3278
        %v3287 = vunpack.c.l.b16 %v3279
        %v3288 = vunpack.c.l.b16 %v3280
        %v3289 = vpack.c.b16 %v3286, %v3285
        %v3290 = vpack.c.b16 %v3288, %v3287
        %vm3293 = vcmask 261120
        %v3295 = vsel %vm3293, %v3275, 0
        %v3298 = vsel %vm3293, %v3276, 0
        %3300 = vmatprep.subr.bf16.mxu0 0
        %3301 = vmatpush1.bf16.msra.mxu0 0
        %3302 = vmatprep.subr.bf16.mxu0 0
        %3303 = vmatpush1.bf16.msra.mxu0 0
        %3304 = vmatprep.subr.bf16.mxu0 0
        %3305 = vmatpush1.bf16.msra.mxu0 0
        %3306 = vmatprep.subr.bf16.mxu0 0
        %3307 = vmatpush1.bf16.msra.mxu0 0
        %3308 = vmatprep.subr.bf16.mxu0 0
        %3309 = vmatpush1.bf16.msra.mxu0 0
        %3310 = vmatprep.subr.bf16.mxu0 0
        %3311 = vmatpush1.bf16.msra.mxu0 0
        %3312 = vmatprep.subr.bf16.mxu0 0
        %3313 = vmatpush1.bf16.msra.mxu0 %v3290
        %3314 = vmatprep.subr.bf16.mxu0 0
        %3315 = vmatpush1.bf16.msra.mxu0 %v3289
        %3316 = vmatprep.subr.bf16.mxu0 0
        %3317 = vmatpush2.bf16.msra.mxu0 0
        %3318 = vmatprep.subr.bf16.mxu0 0
        %3319 = vmatpush2.bf16.msra.mxu0 0
        %3320 = vmatprep.subr.bf16.mxu0 0
        %3321 = vmatpush2.bf16.msra.mxu0 0
        %3322 = vmatprep.subr.bf16.mxu0 0
        %3323 = vmatpush2.bf16.msra.mxu0 0
        %3324 = vmatprep.subr.bf16.mxu0 0
        %3325 = vmatpush2.bf16.msra.mxu0 0
        %3326 = vmatprep.subr.bf16.mxu0 0
        %3327 = vmatpush2.bf16.msra.mxu0 0
        %3328 = vmatprep.subr.bf16.mxu0 0
        %3329 = vmatpush2.bf16.msra.mxu0 0
        %3330 = vmatprep.subr.bf16.mxu0 0
        %3331 = vmatpush2.bf16.msra.mxu0 0
        %3332 = vmatprep.mubr.bf16.mxu0 0
        %3333 = vmatmul.mubr.bf16.gmra.mxu0 %v3295
        %v3334 = vpop.f32.mrf.mxu0
        %v3335 = vadd.f32 %v3274, %v3334
        %v3336 = vpop.f32.mrf.mxu0
        %v3337 = vpop.f32.mrf.mxu0
        %v3338 = vadd.f32 %v3274, %v3337
        %v3339 = vpop.f32.mrf.mxu0
        %3340 = vmatprep.mubr.bf16.mxu0 0
        %3341 = vmatmul.mubr.bf16.gmra.mxu0 %v3298
        %v3342 = vpop.f32.mrf.mxu0
        %v3343 = vadd.f32 %v3274, %v3342
        %v3344 = vpop.f32.mrf.mxu0
        %v3345 = vpop.f32.mrf.mxu0
        %v3346 = vadd.f32 %v3274, %v3345
        %v3347 = vpop.f32.mrf.mxu0
        %3348 = vdwg.mxu0
        %v3349 = vld [vmem:[%s15 + $0x61] ss:$0 sm:$0xff]
        %v3350 = vld [vmem:[%s15 + $0x62] ss:$0 sm:$0xff]
        %v3351 = vmul.f32 %v3335, %v3349
        %v3352 = vmul.f32 %v3338, %v3349
        %v3353 = vmul.f32 %v3343, %v3349
        %v3354 = vmul.f32 %v3346, %v3349
        %v3355 = vadd.f32 %v3351, %v3350
        %v3356 = vadd.f32 %v3352, %v3350
        %v3357 = vadd.f32 %v3353, %v3350
        %v3358 = vadd.f32 %v3354, %v3350
        %v3359 = vmax.f32 %v3355, 0.0
        %v3360 = vmax.f32 %v3356, 0.0
        %v3361 = vmax.f32 %v3357, 0.0
        %v3362 = vmax.f32 %v3358, 0.0
        %v3363 = vld [vmem:[%s15 + $0x60] ss:$0 sm:$0xff]
        %v3364 = vpack.c.bf16 %v3360, %v3359
        %v3365 = vpack.c.bf16 %v3362, %v3361
        %v3366 = vld [vmem:[%s7] sm:$0xf]
        %v3367 = vld [vmem:[%s7 + $0x4] sm:$0xf]
        %v3370 = vunpack.c.l.b16 %v3366
        %v3371 = vunpack.c.l.b16 %v3367
        %v3372 = vpack.c.b16 %v3371, %v3370
        %vm3374 = vcmask 130048
        %v3376 = vsel %vm3374, %v3364, 0
        %v3379 = vsel %vm3374, %v3365, 0
        %3381 = vmatprep.subr.bf16.mxu0 0
        %3382 = vmatpush1.bf16.msra.mxu0 0
        %3383 = vmatprep.subr.bf16.mxu0 0
        %3384 = vmatpush1.bf16.msra.mxu0 0
        %3385 = vmatprep.subr.bf16.mxu0 0
        %3386 = vmatpush1.bf16.msra.mxu0 0
        %3387 = vmatprep.subr.bf16.mxu0 0
        %3388 = vmatpush1.bf16.msra.mxu0 0
        %3389 = vmatprep.subr.bf16.mxu0 0
        %3390 = vmatpush1.bf16.msra.mxu0 0
        %3391 = vmatprep.subr.bf16.mxu0 0
        %3392 = vmatpush1.bf16.msra.mxu0 0
        %3393 = vmatprep.subr.bf16.mxu0 0
        %3394 = vmatpush1.bf16.msra.mxu0 0
        %3395 = vmatprep.subr.bf16.mxu0 0
        %3396 = vmatpush1.bf16.msra.mxu0 %v3372
        %3397 = vmatprep.subr.bf16.mxu0 0
        %3398 = vmatpush2.bf16.msra.mxu0 0
        %3399 = vmatprep.subr.bf16.mxu0 0
        %3400 = vmatpush2.bf16.msra.mxu0 0
        %3401 = vmatprep.subr.bf16.mxu0 0
        %3402 = vmatpush2.bf16.msra.mxu0 0
        %3403 = vmatprep.subr.bf16.mxu0 0
        %3404 = vmatpush2.bf16.msra.mxu0 0
        %3405 = vmatprep.subr.bf16.mxu0 0
        %3406 = vmatpush2.bf16.msra.mxu0 0
        %3407 = vmatprep.subr.bf16.mxu0 0
        %3408 = vmatpush2.bf16.msra.mxu0 0
        %3409 = vmatprep.subr.bf16.mxu0 0
        %3410 = vmatpush2.bf16.msra.mxu0 0
        %3411 = vmatprep.subr.bf16.mxu0 0
        %3412 = vmatpush2.bf16.msra.mxu0 0
        %3413 = vmatprep.mubr.bf16.mxu0 0
        %3414 = vmatmul.mubr.bf16.gmra.mxu0 %v3376
        %v3415 = vpop.f32.mrf.mxu0
        %v3416 = vadd.f32 %v3363, %v3415
        %v3417 = vpop.f32.mrf.mxu0
        %v3418 = vpop.f32.mrf.mxu0
        %v3419 = vadd.f32 %v3363, %v3418
        %v3420 = vpop.f32.mrf.mxu0
        %3421 = vmatprep.mubr.bf16.mxu0 0
        %3422 = vmatmul.mubr.bf16.gmra.mxu0 %v3379
        %v3423 = vpop.f32.mrf.mxu0
        %v3424 = vadd.f32 %v3363, %v3423
        %v3425 = vpop.f32.mrf.mxu0
        %v3426 = vpop.f32.mrf.mxu0
        %v3427 = vadd.f32 %v3363, %v3426
        %v3428 = vpop.f32.mrf.mxu0
        %3429 = vdwg.mxu0
        %v3430 = vmul.f32 %v3416, %v3416
        %v3431 = vmul.f32 %v3419, %v3419
        %v3432 = vmul.f32 %v3424, %v3424
        %v3433 = vmul.f32 %v3427, %v3427
        %vm3434 = vcmask 23552
        %v3435 = vsel %vm3434, %v3430, 0.0
        %3436 = vadd.xlane.f32.xlu0 %v3435
        %v3437 = vpop.xlane.xlu0 %3436
        %v3438 = vsel %vm3434, %v3431, 0.0
        %3439 = vadd.xlane.f32.xlu0 %v3438
        %v3440 = vpop.xlane.xlu0 %3439
        %v3441 = vsel %vm3434, %v3432, 0.0
        %3442 = vadd.xlane.f32.xlu0 %v3441
        %v3443 = vpop.xlane.xlu0 %3442
        %v3444 = vsel %vm3434, %v3433, 0.0
        %3445 = vadd.xlane.f32.xlu0 %v3444
        %v3446 = vpop.xlane.xlu0 %3445
        %v3447 = vadd.f32 %v3437, 1e-24
        %v3448 = vadd.f32 %v3440, 1e-24
        %v3449 = vadd.f32 %v3443, 1e-24
        %v3450 = vadd.f32 %v3446, 1e-24
        %v3451 = vrsqrt.pop %v3447
        %v3452 = vrsqrt.pop %v3448
        %v3453 = vrsqrt.pop %v3449
        %v3454 = vrsqrt.pop %v3450
        %v3455 = vmul.f32 %v3416, %v3451
        %v3456 = vmul.f32 %v3419, %v3452
        %v3457 = vmul.f32 %v3424, %v3453
        %v3458 = vmul.f32 %v3427, %v3454
        %v3459 = vld [vmem:[%s15 + $0x63] ss:$0 sm:$0xff]
        %v3460 = vpack.c.bf16 %v3456, %v3455
        %v3461 = vpack.c.bf16 %v3458, %v3457
        %v3462 = vld [vmem:[%s8] sm:$0x3]
        %v3464 = vsel %vm3434, %v3460, 0
        %v3467 = vsel %vm3434, %v3461, 0
        %vm3469 = vcmask 1040384
        %vm3470 = vcmask 1041408
        %v3471 = vsel %vm3469, 4294967295, 65535
        %v3472 = vsel %vm3470, %v3471, 0
        %v3474 = vand.u32 %v3462, %v3472
        %3476 = vmatprep.subr.bf16.mxu0 0
        %3477 = vmatpush1.bf16.msra.mxu0 0
        %3478 = vmatprep.subr.bf16.mxu0 0
        %3479 = vmatpush1.bf16.msra.mxu0 0
        %3480 = vmatprep.subr.bf16.mxu0 0
        %3481 = vmatpush1.bf16.msra.mxu0 0
        %3482 = vmatprep.subr.bf16.mxu0 0
        %3483 = vmatpush1.bf16.msra.mxu0 0
        %3484 = vmatprep.subr.bf16.mxu0 0
        %3485 = vmatpush1.bf16.msra.mxu0 0
        %3486 = vmatprep.subr.bf16.mxu0 0
        %3487 = vmatpush1.bf16.msra.mxu0 0
        %3488 = vmatprep.subr.bf16.mxu0 0
        %3489 = vmatpush1.bf16.msra.mxu0 0
        %3490 = vmatprep.subr.bf16.mxu0 0
        %3491 = vmatpush1.bf16.msra.mxu0 %v3474
        %3492 = vmatprep.subr.bf16.mxu0 0
        %3493 = vmatpush2.bf16.msra.mxu0 0
        %3494 = vmatprep.subr.bf16.mxu0 0
        %3495 = vmatpush2.bf16.msra.mxu0 0
        %3496 = vmatprep.subr.bf16.mxu0 0
        %3497 = vmatpush2.bf16.msra.mxu0 0
        %3498 = vmatprep.subr.bf16.mxu0 0
        %3499 = vmatpush2.bf16.msra.mxu0 0
        %3500 = vmatprep.subr.bf16.mxu0 0
        %3501 = vmatpush2.bf16.msra.mxu0 0
        %3502 = vmatprep.subr.bf16.mxu0 0
        %3503 = vmatpush2.bf16.msra.mxu0 0
        %3504 = vmatprep.subr.bf16.mxu0 0
        %3505 = vmatpush2.bf16.msra.mxu0 0
        %3506 = vmatprep.subr.bf16.mxu0 0
        %3507 = vmatpush2.bf16.msra.mxu0 0
        %3508 = vmatprep.mubr.bf16.mxu0 0
        %3509 = vmatmul.mubr.bf16.gmra.mxu0 %v3464
        %v3510 = vpop.f32.mrf.mxu0
        %v3511 = vadd.f32 %v3459, %v3510
        %v3512 = vpop.f32.mrf.mxu0
        %v3513 = vpop.f32.mrf.mxu0
        %v3514 = vadd.f32 %v3459, %v3513
        %v3515 = vpop.f32.mrf.mxu0
        %3516 = vmatprep.mubr.bf16.mxu0 0
        %3517 = vmatmul.mubr.bf16.gmra.mxu0 %v3467
        %v3518 = vpop.f32.mrf.mxu0
        %v3519 = vadd.f32 %v3459, %v3518
        %v3520 = vpop.f32.mrf.mxu0
        %v3521 = vpop.f32.mrf.mxu0
        %v3522 = vadd.f32 %v3459, %v3521
        %v3523 = vpop.f32.mrf.mxu0
        %3524 = vdwg.mxu0
        %v3525 = vmax.f32 %v3511, 0.0
        %v3526 = vmax.f32 %v3514, 0.0
        %v3527 = vmax.f32 %v3519, 0.0
        %v3528 = vmax.f32 %v3522, 0.0
        %v3529 = vld [vmem:[%s15 + $0x64] ss:$0 sm:$0xff]
        %v3530 = vpack.c.bf16 %v3526, %v3525
        %v3531 = vpack.c.bf16 %v3528, %v3527
        %v3532 = vld [vmem:[%s9] sm:$0xf]
        %v3533 = vld [vmem:[%s9 + $0x4] sm:$0xf]
        %v3536 = vunpack.c.l.b16 %v3532
        %v3537 = vunpack.c.l.b16 %v3533
        %v3538 = vpack.c.b16 %v3537, %v3536
        %v3541 = vsel %vm3374, %v3530, 0
        %v3544 = vsel %vm3374, %v3531, 0
        %3546 = vmatprep.subr.bf16.mxu0 0
        %3547 = vmatpush1.bf16.msra.mxu0 0
        %3548 = vmatprep.subr.bf16.mxu0 0
        %3549 = vmatpush1.bf16.msra.mxu0 0
        %3550 = vmatprep.subr.bf16.mxu0 0
        %3551 = vmatpush1.bf16.msra.mxu0 0
        %3552 = vmatprep.subr.bf16.mxu0 0
        %3553 = vmatpush1.bf16.msra.mxu0 0
        %3554 = vmatprep.subr.bf16.mxu0 0
        %3555 = vmatpush1.bf16.msra.mxu0 0
        %3556 = vmatprep.subr.bf16.mxu0 0
        %3557 = vmatpush1.bf16.msra.mxu0 0
        %3558 = vmatprep.subr.bf16.mxu0 0
        %3559 = vmatpush1.bf16.msra.mxu0 0
        %3560 = vmatprep.subr.bf16.mxu0 0
        %3561 = vmatpush1.bf16.msra.mxu0 %v3538
        %3562 = vmatprep.subr.bf16.mxu0 0
        %3563 = vmatpush2.bf16.msra.mxu0 0
        %3564 = vmatprep.subr.bf16.mxu0 0
        %3565 = vmatpush2.bf16.msra.mxu0 0
        %3566 = vmatprep.subr.bf16.mxu0 0
        %3567 = vmatpush2.bf16.msra.mxu0 0
        %3568 = vmatprep.subr.bf16.mxu0 0
        %3569 = vmatpush2.bf16.msra.mxu0 0
        %3570 = vmatprep.subr.bf16.mxu0 0
        %3571 = vmatpush2.bf16.msra.mxu0 0
        %3572 = vmatprep.subr.bf16.mxu0 0
        %3573 = vmatpush2.bf16.msra.mxu0 0
        %3574 = vmatprep.subr.bf16.mxu0 0
        %3575 = vmatpush2.bf16.msra.mxu0 0
        %3576 = vmatprep.subr.bf16.mxu0 0
        %3577 = vmatpush2.bf16.msra.mxu0 0
        %3578 = vmatprep.mubr.bf16.mxu0 0
        %3579 = vmatmul.mubr.bf16.gmra.mxu0 %v3541
        %v3580 = vpop.f32.mrf.mxu0
        %v3581 = vadd.f32 %v3529, %v3580
        %v3582 = vpop.f32.mrf.mxu0
        %v3583 = vpop.f32.mrf.mxu0
        %v3584 = vadd.f32 %v3529, %v3583
        %v3585 = vpop.f32.mrf.mxu0
        %3586 = vmatprep.mubr.bf16.mxu0 0
        %3587 = vmatmul.mubr.bf16.gmra.mxu0 %v3544
        %v3588 = vpop.f32.mrf.mxu0
        %v3589 = vadd.f32 %v3529, %v3588
        %v3590 = vpop.f32.mrf.mxu0
        %v3591 = vpop.f32.mrf.mxu0
        %v3592 = vadd.f32 %v3529, %v3591
        %v3593 = vpop.f32.mrf.mxu0
        %3594 = vdwg.mxu0
        %v3595 = vmax.f32 %v3581, 0.0
        %v3596 = vmax.f32 %v3584, 0.0
        %v3597 = vmax.f32 %v3589, 0.0
        %v3598 = vmax.f32 %v3592, 0.0
        %v3599 = vld [vmem:[%s15 + $0x65] ss:$0 sm:$0xff]
        %v3600 = vpack.c.bf16 %v3596, %v3595
        %v3601 = vpack.c.bf16 %v3598, %v3597
        %v3602 = vld [vmem:[#allocation10] sm:$0xf]
        %v3603 = vld [vmem:[#allocation10 + $0x4] sm:$0xf]
        %v3604 = vld [vmem:[#allocation10 + $0x8] sm:$0xf]
        %v3605 = vld [vmem:[#allocation10 + $0xc] sm:$0xf]
        %v3610 = vunpack.c.l.b16 %v3602
        %v3611 = vunpack.c.l.b16 %v3603
        %v3612 = vunpack.c.l.b16 %v3604
        %v3613 = vunpack.c.l.b16 %v3605
        %v3614 = vpack.c.b16 %v3611, %v3610
        %v3615 = vpack.c.b16 %v3613, %v3612
        %v3619 = vsel %vm3293, %v3600, 0
        %v3622 = vsel %vm3293, %v3601, 0
        %3624 = vmatprep.subr.bf16.mxu0 0
        %3625 = vmatpush1.bf16.msra.mxu0 0
        %3626 = vmatprep.subr.bf16.mxu0 0
        %3627 = vmatpush1.bf16.msra.mxu0 0
        %3628 = vmatprep.subr.bf16.mxu0 0
        %3629 = vmatpush1.bf16.msra.mxu0 0
        %3630 = vmatprep.subr.bf16.mxu0 0
        %3631 = vmatpush1.bf16.msra.mxu0 0
        %3632 = vmatprep.subr.bf16.mxu0 0
        %3633 = vmatpush1.bf16.msra.mxu0 0
        %3634 = vmatprep.subr.bf16.mxu0 0
        %3635 = vmatpush1.bf16.msra.mxu0 0
        %3636 = vmatprep.subr.bf16.mxu0 0
        %3637 = vmatpush1.bf16.msra.mxu0 %v3615
        %3638 = vmatprep.subr.bf16.mxu0 0
        %3639 = vmatpush1.bf16.msra.mxu0 %v3614
        %3640 = vmatprep.subr.bf16.mxu0 0
        %3641 = vmatpush2.bf16.msra.mxu0 0
        %3642 = vmatprep.subr.bf16.mxu0 0
        %3643 = vmatpush2.bf16.msra.mxu0 0
        %3644 = vmatprep.subr.bf16.mxu0 0
        %3645 = vmatpush2.bf16.msra.mxu0 0
        %3646 = vmatprep.subr.bf16.mxu0 0
        %3647 = vmatpush2.bf16.msra.mxu0 0
        %3648 = vmatprep.subr.bf16.mxu0 0
        %3649 = vmatpush2.bf16.msra.mxu0 0
        %3650 = vmatprep.subr.bf16.mxu0 0
        %3651 = vmatpush2.bf16.msra.mxu0 0
        %3652 = vmatprep.subr.bf16.mxu0 0
        %3653 = vmatpush2.bf16.msra.mxu0 0
        %3654 = vmatprep.subr.bf16.mxu0 0
        %3655 = vmatpush2.bf16.msra.mxu0 0
        %3656 = vmatprep.mubr.bf16.mxu0 0
        %3657 = vmatmul.mubr.bf16.gmra.mxu0 %v3619
        %v3658 = vpop.f32.mrf.mxu0
        %v3659 = vadd.f32 %v3599, %v3658
        %v3660 = vpop.f32.mrf.mxu0
        %v3661 = vpop.f32.mrf.mxu0
        %v3662 = vadd.f32 %v3599, %v3661
        %v3663 = vpop.f32.mrf.mxu0
        %3664 = vmatprep.mubr.bf16.mxu0 0
        %3665 = vmatmul.mubr.bf16.gmra.mxu0 %v3622
        %v3666 = vpop.f32.mrf.mxu0
        %v3667 = vadd.f32 %v3599, %v3666
        %v3668 = vpop.f32.mrf.mxu0
        %v3669 = vpop.f32.mrf.mxu0
        %v3670 = vadd.f32 %v3599, %v3669
        %v3671 = vpop.f32.mrf.mxu0
        %3672 = vdwg.mxu0
        %v3673 = vmax.f32 %v3659, 0.0
        %v3674 = vmax.f32 %v3662, 0.0
        %v3675 = vmax.f32 %v3667, 0.0
        %v3676 = vmax.f32 %v3670, 0.0
        %v3677 = vld [vmem:[%s15 + $0x66] ss:$0 sm:$0xff]
        %v3678 = vpack.c.bf16 %v3674, %v3673
        %v3679 = vpack.c.bf16 %v3676, %v3675
        %v3680 = vld [vmem:[#allocation11] sm:$0xf]
        %v3681 = vld [vmem:[#allocation11 + $0x4] sm:$0xf]
        %v3682 = vld [vmem:[#allocation11 + $0x8] sm:$0xf]
        %v3683 = vld [vmem:[#allocation11 + $0xc] sm:$0xf]
        %v3684 = vld [vmem:[#allocation11 + $0x10] sm:$0xf]
        %v3685 = vld [vmem:[#allocation11 + $0x14] sm:$0xf]
        %v3686 = vld [vmem:[#allocation11 + $0x18] sm:$0xf]
        %v3687 = vld [vmem:[#allocation11 + $0x1c] sm:$0xf]
        %v3696 = vunpack.c.l.b16 %v3680
        %v3697 = vunpack.c.l.b16 %v3681
        %v3698 = vunpack.c.l.b16 %v3682
        %v3699 = vunpack.c.l.b16 %v3683
        %v3700 = vunpack.c.l.b16 %v3684
        %v3701 = vunpack.c.l.b16 %v3685
        %v3702 = vunpack.c.l.b16 %v3686
        %v3703 = vunpack.c.l.b16 %v3687
        %v3704 = vpack.c.b16 %v3697, %v3696
        %v3705 = vpack.c.b16 %v3699, %v3698
        %v3706 = vpack.c.b16 %v3701, %v3700
        %v3707 = vpack.c.b16 %v3703, %v3702
        %v3713 = vsel %vm3204, %v3678, 0
        %v3716 = vsel %vm3204, %v3679, 0
        %3718 = vmatprep.subr.bf16.mxu0 0
        %3719 = vmatpush1.bf16.msra.mxu0 0
        %3720 = vmatprep.subr.bf16.mxu0 0
        %3721 = vmatpush1.bf16.msra.mxu0 0
        %3722 = vmatprep.subr.bf16.mxu0 0
        %3723 = vmatpush1.bf16.msra.mxu0 0
        %3724 = vmatprep.subr.bf16.mxu0 0
        %3725 = vmatpush1.bf16.msra.mxu0 0
        %3726 = vmatprep.subr.bf16.mxu0 0
        %3727 = vmatpush1.bf16.msra.mxu0 %v3707
        %3728 = vmatprep.subr.bf16.mxu0 0
        %3729 = vmatpush1.bf16.msra.mxu0 %v3706
        %3730 = vmatprep.subr.bf16.mxu0 0
        %3731 = vmatpush1.bf16.msra.mxu0 %v3705
        %3732 = vmatprep.subr.bf16.mxu0 0
        %3733 = vmatpush1.bf16.msra.mxu0 %v3704
        %3734 = vmatprep.subr.bf16.mxu0 0
        %3735 = vmatpush2.bf16.msra.mxu0 0
        %3736 = vmatprep.subr.bf16.mxu0 0
        %3737 = vmatpush2.bf16.msra.mxu0 0
        %3738 = vmatprep.subr.bf16.mxu0 0
        %3739 = vmatpush2.bf16.msra.mxu0 0
        %3740 = vmatprep.subr.bf16.mxu0 0
        %3741 = vmatpush2.bf16.msra.mxu0 0
        %3742 = vmatprep.subr.bf16.mxu0 0
        %3743 = vmatpush2.bf16.msra.mxu0 0
        %3744 = vmatprep.subr.bf16.mxu0 0
        %3745 = vmatpush2.bf16.msra.mxu0 0
        %3746 = vmatprep.subr.bf16.mxu0 0
        %3747 = vmatpush2.bf16.msra.mxu0 0
        %3748 = vmatprep.subr.bf16.mxu0 0
        %3749 = vmatpush2.bf16.msra.mxu0 0
        %3750 = vmatprep.mubr.bf16.mxu0 0
        %3751 = vmatmul.mubr.bf16.gmra.mxu0 %v3713
        %v3752 = vpop.f32.mrf.mxu0
        %v3753 = vadd.f32 %v3677, %v3752
        %v3754 = vpop.f32.mrf.mxu0
        %v3755 = vpop.f32.mrf.mxu0
        %v3756 = vadd.f32 %v3677, %v3755
        %v3757 = vpop.f32.mrf.mxu0
        %3758 = vmatprep.mubr.bf16.mxu0 0
        %3759 = vmatmul.mubr.bf16.gmra.mxu0 %v3716
        %v3760 = vpop.f32.mrf.mxu0
        %v3761 = vadd.f32 %v3677, %v3760
        %v3762 = vpop.f32.mrf.mxu0
        %v3763 = vpop.f32.mrf.mxu0
        %v3764 = vadd.f32 %v3677, %v3763
        %v3765 = vpop.f32.mrf.mxu0
        %3766 = vdwg.mxu0
        %v3767 = vmax.f32 %v3753, 0.0
        %v3768 = vmax.f32 %v3756, 0.0
        %v3769 = vmax.f32 %v3761, 0.0
        %v3770 = vmax.f32 %v3764, 0.0
        %s3771 = scalar_lea.vmem %s15, 103
        %v3772 = vld [vmem:[%s3771] ss:$8 sm:$0x3]
        %v3773 = vpack.c.bf16 %v3768, %v3767
        %v3774 = vpack.c.bf16 %v3770, %v3769
        %v3775 = vld [vmem:[#allocation13] sm:$0xff]
        %v3776 = vld [vmem:[#allocation13 + $0x8] sm:$0xff]
        %v3777 = vld [vmem:[#allocation13 + $0x10] sm:$0xff]
        %v3778 = vld [vmem:[#allocation13 + $0x18] sm:$0xff]
        %v3779 = vld [vmem:[#allocation13 + $0x20] sm:$0xff]
        %v3780 = vld [vmem:[#allocation13 + $0x28] sm:$0xff]
        %v3781 = vld [vmem:[#allocation13 + $0x30] sm:$0xff]
        %v3782 = vld [vmem:[#allocation13 + $0x38] sm:$0xff]
        %v3783 = vld [vmem:[#allocation13 + $0x40] sm:$0xff]
        %v3784 = vld [vmem:[#allocation13 + $0x48] sm:$0xff]
        %v3785 = vld [vmem:[#allocation13 + $0x50] sm:$0xff]
        %v3786 = vld [vmem:[#allocation13 + $0x58] sm:$0xff]
        %v3787 = vld [vmem:[#allocation13 + $0x60] sm:$0xff]
        %v3788 = vld [vmem:[#allocation13 + $0x68] sm:$0xff]
        %v3789 = vld [vmem:[#allocation13 + $0x70] sm:$0xff]
        %v3790 = vld [vmem:[#allocation13 + $0x78] sm:$0xff]
        %v3792 = vlaneseq
        %v3793 = vshrl.u32 %v3792, 7
        %v3794 = vsub.s32 0, %v3793
        %v3795 = vrot.slane %v3772, %v3794
        %v3796 = vlaneseq
        %v3797 = vshrl.u32 %v3796, 7
        %v3798 = vsub.s32 1, %v3797
        %v3799 = vrot.slane %v3772, %v3798
        %v3818 = vunpack.c.l.b16 %v3775
        %v3819 = vunpack.c.h.b16 %v3775
        %v3820 = vunpack.c.l.b16 %v3776
        %v3821 = vunpack.c.h.b16 %v3776
        %v3822 = vunpack.c.l.b16 %v3777
        %v3823 = vunpack.c.h.b16 %v3777
        %v3824 = vunpack.c.l.b16 %v3778
        %v3825 = vunpack.c.h.b16 %v3778
        %v3826 = vunpack.c.l.b16 %v3779
        %v3827 = vunpack.c.h.b16 %v3779
        %v3828 = vunpack.c.l.b16 %v3780
        %v3829 = vunpack.c.h.b16 %v3780
        %v3830 = vunpack.c.l.b16 %v3781
        %v3831 = vunpack.c.h.b16 %v3781
        %v3832 = vunpack.c.l.b16 %v3782
        %v3833 = vunpack.c.h.b16 %v3782
        %v3834 = vunpack.c.l.b16 %v3783
        %v3835 = vunpack.c.h.b16 %v3783
        %v3836 = vunpack.c.l.b16 %v3784
        %v3837 = vunpack.c.h.b16 %v3784
        %v3838 = vunpack.c.l.b16 %v3785
        %v3839 = vunpack.c.h.b16 %v3785
        %v3840 = vunpack.c.l.b16 %v3786
        %v3841 = vunpack.c.h.b16 %v3786
        %v3842 = vunpack.c.l.b16 %v3787
        %v3843 = vunpack.c.h.b16 %v3787
        %v3844 = vunpack.c.l.b16 %v3788
        %v3845 = vunpack.c.h.b16 %v3788
        %v3846 = vunpack.c.l.b16 %v3789
        %v3847 = vunpack.c.h.b16 %v3789
        %v3848 = vunpack.c.l.b16 %v3790
        %v3849 = vunpack.c.h.b16 %v3790
        %v3850 = vpack.c.b16 %v3820, %v3818
        %v3851 = vpack.c.b16 %v3821, %v3819
        %v3852 = vpack.c.b16 %v3824, %v3822
        %v3853 = vpack.c.b16 %v3825, %v3823
        %v3854 = vpack.c.b16 %v3828, %v3826
        %v3855 = vpack.c.b16 %v3829, %v3827
        %v3856 = vpack.c.b16 %v3832, %v3830
        %v3857 = vpack.c.b16 %v3833, %v3831
        %v3858 = vpack.c.b16 %v3836, %v3834
        %v3859 = vpack.c.b16 %v3837, %v3835
        %v3860 = vpack.c.b16 %v3840, %v3838
        %v3861 = vpack.c.b16 %v3841, %v3839
        %v3862 = vpack.c.b16 %v3844, %v3842
        %v3863 = vpack.c.b16 %v3845, %v3843
        %v3864 = vpack.c.b16 %v3848, %v3846
        %v3865 = vpack.c.b16 %v3849, %v3847
        %3882 = vmatprep.subr.bf16.mxu0 %v3865
        %3883 = vmatpush1.bf16.msra.mxu0 %v3864
        %3884 = vmatprep.subr.bf16.mxu0 %v3863
        %3885 = vmatpush1.bf16.msra.mxu0 %v3862
        %3886 = vmatprep.subr.bf16.mxu0 %v3861
        %3887 = vmatpush1.bf16.msra.mxu0 %v3860
        %3888 = vmatprep.subr.bf16.mxu0 %v3859
        %3889 = vmatpush1.bf16.msra.mxu0 %v3858
        %3890 = vmatprep.subr.bf16.mxu0 %v3857
        %3891 = vmatpush1.bf16.msra.mxu0 %v3856
        %3892 = vmatprep.subr.bf16.mxu0 %v3855
        %3893 = vmatpush1.bf16.msra.mxu0 %v3854
        %3894 = vmatprep.subr.bf16.mxu0 %v3853
        %3895 = vmatpush1.bf16.msra.mxu0 %v3852
        %3896 = vmatprep.subr.bf16.mxu0 %v3851
        %3897 = vmatpush1.bf16.msra.mxu0 %v3850
        %3898 = vmatprep.subr.bf16.mxu0 0
        %3899 = vmatpush2.bf16.msra.mxu0 0
        %3900 = vmatprep.subr.bf16.mxu0 0
        %3901 = vmatpush2.bf16.msra.mxu0 0
        %3902 = vmatprep.subr.bf16.mxu0 0
        %3903 = vmatpush2.bf16.msra.mxu0 0
        %3904 = vmatprep.subr.bf16.mxu0 0
        %3905 = vmatpush2.bf16.msra.mxu0 0
        %3906 = vmatprep.subr.bf16.mxu0 0
        %3907 = vmatpush2.bf16.msra.mxu0 0
        %3908 = vmatprep.subr.bf16.mxu0 0
        %3909 = vmatpush2.bf16.msra.mxu0 0
        %3910 = vmatprep.subr.bf16.mxu0 0
        %3911 = vmatpush2.bf16.msra.mxu0 0
        %3912 = vmatprep.subr.bf16.mxu0 0
        %3913 = vmatpush2.bf16.msra.mxu0 0
        %3914 = vmatprep.mubr.bf16.mxu0 0
        %3915 = vmatmul.mubr.bf16.gmra.mxu0 %v3773
        %v3916 = vpop.f32.mrf.mxu0
        %v3917 = vadd.f32 %v3795, %v3916
        %v3918 = vpop.f32.mrf.mxu0
        %v3919 = vadd.f32 %v3799, %v3918
        %v3920 = vpop.f32.mrf.mxu0
        %v3921 = vadd.f32 %v3795, %v3920
        %v3922 = vpop.f32.mrf.mxu0
        %v3923 = vadd.f32 %v3799, %v3922
        %3924 = vmatprep.mubr.bf16.mxu0 0
        %3925 = vmatmul.mubr.bf16.gmra.mxu0 %v3774
        %v3926 = vpop.f32.mrf.mxu0
        %v3927 = vadd.f32 %v3795, %v3926
        %v3928 = vpop.f32.mrf.mxu0
        %v3929 = vadd.f32 %v3799, %v3928
        %v3930 = vpop.f32.mrf.mxu0
        %v3931 = vadd.f32 %v3795, %v3930
        %v3932 = vpop.f32.mrf.mxu0
        %v3933 = vadd.f32 %v3799, %v3932
        %3934 = vdwg.mxu0
        %v3935 = vmax.f32 %v3917, 0.0
        %v3936 = vmax.f32 %v3919, 0.0
        %v3937 = vmax.f32 %v3921, 0.0
        %v3938 = vmax.f32 %v3923, 0.0
        %v3939 = vmax.f32 %v3927, 0.0
        %v3940 = vmax.f32 %v3929, 0.0
        %v3941 = vmax.f32 %v3931, 0.0
        %v3942 = vmax.f32 %v3933, 0.0
        %s3943 = scalar_lea.vmem %s15, 144
        %v3944 = vld [vmem:[%s3943] ss:$8 sm:$0xf]
        %v3945 = vpack.c.bf16 %v3937, %v3935
        %v3946 = vpack.c.bf16 %v3938, %v3936
        %v3947 = vpack.c.bf16 %v3941, %v3939
        %v3948 = vpack.c.bf16 %v3942, %v3940
        %v3949 = vld [vmem:[#allocation14] sm:$0xff]
        %v3950 = vld [vmem:[#allocation14 + $0x8] sm:$0xff]
        %v3951 = vld [vmem:[#allocation14 + $0x10] sm:$0xff]
        %v3952 = vld [vmem:[#allocation14 + $0x18] sm:$0xff]
        %v3953 = vld [vmem:[#allocation14 + $0x20] sm:$0xff]
        %v3954 = vld [vmem:[#allocation14 + $0x28] sm:$0xff]
        %v3955 = vld [vmem:[#allocation14 + $0x30] sm:$0xff]
        %v3956 = vld [vmem:[#allocation14 + $0x38] sm:$0xff]
        %v3957 = vld [vmem:[#allocation14 + $0x40] sm:$0xff]
        %v3958 = vld [vmem:[#allocation14 + $0x48] sm:$0xff]
        %v3959 = vld [vmem:[#allocation14 + $0x50] sm:$0xff]
        %v3960 = vld [vmem:[#allocation14 + $0x58] sm:$0xff]
        %v3961 = vld [vmem:[#allocation14 + $0x60] sm:$0xff]
        %v3962 = vld [vmem:[#allocation14 + $0x68] sm:$0xff]
        %v3963 = vld [vmem:[#allocation14 + $0x70] sm:$0xff]
        %v3964 = vld [vmem:[#allocation14 + $0x78] sm:$0xff]
        %v3965 = vld [vmem:[#allocation14 + $0x80] sm:$0xff]
        %v3966 = vld [vmem:[#allocation14 + $0x88] sm:$0xff]
        %v3967 = vld [vmem:[#allocation14 + $0x90] sm:$0xff]
        %v3968 = vld [vmem:[#allocation14 + $0x98] sm:$0xff]
        %v3969 = vld [vmem:[#allocation14 + $0xa0] sm:$0xff]
        %v3970 = vld [vmem:[#allocation14 + $0xa8] sm:$0xff]
        %v3971 = vld [vmem:[#allocation14 + $0xb0] sm:$0xff]
        %v3972 = vld [vmem:[#allocation14 + $0xb8] sm:$0xff]
        %v3973 = vld [vmem:[#allocation14 + $0xc0] sm:$0xff]
        %v3974 = vld [vmem:[#allocation14 + $0xc8] sm:$0xff]
        %v3975 = vld [vmem:[#allocation14 + $0xd0] sm:$0xff]
        %v3976 = vld [vmem:[#allocation14 + $0xd8] sm:$0xff]
        %v3977 = vld [vmem:[#allocation14 + $0xe0] sm:$0xff]
        %v3978 = vld [vmem:[#allocation14 + $0xe8] sm:$0xff]
        %v3979 = vld [vmem:[#allocation14 + $0xf0] sm:$0xff]
        %v3980 = vld [vmem:[#allocation14 + $0xf8] sm:$0xff]
        %v3981 = vld [vmem:[#allocation14 + $0x100] sm:$0xff]
        %v3982 = vld [vmem:[#allocation14 + $0x108] sm:$0xff]
        %v3983 = vld [vmem:[#allocation14 + $0x110] sm:$0xff]
        %v3984 = vld [vmem:[#allocation14 + $0x118] sm:$0xff]
        %v3985 = vld [vmem:[#allocation14 + $0x120] sm:$0xff]
        %v3986 = vld [vmem:[#allocation14 + $0x128] sm:$0xff]
        %v3987 = vld [vmem:[#allocation14 + $0x130] sm:$0xff]
        %v3988 = vld [vmem:[#allocation14 + $0x138] sm:$0xff]
        %v3989 = vld [vmem:[#allocation14 + $0x140] sm:$0xff]
        %v3990 = vld [vmem:[#allocation14 + $0x148] sm:$0xff]
        %v3991 = vld [vmem:[#allocation14 + $0x150] sm:$0xff]
        %v3992 = vld [vmem:[#allocation14 + $0x158] sm:$0xff]
        %v3993 = vld [vmem:[#allocation14 + $0x160] sm:$0xff]
        %v3994 = vld [vmem:[#allocation14 + $0x168] sm:$0xff]
        %v3995 = vld [vmem:[#allocation14 + $0x170] sm:$0xff]
        %v3996 = vld [vmem:[#allocation14 + $0x178] sm:$0xff]
        %v3997 = vld [vmem:[#allocation14 + $0x180] sm:$0xff]
        %v3998 = vld [vmem:[#allocation14 + $0x188] sm:$0xff]
        %v3999 = vld [vmem:[#allocation14 + $0x190] sm:$0xff]
        %v4000 = vld [vmem:[#allocation14 + $0x198] sm:$0xff]
        %v4001 = vld [vmem:[#allocation14 + $0x1a0] sm:$0xff]
        %v4002 = vld [vmem:[#allocation14 + $0x1a8] sm:$0xff]
        %v4003 = vld [vmem:[#allocation14 + $0x1b0] sm:$0xff]
        %v4004 = vld [vmem:[#allocation14 + $0x1b8] sm:$0xff]
        %v4005 = vld [vmem:[#allocation14 + $0x1c0] sm:$0xff]
        %v4006 = vld [vmem:[#allocation14 + $0x1c8] sm:$0xff]
        %v4007 = vld [vmem:[#allocation14 + $0x1d0] sm:$0xff]
        %v4008 = vld [vmem:[#allocation14 + $0x1d8] sm:$0xff]
        %v4009 = vld [vmem:[#allocation14 + $0x1e0] sm:$0xff]
        %v4010 = vld [vmem:[#allocation14 + $0x1e8] sm:$0xff]
        %v4011 = vld [vmem:[#allocation14 + $0x1f0] sm:$0xff]
        %v4012 = vld [vmem:[#allocation14 + $0x1f8] sm:$0xff]
        %v4014 = vlaneseq
        %v4015 = vshrl.u32 %v4014, 7
        %v4016 = vsub.s32 0, %v4015
        %v4017 = vrot.slane %v3944, %v4016
        %v4018 = vlaneseq
        %v4019 = vshrl.u32 %v4018, 7
        %v4020 = vsub.s32 1, %v4019
        %v4021 = vrot.slane %v3944, %v4020
        %v4022 = vlaneseq
        %v4023 = vshrl.u32 %v4022, 7
        %v4024 = vsub.s32 2, %v4023
        %v4025 = vrot.slane %v3944, %v4024
        %v4026 = vlaneseq
        %v4027 = vshrl.u32 %v4026, 7
        %v4028 = vsub.s32 3, %v4027
        %v4029 = vrot.slane %v3944, %v4028
        %v4098 = vunpack.c.l.b16 %v3949
        %v4099 = vunpack.c.h.b16 %v3949
        %v4100 = vunpack.c.l.b16 %v3950
        %v4101 = vunpack.c.h.b16 %v3950
        %v4102 = vunpack.c.l.b16 %v3951
        %v4103 = vunpack.c.h.b16 %v3951
        %v4104 = vunpack.c.l.b16 %v3952
        %v4105 = vunpack.c.h.b16 %v3952
        %v4106 = vunpack.c.l.b16 %v3953
        %v4107 = vunpack.c.h.b16 %v3953
        %v4108 = vunpack.c.l.b16 %v3954
        %v4109 = vunpack.c.h.b16 %v3954
        %v4110 = vunpack.c.l.b16 %v3955
        %v4111 = vunpack.c.h.b16 %v3955
        %v4112 = vunpack.c.l.b16 %v3956
        %v4113 = vunpack.c.h.b16 %v3956
        %v4114 = vunpack.c.l.b16 %v3957
        %v4115 = vunpack.c.h.b16 %v3957
        %v4116 = vunpack.c.l.b16 %v3958
        %v4117 = vunpack.c.h.b16 %v3958
        %v4118 = vunpack.c.l.b16 %v3959
        %v4119 = vunpack.c.h.b16 %v3959
        %v4120 = vunpack.c.l.b16 %v3960
        %v4121 = vunpack.c.h.b16 %v3960
        %v4122 = vunpack.c.l.b16 %v3961
        %v4123 = vunpack.c.h.b16 %v3961
        %v4124 = vunpack.c.l.b16 %v3962
        %v4125 = vunpack.c.h.b16 %v3962
        %v4126 = vunpack.c.l.b16 %v3963
        %v4127 = vunpack.c.h.b16 %v3963
        %v4128 = vunpack.c.l.b16 %v3964
        %v4129 = vunpack.c.h.b16 %v3964
        %v4130 = vunpack.c.l.b16 %v3965
        %v4131 = vunpack.c.h.b16 %v3965
        %v4132 = vunpack.c.l.b16 %v3966
        %v4133 = vunpack.c.h.b16 %v3966
        %v4134 = vunpack.c.l.b16 %v3967
        %v4135 = vunpack.c.h.b16 %v3967
        %v4136 = vunpack.c.l.b16 %v3968
        %v4137 = vunpack.c.h.b16 %v3968
        %v4138 = vunpack.c.l.b16 %v3969
        %v4139 = vunpack.c.h.b16 %v3969
        %v4140 = vunpack.c.l.b16 %v3970
        %v4141 = vunpack.c.h.b16 %v3970
        %v4142 = vunpack.c.l.b16 %v3971
        %v4143 = vunpack.c.h.b16 %v3971
        %v4144 = vunpack.c.l.b16 %v3972
        %v4145 = vunpack.c.h.b16 %v3972
        %v4146 = vunpack.c.l.b16 %v3973
        %v4147 = vunpack.c.h.b16 %v3973
        %v4148 = vunpack.c.l.b16 %v3974
        %v4149 = vunpack.c.h.b16 %v3974
        %v4150 = vunpack.c.l.b16 %v3975
        %v4151 = vunpack.c.h.b16 %v3975
        %v4152 = vunpack.c.l.b16 %v3976
        %v4153 = vunpack.c.h.b16 %v3976
        %v4154 = vunpack.c.l.b16 %v3977
        %v4155 = vunpack.c.h.b16 %v3977
        %v4156 = vunpack.c.l.b16 %v3978
        %v4157 = vunpack.c.h.b16 %v3978
        %v4158 = vunpack.c.l.b16 %v3979
        %v4159 = vunpack.c.h.b16 %v3979
        %v4160 = vunpack.c.l.b16 %v3980
        %v4161 = vunpack.c.h.b16 %v3980
        %v4162 = vunpack.c.l.b16 %v3981
        %v4163 = vunpack.c.h.b16 %v3981
        %v4164 = vunpack.c.l.b16 %v3982
        %v4165 = vunpack.c.h.b16 %v3982
        %v4166 = vunpack.c.l.b16 %v3983
        %v4167 = vunpack.c.h.b16 %v3983
        %v4168 = vunpack.c.l.b16 %v3984
        %v4169 = vunpack.c.h.b16 %v3984
        %v4170 = vunpack.c.l.b16 %v3985
        %v4171 = vunpack.c.h.b16 %v3985
        %v4172 = vunpack.c.l.b16 %v3986
        %v4173 = vunpack.c.h.b16 %v3986
        %v4174 = vunpack.c.l.b16 %v3987
        %v4175 = vunpack.c.h.b16 %v3987
        %v4176 = vunpack.c.l.b16 %v3988
        %v4177 = vunpack.c.h.b16 %v3988
        %v4178 = vunpack.c.l.b16 %v3989
        %v4179 = vunpack.c.h.b16 %v3989
        %v4180 = vunpack.c.l.b16 %v3990
        %v4181 = vunpack.c.h.b16 %v3990
        %v4182 = vunpack.c.l.b16 %v3991
        %v4183 = vunpack.c.h.b16 %v3991
        %v4184 = vunpack.c.l.b16 %v3992
        %v4185 = vunpack.c.h.b16 %v3992
        %v4186 = vunpack.c.l.b16 %v3993
        %v4187 = vunpack.c.h.b16 %v3993
        %v4188 = vunpack.c.l.b16 %v3994
        %v4189 = vunpack.c.h.b16 %v3994
        %v4190 = vunpack.c.l.b16 %v3995
        %v4191 = vunpack.c.h.b16 %v3995
        %v4192 = vunpack.c.l.b16 %v3996
        %v4193 = vunpack.c.h.b16 %v3996
        %v4194 = vunpack.c.l.b16 %v3997
        %v4195 = vunpack.c.h.b16 %v3997
        %v4196 = vunpack.c.l.b16 %v3998
        %v4197 = vunpack.c.h.b16 %v3998
        %v4198 = vunpack.c.l.b16 %v3999
        %v4199 = vunpack.c.h.b16 %v3999
        %v4200 = vunpack.c.l.b16 %v4000
        %v4201 = vunpack.c.h.b16 %v4000
        %v4202 = vunpack.c.l.b16 %v4001
        %v4203 = vunpack.c.h.b16 %v4001
        %v4204 = vunpack.c.l.b16 %v4002
        %v4205 = vunpack.c.h.b16 %v4002
        %v4206 = vunpack.c.l.b16 %v4003
        %v4207 = vunpack.c.h.b16 %v4003
        %v4208 = vunpack.c.l.b16 %v4004
        %v4209 = vunpack.c.h.b16 %v4004
        %v4210 = vunpack.c.l.b16 %v4005
        %v4211 = vunpack.c.h.b16 %v4005
        %v4212 = vunpack.c.l.b16 %v4006
        %v4213 = vunpack.c.h.b16 %v4006
        %v4214 = vunpack.c.l.b16 %v4007
        %v4215 = vunpack.c.h.b16 %v4007
        %v4216 = vunpack.c.l.b16 %v4008
        %v4217 = vunpack.c.h.b16 %v4008
        %v4218 = vunpack.c.l.b16 %v4009
        %v4219 = vunpack.c.h.b16 %v4009
        %v4220 = vunpack.c.l.b16 %v4010
        %v4221 = vunpack.c.h.b16 %v4010
        %v4222 = vunpack.c.l.b16 %v4011
        %v4223 = vunpack.c.h.b16 %v4011
        %v4224 = vunpack.c.l.b16 %v4012
        %v4225 = vunpack.c.h.b16 %v4012
        %v4226 = vpack.c.b16 %v4102, %v4098
        %v4227 = vpack.c.b16 %v4103, %v4099
        %v4228 = vpack.c.b16 %v4104, %v4100
        %v4229 = vpack.c.b16 %v4105, %v4101
        %v4230 = vpack.c.b16 %v4110, %v4106
        %v4231 = vpack.c.b16 %v4111, %v4107
        %v4232 = vpack.c.b16 %v4112, %v4108
        %v4233 = vpack.c.b16 %v4113, %v4109
        %v4234 = vpack.c.b16 %v4118, %v4114
        %v4235 = vpack.c.b16 %v4119, %v4115
        %v4236 = vpack.c.b16 %v4120, %v4116
        %v4237 = vpack.c.b16 %v4121, %v4117
        %v4238 = vpack.c.b16 %v4126, %v4122
        %v4239 = vpack.c.b16 %v4127, %v4123
        %v4240 = vpack.c.b16 %v4128, %v4124
        %v4241 = vpack.c.b16 %v4129, %v4125
        %v4242 = vpack.c.b16 %v4134, %v4130
        %v4243 = vpack.c.b16 %v4135, %v4131
        %v4244 = vpack.c.b16 %v4136, %v4132
        %v4245 = vpack.c.b16 %v4137, %v4133
        %v4246 = vpack.c.b16 %v4142, %v4138
        %v4247 = vpack.c.b16 %v4143, %v4139
        %v4248 = vpack.c.b16 %v4144, %v4140
        %v4249 = vpack.c.b16 %v4145, %v4141
        %v4250 = vpack.c.b16 %v4150, %v4146
        %v4251 = vpack.c.b16 %v4151, %v4147
        %v4252 = vpack.c.b16 %v4152, %v4148
        %v4253 = vpack.c.b16 %v4153, %v4149
        %v4254 = vpack.c.b16 %v4158, %v4154
        %v4255 = vpack.c.b16 %v4159, %v4155
        %v4256 = vpack.c.b16 %v4160, %v4156
        %v4257 = vpack.c.b16 %v4161, %v4157
        %v4258 = vpack.c.b16 %v4166, %v4162
        %v4259 = vpack.c.b16 %v4167, %v4163
        %v4260 = vpack.c.b16 %v4168, %v4164
        %v4261 = vpack.c.b16 %v4169, %v4165
        %v4262 = vpack.c.b16 %v4174, %v4170
        %v4263 = vpack.c.b16 %v4175, %v4171
        %v4264 = vpack.c.b16 %v4176, %v4172
        %v4265 = vpack.c.b16 %v4177, %v4173
        %v4266 = vpack.c.b16 %v4182, %v4178
        %v4267 = vpack.c.b16 %v4183, %v4179
        %v4268 = vpack.c.b16 %v4184, %v4180
        %v4269 = vpack.c.b16 %v4185, %v4181
        %v4270 = vpack.c.b16 %v4190, %v4186
        %v4271 = vpack.c.b16 %v4191, %v4187
        %v4272 = vpack.c.b16 %v4192, %v4188
        %v4273 = vpack.c.b16 %v4193, %v4189
        %v4274 = vpack.c.b16 %v4198, %v4194
        %v4275 = vpack.c.b16 %v4199, %v4195
        %v4276 = vpack.c.b16 %v4200, %v4196
        %v4277 = vpack.c.b16 %v4201, %v4197
        %v4278 = vpack.c.b16 %v4206, %v4202
        %v4279 = vpack.c.b16 %v4207, %v4203
        %v4280 = vpack.c.b16 %v4208, %v4204
        %v4281 = vpack.c.b16 %v4209, %v4205
        %v4282 = vpack.c.b16 %v4214, %v4210
        %v4283 = vpack.c.b16 %v4215, %v4211
        %v4284 = vpack.c.b16 %v4216, %v4212
        %v4285 = vpack.c.b16 %v4217, %v4213
        %v4286 = vpack.c.b16 %v4222, %v4218
        %v4287 = vpack.c.b16 %v4223, %v4219
        %v4288 = vpack.c.b16 %v4224, %v4220
        %v4289 = vpack.c.b16 %v4225, %v4221
        %4354 = vmatprep.subr.bf16.mxu0 %v4255
        %4355 = vmatpush1.bf16.msra.mxu0 %v4254
        %4356 = vmatprep.subr.bf16.mxu0 %v4251
        %4357 = vmatpush1.bf16.msra.mxu0 %v4250
        %4358 = vmatprep.subr.bf16.mxu0 %v4247
        %4359 = vmatpush1.bf16.msra.mxu0 %v4246
        %4360 = vmatprep.subr.bf16.mxu0 %v4243
        %4361 = vmatpush1.bf16.msra.mxu0 %v4242
        %4362 = vmatprep.subr.bf16.mxu0 %v4239
        %4363 = vmatpush1.bf16.msra.mxu0 %v4238
        %4364 = vmatprep.subr.bf16.mxu0 %v4235
        %4365 = vmatpush1.bf16.msra.mxu0 %v4234
        %4366 = vmatprep.subr.bf16.mxu0 %v4231
        %4367 = vmatpush1.bf16.msra.mxu0 %v4230
        %4368 = vmatprep.subr.bf16.mxu0 %v4227
        %4369 = vmatpush1.bf16.msra.mxu0 %v4226
        %4370 = vmatprep.subr.bf16.mxu0 %v4287
        %4371 = vmatpush2.bf16.msra.mxu0 %v4286
        %4372 = vmatprep.subr.bf16.mxu0 %v4283
        %4373 = vmatpush2.bf16.msra.mxu0 %v4282
        %4374 = vmatprep.subr.bf16.mxu0 %v4279
        %4375 = vmatpush2.bf16.msra.mxu0 %v4278
        %4376 = vmatprep.subr.bf16.mxu0 %v4275
        %4377 = vmatpush2.bf16.msra.mxu0 %v4274
        %4378 = vmatprep.subr.bf16.mxu0 %v4271
        %4379 = vmatpush2.bf16.msra.mxu0 %v4270
        %4380 = vmatprep.subr.bf16.mxu0 %v4267
        %4381 = vmatpush2.bf16.msra.mxu0 %v4266
        %4382 = vmatprep.subr.bf16.mxu0 %v4263
        %4383 = vmatpush2.bf16.msra.mxu0 %v4262
        %4384 = vmatprep.subr.bf16.mxu0 %v4259
        %4385 = vmatpush2.bf16.msra.mxu0 %v4258
        %4386 = vmatprep.mubr.bf16.mxu0 %v3946
        %4387 = vmatmul.mubr.bf16.gmra.mxu0 %v3945
        %v4388 = vpop.f32.mrf.mxu0
        %v4389 = vadd.f32 %v4017, %v4388
        %v4390 = vpop.f32.mrf.mxu0
        %v4391 = vadd.f32 %v4021, %v4390
        %v4392 = vpop.f32.mrf.mxu0
        %v4393 = vadd.f32 %v4017, %v4392
        %v4394 = vpop.f32.mrf.mxu0
        %v4395 = vadd.f32 %v4021, %v4394
        %4396 = vmatprep.mubr.bf16.mxu0 %v3948
        %4397 = vmatmul.mubr.bf16.gmra.mxu0 %v3947
        %v4398 = vpop.f32.mrf.mxu0
        %v4399 = vadd.f32 %v4017, %v4398
        %v4400 = vpop.f32.mrf.mxu0
        %v4401 = vadd.f32 %v4021, %v4400
        %v4402 = vpop.f32.mrf.mxu0
        %v4403 = vadd.f32 %v4017, %v4402
        %v4404 = vpop.f32.mrf.mxu0
        %v4405 = vadd.f32 %v4021, %v4404
        %4406 = vdwg.mxu0
        %4407 = vmatprep.subr.bf16.mxu0 %v4257
        %4408 = vmatpush1.bf16.msra.mxu0 %v4256
        %4409 = vmatprep.subr.bf16.mxu0 %v4253
        %4410 = vmatpush1.bf16.msra.mxu0 %v4252
        %4411 = vmatprep.subr.bf16.mxu0 %v4249
        %4412 = vmatpush1.bf16.msra.mxu0 %v4248
        %4413 = vmatprep.subr.bf16.mxu0 %v4245
        %4414 = vmatpush1.bf16.msra.mxu0 %v4244
        %4415 = vmatprep.subr.bf16.mxu0 %v4241
        %4416 = vmatpush1.bf16.msra.mxu0 %v4240
        %4417 = vmatprep.subr.bf16.mxu0 %v4237
        %4418 = vmatpush1.bf16.msra.mxu0 %v4236
        %4419 = vmatprep.subr.bf16.mxu0 %v4233
        %4420 = vmatpush1.bf16.msra.mxu0 %v4232
        %4421 = vmatprep.subr.bf16.mxu0 %v4229
        %4422 = vmatpush1.bf16.msra.mxu0 %v4228
        %4423 = vmatprep.subr.bf16.mxu0 %v4289
        %4424 = vmatpush2.bf16.msra.mxu0 %v4288
        %4425 = vmatprep.subr.bf16.mxu0 %v4285
        %4426 = vmatpush2.bf16.msra.mxu0 %v4284
        %4427 = vmatprep.subr.bf16.mxu0 %v4281
        %4428 = vmatpush2.bf16.msra.mxu0 %v4280
        %4429 = vmatprep.subr.bf16.mxu0 %v4277
        %4430 = vmatpush2.bf16.msra.mxu0 %v4276
        %4431 = vmatprep.subr.bf16.mxu0 %v4273
        %4432 = vmatpush2.bf16.msra.mxu0 %v4272
        %4433 = vmatprep.subr.bf16.mxu0 %v4269
        %4434 = vmatpush2.bf16.msra.mxu0 %v4268
        %4435 = vmatprep.subr.bf16.mxu0 %v4265
        %4436 = vmatpush2.bf16.msra.mxu0 %v4264
        %4437 = vmatprep.subr.bf16.mxu0 %v4261
        %4438 = vmatpush2.bf16.msra.mxu0 %v4260
        %4439 = vmatprep.mubr.bf16.mxu0 %v3946
        %4440 = vmatmul.mubr.bf16.gmra.mxu0 %v3945
        %v4441 = vpop.f32.mrf.mxu0
        %v4442 = vadd.f32 %v4025, %v4441
        %v4443 = vpop.f32.mrf.mxu0
        %v4444 = vadd.f32 %v4029, %v4443
        %v4445 = vpop.f32.mrf.mxu0
        %v4446 = vadd.f32 %v4025, %v4445
        %v4447 = vpop.f32.mrf.mxu0
        %v4448 = vadd.f32 %v4029, %v4447
        %4449 = vmatprep.mubr.bf16.mxu0 %v3948
        %4450 = vmatmul.mubr.bf16.gmra.mxu0 %v3947
        %v4451 = vpop.f32.mrf.mxu0
        %v4452 = vadd.f32 %v4025, %v4451
        %v4453 = vpop.f32.mrf.mxu0
        %v4454 = vadd.f32 %v4029, %v4453
        %v4455 = vpop.f32.mrf.mxu0
        %v4456 = vadd.f32 %v4025, %v4455
        %v4457 = vpop.f32.mrf.mxu0
        %v4458 = vadd.f32 %v4029, %v4457
        %4459 = vdwg.mxu0
        %v4460 = vmax.f32 %v4389, 0.0
        %v4461 = vmax.f32 %v4391, 0.0
        %v4462 = vmax.f32 %v4442, 0.0
        %v4463 = vmax.f32 %v4444, 0.0
        %v4464 = vmax.f32 %v4393, 0.0
        %v4465 = vmax.f32 %v4395, 0.0
        %v4466 = vmax.f32 %v4446, 0.0
        %v4467 = vmax.f32 %v4448, 0.0
        %v4468 = vmax.f32 %v4399, 0.0
        %v4469 = vmax.f32 %v4401, 0.0
        %v4470 = vmax.f32 %v4452, 0.0
        %v4471 = vmax.f32 %v4454, 0.0
        %v4472 = vmax.f32 %v4403, 0.0
        %v4473 = vmax.f32 %v4405, 0.0
        %v4474 = vmax.f32 %v4456, 0.0
        %v4475 = vmax.f32 %v4458, 0.0
        %s4476 = scalar_lea.vmem %s15, 145
        %v4477 = vld [vmem:[%s4476] ss:$8 sm:$0xf]
        %v4478 = vld [vmem:[%s4476] ss:$8 sm:$0x30]
        %v4479 = vor.u32 %v4477, %v4478
        %v4480 = vpack.c.bf16 %v4464, %v4460
        %v4481 = vpack.c.bf16 %v4465, %v4461
        %v4482 = vpack.c.bf16 %v4466, %v4462
        %v4483 = vpack.c.bf16 %v4467, %v4463
        %v4484 = vpack.c.bf16 %v4472, %v4468
        %v4485 = vpack.c.bf16 %v4473, %v4469
        %v4486 = vpack.c.bf16 %v4474, %v4470
        %v4487 = vpack.c.bf16 %v4475, %v4471
        %v4488 = vld [vmem:[#allocation16] sm:$0xff]
        %v4489 = vld [vmem:[#allocation16 + $0x8] sm:$0xff]
        %v4490 = vld [vmem:[#allocation16 + $0x10] sm:$0xff]
        %v4491 = vld [vmem:[#allocation16 + $0x18] sm:$0xff]
        %v4492 = vld [vmem:[#allocation16 + $0x20] sm:$0xff]
        %v4493 = vld [vmem:[#allocation16 + $0x28] sm:$0xff]
        %v4494 = vld [vmem:[#allocation16 + $0x30] sm:$0xff]
        %v4495 = vld [vmem:[#allocation16 + $0x38] sm:$0xff]
        %v4496 = vld [vmem:[#allocation16 + $0x40] sm:$0xff]
        %v4497 = vld [vmem:[#allocation16 + $0x48] sm:$0xff]
        %v4498 = vld [vmem:[#allocation16 + $0x50] sm:$0xff]
        %v4499 = vld [vmem:[#allocation16 + $0x58] sm:$0xff]
        %v4500 = vld [vmem:[#allocation16 + $0x60] sm:$0xff]
        %v4501 = vld [vmem:[#allocation16 + $0x68] sm:$0xff]
        %v4502 = vld [vmem:[#allocation16 + $0x70] sm:$0xff]
        %v4503 = vld [vmem:[#allocation16 + $0x78] sm:$0xff]
        %v4504 = vld [vmem:[#allocation16 + $0x80] sm:$0xff]
        %v4505 = vld [vmem:[#allocation16 + $0x88] sm:$0xff]
        %v4506 = vld [vmem:[#allocation16 + $0x90] sm:$0xff]
        %v4507 = vld [vmem:[#allocation16 + $0x98] sm:$0xff]
        %v4508 = vld [vmem:[#allocation16 + $0xa0] sm:$0xff]
        %v4509 = vld [vmem:[#allocation16 + $0xa8] sm:$0xff]
        %v4510 = vld [vmem:[#allocation16 + $0xb0] sm:$0xff]
        %v4511 = vld [vmem:[#allocation16 + $0xb8] sm:$0xff]
        %v4512 = vld [vmem:[#allocation16 + $0xc0] sm:$0xff]
        %v4513 = vld [vmem:[#allocation16 + $0xc8] sm:$0xff]
        %v4514 = vld [vmem:[#allocation16 + $0xd0] sm:$0xff]
        %v4515 = vld [vmem:[#allocation16 + $0xd8] sm:$0xff]
        %v4516 = vld [vmem:[#allocation16 + $0xe0] sm:$0xff]
        %v4517 = vld [vmem:[#allocation16 + $0xe8] sm:$0xff]
        %v4518 = vld [vmem:[#allocation16 + $0xf0] sm:$0xff]
        %v4519 = vld [vmem:[#allocation16 + $0xf8] sm:$0xff]
        %v4520 = vld [vmem:[#allocation16 + $0x100] sm:$0xff]
        %v4521 = vld [vmem:[#allocation16 + $0x108] sm:$0xff]
        %v4522 = vld [vmem:[#allocation16 + $0x110] sm:$0xff]
        %v4523 = vld [vmem:[#allocation16 + $0x118] sm:$0xff]
        %v4524 = vld [vmem:[#allocation16 + $0x120] sm:$0xff]
        %v4525 = vld [vmem:[#allocation16 + $0x128] sm:$0xff]
        %v4526 = vld [vmem:[#allocation16 + $0x130] sm:$0xff]
        %v4527 = vld [vmem:[#allocation16 + $0x138] sm:$0xff]
        %v4528 = vld [vmem:[#allocation16 + $0x140] sm:$0xff]
        %v4529 = vld [vmem:[#allocation16 + $0x148] sm:$0xff]
        %v4530 = vld [vmem:[#allocation16 + $0x150] sm:$0xff]
        %v4531 = vld [vmem:[#allocation16 + $0x158] sm:$0xff]
        %v4532 = vld [vmem:[#allocation16 + $0x160] sm:$0xff]
        %v4533 = vld [vmem:[#allocation16 + $0x168] sm:$0xff]
        %v4534 = vld [vmem:[#allocation16 + $0x170] sm:$0xff]
        %v4535 = vld [vmem:[#allocation16 + $0x178] sm:$0xff]
        %v4536 = vld [vmem:[#allocation16 + $0x180] sm:$0xff]
        %v4537 = vld [vmem:[#allocation16 + $0x188] sm:$0xff]
        %v4538 = vld [vmem:[#allocation16 + $0x190] sm:$0xff]
        %v4539 = vld [vmem:[#allocation16 + $0x198] sm:$0xff]
        %v4540 = vld [vmem:[#allocation16 + $0x1a0] sm:$0xff]
        %v4541 = vld [vmem:[#allocation16 + $0x1a8] sm:$0xff]
        %v4542 = vld [vmem:[#allocation16 + $0x1b0] sm:$0xff]
        %v4543 = vld [vmem:[#allocation16 + $0x1b8] sm:$0xff]
        %v4544 = vld [vmem:[#allocation16 + $0x1c0] sm:$0xff]
        %v4545 = vld [vmem:[#allocation16 + $0x1c8] sm:$0xff]
        %v4546 = vld [vmem:[#allocation16 + $0x1d0] sm:$0xff]
        %v4547 = vld [vmem:[#allocation16 + $0x1d8] sm:$0xff]
        %v4548 = vld [vmem:[#allocation16 + $0x1e0] sm:$0xff]
        %v4549 = vld [vmem:[#allocation16 + $0x1e8] sm:$0xff]
        %v4550 = vld [vmem:[#allocation16 + $0x1f0] sm:$0xff]
        %v4551 = vld [vmem:[#allocation16 + $0x1f8] sm:$0xff]
        %v4552 = vld [vmem:[#allocation16 + $0x200] sm:$0xff]
        %v4553 = vld [vmem:[#allocation16 + $0x208] sm:$0xff]
        %v4554 = vld [vmem:[#allocation16 + $0x210] sm:$0xff]
        %v4555 = vld [vmem:[#allocation16 + $0x218] sm:$0xff]
        %v4556 = vld [vmem:[#allocation16 + $0x220] sm:$0xff]
        %v4557 = vld [vmem:[#allocation16 + $0x228] sm:$0xff]
        %v4558 = vld [vmem:[#allocation16 + $0x230] sm:$0xff]
        %v4559 = vld [vmem:[#allocation16 + $0x238] sm:$0xff]
        %v4560 = vld [vmem:[#allocation16 + $0x240] sm:$0xff]
        %v4561 = vld [vmem:[#allocation16 + $0x248] sm:$0xff]
        %v4562 = vld [vmem:[#allocation16 + $0x250] sm:$0xff]
        %v4563 = vld [vmem:[#allocation16 + $0x258] sm:$0xff]
        %v4564 = vld [vmem:[#allocation16 + $0x260] sm:$0xff]
        %v4565 = vld [vmem:[#allocation16 + $0x268] sm:$0xff]
        %v4566 = vld [vmem:[#allocation16 + $0x270] sm:$0xff]
        %v4567 = vld [vmem:[#allocation16 + $0x278] sm:$0xff]
        %v4568 = vld [vmem:[#allocation16 + $0x280] sm:$0xff]
        %v4569 = vld [vmem:[#allocation16 + $0x288] sm:$0xff]
        %v4570 = vld [vmem:[#allocation16 + $0x290] sm:$0xff]
        %v4571 = vld [vmem:[#allocation16 + $0x298] sm:$0xff]
        %v4572 = vld [vmem:[#allocation16 + $0x2a0] sm:$0xff]
        %v4573 = vld [vmem:[#allocation16 + $0x2a8] sm:$0xff]
        %v4574 = vld [vmem:[#allocation16 + $0x2b0] sm:$0xff]
        %v4575 = vld [vmem:[#allocation16 + $0x2b8] sm:$0xff]
        %v4576 = vld [vmem:[#allocation16 + $0x2c0] sm:$0xff]
        %v4577 = vld [vmem:[#allocation16 + $0x2c8] sm:$0xff]
        %v4578 = vld [vmem:[#allocation16 + $0x2d0] sm:$0xff]
        %v4579 = vld [vmem:[#allocation16 + $0x2d8] sm:$0xff]
        %v4580 = vld [vmem:[#allocation16 + $0x2e0] sm:$0xff]
        %v4581 = vld [vmem:[#allocation16 + $0x2e8] sm:$0xff]
        %v4582 = vld [vmem:[#allocation16 + $0x2f0] sm:$0xff]
        %v4583 = vld [vmem:[#allocation16 + $0x2f8] sm:$0xff]
        %v4584 = vld [vmem:[#allocation16 + $0x300] sm:$0xff]
        %v4585 = vld [vmem:[#allocation16 + $0x308] sm:$0xff]
        %v4586 = vld [vmem:[#allocation16 + $0x310] sm:$0xff]
        %v4587 = vld [vmem:[#allocation16 + $0x318] sm:$0xff]
        %v4588 = vld [vmem:[#allocation16 + $0x320] sm:$0xff]
        %v4589 = vld [vmem:[#allocation16 + $0x328] sm:$0xff]
        %v4590 = vld [vmem:[#allocation16 + $0x330] sm:$0xff]
        %v4591 = vld [vmem:[#allocation16 + $0x338] sm:$0xff]
        %v4592 = vld [vmem:[#allocation16 + $0x340] sm:$0xff]
        %v4593 = vld [vmem:[#allocation16 + $0x348] sm:$0xff]
        %v4594 = vld [vmem:[#allocation16 + $0x350] sm:$0xff]
        %v4595 = vld [vmem:[#allocation16 + $0x358] sm:$0xff]
        %v4596 = vld [vmem:[#allocation16 + $0x360] sm:$0xff]
        %v4597 = vld [vmem:[#allocation16 + $0x368] sm:$0xff]
        %v4598 = vld [vmem:[#allocation16 + $0x370] sm:$0xff]
        %v4599 = vld [vmem:[#allocation16 + $0x378] sm:$0xff]
        %v4600 = vld [vmem:[#allocation16 + $0x380] sm:$0xff]
        %v4601 = vld [vmem:[#allocation16 + $0x388] sm:$0xff]
        %v4602 = vld [vmem:[#allocation16 + $0x390] sm:$0xff]
        %v4603 = vld [vmem:[#allocation16 + $0x398] sm:$0xff]
        %v4604 = vld [vmem:[#allocation16 + $0x3a0] sm:$0xff]
        %v4605 = vld [vmem:[#allocation16 + $0x3a8] sm:$0xff]
        %v4606 = vld [vmem:[#allocation16 + $0x3b0] sm:$0xff]
        %v4607 = vld [vmem:[#allocation16 + $0x3b8] sm:$0xff]
        %v4608 = vld [vmem:[#allocation16 + $0x3c0] sm:$0xff]
        %v4609 = vld [vmem:[#allocation16 + $0x3c8] sm:$0xff]
        %v4610 = vld [vmem:[#allocation16 + $0x3d0] sm:$0xff]
        %v4611 = vld [vmem:[#allocation16 + $0x3d8] sm:$0xff]
        %v4612 = vld [vmem:[#allocation16 + $0x3e0] sm:$0xff]
        %v4613 = vld [vmem:[#allocation16 + $0x3e8] sm:$0xff]
        %v4614 = vld [vmem:[#allocation16 + $0x3f0] sm:$0xff]
        %v4615 = vld [vmem:[#allocation16 + $0x3f8] sm:$0xff]
        %v4616 = vld [vmem:[#allocation16 + $0x400] sm:$0xff]
        %v4617 = vld [vmem:[#allocation16 + $0x408] sm:$0xff]
        %v4618 = vld [vmem:[#allocation16 + $0x410] sm:$0xff]
        %v4619 = vld [vmem:[#allocation16 + $0x418] sm:$0xff]
        %v4620 = vld [vmem:[#allocation16 + $0x420] sm:$0xff]
        %v4621 = vld [vmem:[#allocation16 + $0x428] sm:$0xff]
        %v4622 = vld [vmem:[#allocation16 + $0x430] sm:$0xff]
        %v4623 = vld [vmem:[#allocation16 + $0x438] sm:$0xff]
        %v4624 = vld [vmem:[#allocation16 + $0x440] sm:$0xff]
        %v4625 = vld [vmem:[#allocation16 + $0x448] sm:$0xff]
        %v4626 = vld [vmem:[#allocation16 + $0x450] sm:$0xff]
        %v4627 = vld [vmem:[#allocation16 + $0x458] sm:$0xff]
        %v4628 = vld [vmem:[#allocation16 + $0x460] sm:$0xff]
        %v4629 = vld [vmem:[#allocation16 + $0x468] sm:$0xff]
        %v4630 = vld [vmem:[#allocation16 + $0x470] sm:$0xff]
        %v4631 = vld [vmem:[#allocation16 + $0x478] sm:$0xff]
        %v4632 = vld [vmem:[#allocation16 + $0x480] sm:$0xff]
        %v4633 = vld [vmem:[#allocation16 + $0x488] sm:$0xff]
        %v4634 = vld [vmem:[#allocation16 + $0x490] sm:$0xff]
        %v4635 = vld [vmem:[#allocation16 + $0x498] sm:$0xff]
        %v4636 = vld [vmem:[#allocation16 + $0x4a0] sm:$0xff]
        %v4637 = vld [vmem:[#allocation16 + $0x4a8] sm:$0xff]
        %v4638 = vld [vmem:[#allocation16 + $0x4b0] sm:$0xff]
        %v4639 = vld [vmem:[#allocation16 + $0x4b8] sm:$0xff]
        %v4640 = vld [vmem:[#allocation16 + $0x4c0] sm:$0xff]
        %v4641 = vld [vmem:[#allocation16 + $0x4c8] sm:$0xff]
        %v4642 = vld [vmem:[#allocation16 + $0x4d0] sm:$0xff]
        %v4643 = vld [vmem:[#allocation16 + $0x4d8] sm:$0xff]
        %v4644 = vld [vmem:[#allocation16 + $0x4e0] sm:$0xff]
        %v4645 = vld [vmem:[#allocation16 + $0x4e8] sm:$0xff]
        %v4646 = vld [vmem:[#allocation16 + $0x4f0] sm:$0xff]
        %v4647 = vld [vmem:[#allocation16 + $0x4f8] sm:$0xff]
        %v4648 = vld [vmem:[#allocation16 + $0x500] sm:$0xff]
        %v4649 = vld [vmem:[#allocation16 + $0x508] sm:$0xff]
        %v4650 = vld [vmem:[#allocation16 + $0x510] sm:$0xff]
        %v4651 = vld [vmem:[#allocation16 + $0x518] sm:$0xff]
        %v4652 = vld [vmem:[#allocation16 + $0x520] sm:$0xff]
        %v4653 = vld [vmem:[#allocation16 + $0x528] sm:$0xff]
        %v4654 = vld [vmem:[#allocation16 + $0x530] sm:$0xff]
        %v4655 = vld [vmem:[#allocation16 + $0x538] sm:$0xff]
        %v4656 = vld [vmem:[#allocation16 + $0x540] sm:$0xff]
        %v4657 = vld [vmem:[#allocation16 + $0x548] sm:$0xff]
        %v4658 = vld [vmem:[#allocation16 + $0x550] sm:$0xff]
        %v4659 = vld [vmem:[#allocation16 + $0x558] sm:$0xff]
        %v4660 = vld [vmem:[#allocation16 + $0x560] sm:$0xff]
        %v4661 = vld [vmem:[#allocation16 + $0x568] sm:$0xff]
        %v4662 = vld [vmem:[#allocation16 + $0x570] sm:$0xff]
        %v4663 = vld [vmem:[#allocation16 + $0x578] sm:$0xff]
        %v4664 = vld [vmem:[#allocation16 + $0x580] sm:$0xff]
        %v4665 = vld [vmem:[#allocation16 + $0x588] sm:$0xff]
        %v4666 = vld [vmem:[#allocation16 + $0x590] sm:$0xff]
        %v4667 = vld [vmem:[#allocation16 + $0x598] sm:$0xff]
        %v4668 = vld [vmem:[#allocation16 + $0x5a0] sm:$0xff]
        %v4669 = vld [vmem:[#allocation16 + $0x5a8] sm:$0xff]
        %v4670 = vld [vmem:[#allocation16 + $0x5b0] sm:$0xff]
        %v4671 = vld [vmem:[#allocation16 + $0x5b8] sm:$0xff]
        %v4672 = vld [vmem:[#allocation16 + $0x5c0] sm:$0xff]
        %v4673 = vld [vmem:[#allocation16 + $0x5c8] sm:$0xff]
        %v4674 = vld [vmem:[#allocation16 + $0x5d0] sm:$0xff]
        %v4675 = vld [vmem:[#allocation16 + $0x5d8] sm:$0xff]
        %v4676 = vld [vmem:[#allocation16 + $0x5e0] sm:$0xff]
        %v4677 = vld [vmem:[#allocation16 + $0x5e8] sm:$0xff]
        %v4678 = vld [vmem:[#allocation16 + $0x5f0] sm:$0xff]
        %v4679 = vld [vmem:[#allocation16 + $0x5f8] sm:$0xff]
        %v4681 = vlaneseq
        %v4682 = vshrl.u32 %v4681, 7
        %v4683 = vsub.s32 0, %v4682
        %v4684 = vrot.slane %v4479, %v4683
        %v4685 = vlaneseq
        %v4686 = vshrl.u32 %v4685, 7
        %v4687 = vsub.s32 1, %v4686
        %v4688 = vrot.slane %v4479, %v4687
        %v4689 = vlaneseq
        %v4690 = vshrl.u32 %v4689, 7
        %v4691 = vsub.s32 2, %v4690
        %v4692 = vrot.slane %v4479, %v4691
        %v4693 = vlaneseq
        %v4694 = vshrl.u32 %v4693, 7
        %v4695 = vsub.s32 3, %v4694
        %v4696 = vrot.slane %v4479, %v4695
        %v4697 = vlaneseq
        %v4698 = vshrl.u32 %v4697, 7
        %v4699 = vsub.s32 4, %v4698
        %v4700 = vrot.slane %v4479, %v4699
        %v4701 = vlaneseq
        %v4702 = vshrl.u32 %v4701, 7
        %v4703 = vsub.s32 5, %v4702
        %v4704 = vrot.slane %v4479, %v4703
        %v4903 = vunpack.c.l.b16 %v4488
        %v4904 = vunpack.c.h.b16 %v4488
        %v4905 = vunpack.c.l.b16 %v4489
        %v4906 = vunpack.c.h.b16 %v4489
        %v4907 = vunpack.c.l.b16 %v4490
        %v4908 = vunpack.c.h.b16 %v4490
        %v4909 = vunpack.c.l.b16 %v4491
        %v4910 = vunpack.c.h.b16 %v4491
        %v4911 = vunpack.c.l.b16 %v4492
        %v4912 = vunpack.c.h.b16 %v4492
        %v4913 = vunpack.c.l.b16 %v4493
        %v4914 = vunpack.c.h.b16 %v4493
        %v4915 = vunpack.c.l.b16 %v4494
        %v4916 = vunpack.c.h.b16 %v4494
        %v4917 = vunpack.c.l.b16 %v4495
        %v4918 = vunpack.c.h.b16 %v4495
        %v4919 = vunpack.c.l.b16 %v4496
        %v4920 = vunpack.c.h.b16 %v4496
        %v4921 = vunpack.c.l.b16 %v4497
        %v4922 = vunpack.c.h.b16 %v4497
        %v4923 = vunpack.c.l.b16 %v4498
        %v4924 = vunpack.c.h.b16 %v4498
        %v4925 = vunpack.c.l.b16 %v4499
        %v4926 = vunpack.c.h.b16 %v4499
        %v4927 = vunpack.c.l.b16 %v4500
        %v4928 = vunpack.c.h.b16 %v4500
        %v4929 = vunpack.c.l.b16 %v4501
        %v4930 = vunpack.c.h.b16 %v4501
        %v4931 = vunpack.c.l.b16 %v4502
        %v4932 = vunpack.c.h.b16 %v4502
        %v4933 = vunpack.c.l.b16 %v4503
        %v4934 = vunpack.c.h.b16 %v4503
        %v4935 = vunpack.c.l.b16 %v4504
        %v4936 = vunpack.c.h.b16 %v4504
        %v4937 = vunpack.c.l.b16 %v4505
        %v4938 = vunpack.c.h.b16 %v4505
        %v4939 = vunpack.c.l.b16 %v4506
        %v4940 = vunpack.c.h.b16 %v4506
        %v4941 = vunpack.c.l.b16 %v4507
        %v4942 = vunpack.c.h.b16 %v4507
        %v4943 = vunpack.c.l.b16 %v4508
        %v4944 = vunpack.c.h.b16 %v4508
        %v4945 = vunpack.c.l.b16 %v4509
        %v4946 = vunpack.c.h.b16 %v4509
        %v4947 = vunpack.c.l.b16 %v4510
        %v4948 = vunpack.c.h.b16 %v4510
        %v4949 = vunpack.c.l.b16 %v4511
        %v4950 = vunpack.c.h.b16 %v4511
        %v4951 = vunpack.c.l.b16 %v4512
        %v4952 = vunpack.c.h.b16 %v4512
        %v4953 = vunpack.c.l.b16 %v4513
        %v4954 = vunpack.c.h.b16 %v4513
        %v4955 = vunpack.c.l.b16 %v4514
        %v4956 = vunpack.c.h.b16 %v4514
        %v4957 = vunpack.c.l.b16 %v4515
        %v4958 = vunpack.c.h.b16 %v4515
        %v4959 = vunpack.c.l.b16 %v4516
        %v4960 = vunpack.c.h.b16 %v4516
        %v4961 = vunpack.c.l.b16 %v4517
        %v4962 = vunpack.c.h.b16 %v4517
        %v4963 = vunpack.c.l.b16 %v4518
        %v4964 = vunpack.c.h.b16 %v4518
        %v4965 = vunpack.c.l.b16 %v4519
        %v4966 = vunpack.c.h.b16 %v4519
        %v4967 = vunpack.c.l.b16 %v4520
        %v4968 = vunpack.c.h.b16 %v4520
        %v4969 = vunpack.c.l.b16 %v4521
        %v4970 = vunpack.c.h.b16 %v4521
        %v4971 = vunpack.c.l.b16 %v4522
        %v4972 = vunpack.c.h.b16 %v4522
        %v4973 = vunpack.c.l.b16 %v4523
        %v4974 = vunpack.c.h.b16 %v4523
        %v4975 = vunpack.c.l.b16 %v4524
        %v4976 = vunpack.c.h.b16 %v4524
        %v4977 = vunpack.c.l.b16 %v4525
        %v4978 = vunpack.c.h.b16 %v4525
        %v4979 = vunpack.c.l.b16 %v4526
        %v4980 = vunpack.c.h.b16 %v4526
        %v4981 = vunpack.c.l.b16 %v4527
        %v4982 = vunpack.c.h.b16 %v4527
        %v4983 = vunpack.c.l.b16 %v4528
        %v4984 = vunpack.c.h.b16 %v4528
        %v4985 = vunpack.c.l.b16 %v4529
        %v4986 = vunpack.c.h.b16 %v4529
        %v4987 = vunpack.c.l.b16 %v4530
        %v4988 = vunpack.c.h.b16 %v4530
        %v4989 = vunpack.c.l.b16 %v4531
        %v4990 = vunpack.c.h.b16 %v4531
        %v4991 = vunpack.c.l.b16 %v4532
        %v4992 = vunpack.c.h.b16 %v4532
        %v4993 = vunpack.c.l.b16 %v4533
        %v4994 = vunpack.c.h.b16 %v4533
        %v4995 = vunpack.c.l.b16 %v4534
        %v4996 = vunpack.c.h.b16 %v4534
        %v4997 = vunpack.c.l.b16 %v4535
        %v4998 = vunpack.c.h.b16 %v4535
        %v4999 = vunpack.c.l.b16 %v4536
        %v5000 = vunpack.c.h.b16 %v4536
        %v5001 = vunpack.c.l.b16 %v4537
        %v5002 = vunpack.c.h.b16 %v4537
        %v5003 = vunpack.c.l.b16 %v4538
        %v5004 = vunpack.c.h.b16 %v4538
        %v5005 = vunpack.c.l.b16 %v4539
        %v5006 = vunpack.c.h.b16 %v4539
        %v5007 = vunpack.c.l.b16 %v4540
        %v5008 = vunpack.c.h.b16 %v4540
        %v5009 = vunpack.c.l.b16 %v4541
        %v5010 = vunpack.c.h.b16 %v4541
        %v5011 = vunpack.c.l.b16 %v4542
        %v5012 = vunpack.c.h.b16 %v4542
        %v5013 = vunpack.c.l.b16 %v4543
        %v5014 = vunpack.c.h.b16 %v4543
        %v5015 = vunpack.c.l.b16 %v4544
        %v5016 = vunpack.c.h.b16 %v4544
        %v5017 = vunpack.c.l.b16 %v4545
        %v5018 = vunpack.c.h.b16 %v4545
        %v5019 = vunpack.c.l.b16 %v4546
        %v5020 = vunpack.c.h.b16 %v4546
        %v5021 = vunpack.c.l.b16 %v4547
        %v5022 = vunpack.c.h.b16 %v4547
        %v5023 = vunpack.c.l.b16 %v4548
        %v5024 = vunpack.c.h.b16 %v4548
        %v5025 = vunpack.c.l.b16 %v4549
        %v5026 = vunpack.c.h.b16 %v4549
        %v5027 = vunpack.c.l.b16 %v4550
        %v5028 = vunpack.c.h.b16 %v4550
        %v5029 = vunpack.c.l.b16 %v4551
        %v5030 = vunpack.c.h.b16 %v4551
        %v5031 = vunpack.c.l.b16 %v4552
        %v5032 = vunpack.c.h.b16 %v4552
        %v5033 = vunpack.c.l.b16 %v4553
        %v5034 = vunpack.c.h.b16 %v4553
        %v5035 = vunpack.c.l.b16 %v4554
        %v5036 = vunpack.c.h.b16 %v4554
        %v5037 = vunpack.c.l.b16 %v4555
        %v5038 = vunpack.c.h.b16 %v4555
        %v5039 = vunpack.c.l.b16 %v4556
        %v5040 = vunpack.c.h.b16 %v4556
        %v5041 = vunpack.c.l.b16 %v4557
        %v5042 = vunpack.c.h.b16 %v4557
        %v5043 = vunpack.c.l.b16 %v4558
        %v5044 = vunpack.c.h.b16 %v4558
        %v5045 = vunpack.c.l.b16 %v4559
        %v5046 = vunpack.c.h.b16 %v4559
        %v5047 = vunpack.c.l.b16 %v4560
        %v5048 = vunpack.c.h.b16 %v4560
        %v5049 = vunpack.c.l.b16 %v4561
        %v5050 = vunpack.c.h.b16 %v4561
        %v5051 = vunpack.c.l.b16 %v4562
        %v5052 = vunpack.c.h.b16 %v4562
        %v5053 = vunpack.c.l.b16 %v4563
        %v5054 = vunpack.c.h.b16 %v4563
        %v5055 = vunpack.c.l.b16 %v4564
        %v5056 = vunpack.c.h.b16 %v4564
        %v5057 = vunpack.c.l.b16 %v4565
        %v5058 = vunpack.c.h.b16 %v4565
        %v5059 = vunpack.c.l.b16 %v4566
        %v5060 = vunpack.c.h.b16 %v4566
        %v5061 = vunpack.c.l.b16 %v4567
        %v5062 = vunpack.c.h.b16 %v4567
        %v5063 = vunpack.c.l.b16 %v4568
        %v5064 = vunpack.c.h.b16 %v4568
        %v5065 = vunpack.c.l.b16 %v4569
        %v5066 = vunpack.c.h.b16 %v4569
        %v5067 = vunpack.c.l.b16 %v4570
        %v5068 = vunpack.c.h.b16 %v4570
        %v5069 = vunpack.c.l.b16 %v4571
        %v5070 = vunpack.c.h.b16 %v4571
        %v5071 = vunpack.c.l.b16 %v4572
        %v5072 = vunpack.c.h.b16 %v4572
        %v5073 = vunpack.c.l.b16 %v4573
        %v5074 = vunpack.c.h.b16 %v4573
        %v5075 = vunpack.c.l.b16 %v4574
        %v5076 = vunpack.c.h.b16 %v4574
        %v5077 = vunpack.c.l.b16 %v4575
        %v5078 = vunpack.c.h.b16 %v4575
        %v5079 = vunpack.c.l.b16 %v4576
        %v5080 = vunpack.c.h.b16 %v4576
        %v5081 = vunpack.c.l.b16 %v4577
        %v5082 = vunpack.c.h.b16 %v4577
        %v5083 = vunpack.c.l.b16 %v4578
        %v5084 = vunpack.c.h.b16 %v4578
        %v5085 = vunpack.c.l.b16 %v4579
        %v5086 = vunpack.c.h.b16 %v4579
        %v5087 = vunpack.c.l.b16 %v4580
        %v5088 = vunpack.c.h.b16 %v4580
        %v5089 = vunpack.c.l.b16 %v4581
        %v5090 = vunpack.c.h.b16 %v4581
        %v5091 = vunpack.c.l.b16 %v4582
        %v5092 = vunpack.c.h.b16 %v4582
        %v5093 = vunpack.c.l.b16 %v4583
        %v5094 = vunpack.c.h.b16 %v4583
        %v5095 = vunpack.c.l.b16 %v4584
        %v5096 = vunpack.c.h.b16 %v4584
        %v5097 = vunpack.c.l.b16 %v4585
        %v5098 = vunpack.c.h.b16 %v4585
        %v5099 = vunpack.c.l.b16 %v4586
        %v5100 = vunpack.c.h.b16 %v4586
        %v5101 = vunpack.c.l.b16 %v4587
        %v5102 = vunpack.c.h.b16 %v4587
        %v5103 = vunpack.c.l.b16 %v4588
        %v5104 = vunpack.c.h.b16 %v4588
        %v5105 = vunpack.c.l.b16 %v4589
        %v5106 = vunpack.c.h.b16 %v4589
        %v5107 = vunpack.c.l.b16 %v4590
        %v5108 = vunpack.c.h.b16 %v4590
        %v5109 = vunpack.c.l.b16 %v4591
        %v5110 = vunpack.c.h.b16 %v4591
        %v5111 = vunpack.c.l.b16 %v4592
        %v5112 = vunpack.c.h.b16 %v4592
        %v5113 = vunpack.c.l.b16 %v4593
        %v5114 = vunpack.c.h.b16 %v4593
        %v5115 = vunpack.c.l.b16 %v4594
        %v5116 = vunpack.c.h.b16 %v4594
        %v5117 = vunpack.c.l.b16 %v4595
        %v5118 = vunpack.c.h.b16 %v4595
        %v5119 = vunpack.c.l.b16 %v4596
        %v5120 = vunpack.c.h.b16 %v4596
        %v5121 = vunpack.c.l.b16 %v4597
        %v5122 = vunpack.c.h.b16 %v4597
        %v5123 = vunpack.c.l.b16 %v4598
        %v5124 = vunpack.c.h.b16 %v4598
        %v5125 = vunpack.c.l.b16 %v4599
        %v5126 = vunpack.c.h.b16 %v4599
        %v5127 = vunpack.c.l.b16 %v4600
        %v5128 = vunpack.c.h.b16 %v4600
        %v5129 = vunpack.c.l.b16 %v4601
        %v5130 = vunpack.c.h.b16 %v4601
        %v5131 = vunpack.c.l.b16 %v4602
        %v5132 = vunpack.c.h.b16 %v4602
        %v5133 = vunpack.c.l.b16 %v4603
        %v5134 = vunpack.c.h.b16 %v4603
        %v5135 = vunpack.c.l.b16 %v4604
        %v5136 = vunpack.c.h.b16 %v4604
        %v5137 = vunpack.c.l.b16 %v4605
        %v5138 = vunpack.c.h.b16 %v4605
        %v5139 = vunpack.c.l.b16 %v4606
        %v5140 = vunpack.c.h.b16 %v4606
        %v5141 = vunpack.c.l.b16 %v4607
        %v5142 = vunpack.c.h.b16 %v4607
        %v5143 = vunpack.c.l.b16 %v4608
        %v5144 = vunpack.c.h.b16 %v4608
        %v5145 = vunpack.c.l.b16 %v4609
        %v5146 = vunpack.c.h.b16 %v4609
        %v5147 = vunpack.c.l.b16 %v4610
        %v5148 = vunpack.c.h.b16 %v4610
        %v5149 = vunpack.c.l.b16 %v4611
        %v5150 = vunpack.c.h.b16 %v4611
        %v5151 = vunpack.c.l.b16 %v4612
        %v5152 = vunpack.c.h.b16 %v4612
        %v5153 = vunpack.c.l.b16 %v4613
        %v5154 = vunpack.c.h.b16 %v4613
        %v5155 = vunpack.c.l.b16 %v4614
        %v5156 = vunpack.c.h.b16 %v4614
        %v5157 = vunpack.c.l.b16 %v4615
        %v5158 = vunpack.c.h.b16 %v4615
        %v5159 = vunpack.c.l.b16 %v4616
        %v5160 = vunpack.c.h.b16 %v4616
        %v5161 = vunpack.c.l.b16 %v4617
        %v5162 = vunpack.c.h.b16 %v4617
        %v5163 = vunpack.c.l.b16 %v4618
        %v5164 = vunpack.c.h.b16 %v4618
        %v5165 = vunpack.c.l.b16 %v4619
        %v5166 = vunpack.c.h.b16 %v4619
        %v5167 = vunpack.c.l.b16 %v4620
        %v5168 = vunpack.c.h.b16 %v4620
        %v5169 = vunpack.c.l.b16 %v4621
        %v5170 = vunpack.c.h.b16 %v4621
        %v5171 = vunpack.c.l.b16 %v4622
        %v5172 = vunpack.c.h.b16 %v4622
        %v5173 = vunpack.c.l.b16 %v4623
        %v5174 = vunpack.c.h.b16 %v4623
        %v5175 = vunpack.c.l.b16 %v4624
        %v5176 = vunpack.c.h.b16 %v4624
        %v5177 = vunpack.c.l.b16 %v4625
        %v5178 = vunpack.c.h.b16 %v4625
        %v5179 = vunpack.c.l.b16 %v4626
        %v5180 = vunpack.c.h.b16 %v4626
        %v5181 = vunpack.c.l.b16 %v4627
        %v5182 = vunpack.c.h.b16 %v4627
        %v5183 = vunpack.c.l.b16 %v4628
        %v5184 = vunpack.c.h.b16 %v4628
        %v5185 = vunpack.c.l.b16 %v4629
        %v5186 = vunpack.c.h.b16 %v4629
        %v5187 = vunpack.c.l.b16 %v4630
        %v5188 = vunpack.c.h.b16 %v4630
        %v5189 = vunpack.c.l.b16 %v4631
        %v5190 = vunpack.c.h.b16 %v4631
        %v5191 = vunpack.c.l.b16 %v4632
        %v5192 = vunpack.c.h.b16 %v4632
        %v5193 = vunpack.c.l.b16 %v4633
        %v5194 = vunpack.c.h.b16 %v4633
        %v5195 = vunpack.c.l.b16 %v4634
        %v5196 = vunpack.c.h.b16 %v4634
        %v5197 = vunpack.c.l.b16 %v4635
        %v5198 = vunpack.c.h.b16 %v4635
        %v5199 = vunpack.c.l.b16 %v4636
        %v5200 = vunpack.c.h.b16 %v4636
        %v5201 = vunpack.c.l.b16 %v4637
        %v5202 = vunpack.c.h.b16 %v4637
        %v5203 = vunpack.c.l.b16 %v4638
        %v5204 = vunpack.c.h.b16 %v4638
        %v5205 = vunpack.c.l.b16 %v4639
        %v5206 = vunpack.c.h.b16 %v4639
        %v5207 = vunpack.c.l.b16 %v4640
        %v5208 = vunpack.c.h.b16 %v4640
        %v5209 = vunpack.c.l.b16 %v4641
        %v5210 = vunpack.c.h.b16 %v4641
        %v5211 = vunpack.c.l.b16 %v4642
        %v5212 = vunpack.c.h.b16 %v4642
        %v5213 = vunpack.c.l.b16 %v4643
        %v5214 = vunpack.c.h.b16 %v4643
        %v5215 = vunpack.c.l.b16 %v4644
        %v5216 = vunpack.c.h.b16 %v4644
        %v5217 = vunpack.c.l.b16 %v4645
        %v5218 = vunpack.c.h.b16 %v4645
        %v5219 = vunpack.c.l.b16 %v4646
        %v5220 = vunpack.c.h.b16 %v4646
        %v5221 = vunpack.c.l.b16 %v4647
        %v5222 = vunpack.c.h.b16 %v4647
        %v5223 = vunpack.c.l.b16 %v4648
        %v5224 = vunpack.c.h.b16 %v4648
        %v5225 = vunpack.c.l.b16 %v4649
        %v5226 = vunpack.c.h.b16 %v4649
        %v5227 = vunpack.c.l.b16 %v4650
        %v5228 = vunpack.c.h.b16 %v4650
        %v5229 = vunpack.c.l.b16 %v4651
        %v5230 = vunpack.c.h.b16 %v4651
        %v5231 = vunpack.c.l.b16 %v4652
        %v5232 = vunpack.c.h.b16 %v4652
        %v5233 = vunpack.c.l.b16 %v4653
        %v5234 = vunpack.c.h.b16 %v4653
        %v5235 = vunpack.c.l.b16 %v4654
        %v5236 = vunpack.c.h.b16 %v4654
        %v5237 = vunpack.c.l.b16 %v4655
        %v5238 = vunpack.c.h.b16 %v4655
        %v5239 = vunpack.c.l.b16 %v4656
        %v5240 = vunpack.c.h.b16 %v4656
        %v5241 = vunpack.c.l.b16 %v4657
        %v5242 = vunpack.c.h.b16 %v4657
        %v5243 = vunpack.c.l.b16 %v4658
        %v5244 = vunpack.c.h.b16 %v4658
        %v5245 = vunpack.c.l.b16 %v4659
        %v5246 = vunpack.c.h.b16 %v4659
        %v5247 = vunpack.c.l.b16 %v4660
        %v5248 = vunpack.c.h.b16 %v4660
        %v5249 = vunpack.c.l.b16 %v4661
        %v5250 = vunpack.c.h.b16 %v4661
        %v5251 = vunpack.c.l.b16 %v4662
        %v5252 = vunpack.c.h.b16 %v4662
        %v5253 = vunpack.c.l.b16 %v4663
        %v5254 = vunpack.c.h.b16 %v4663
        %v5255 = vunpack.c.l.b16 %v4664
        %v5256 = vunpack.c.h.b16 %v4664
        %v5257 = vunpack.c.l.b16 %v4665
        %v5258 = vunpack.c.h.b16 %v4665
        %v5259 = vunpack.c.l.b16 %v4666
        %v5260 = vunpack.c.h.b16 %v4666
        %v5261 = vunpack.c.l.b16 %v4667
        %v5262 = vunpack.c.h.b16 %v4667
        %v5263 = vunpack.c.l.b16 %v4668
        %v5264 = vunpack.c.h.b16 %v4668
        %v5265 = vunpack.c.l.b16 %v4669
        %v5266 = vunpack.c.h.b16 %v4669
        %v5267 = vunpack.c.l.b16 %v4670
        %v5268 = vunpack.c.h.b16 %v4670
        %v5269 = vunpack.c.l.b16 %v4671
        %v5270 = vunpack.c.h.b16 %v4671
        %v5271 = vunpack.c.l.b16 %v4672
        %v5272 = vunpack.c.h.b16 %v4672
        %v5273 = vunpack.c.l.b16 %v4673
        %v5274 = vunpack.c.h.b16 %v4673
        %v5275 = vunpack.c.l.b16 %v4674
        %v5276 = vunpack.c.h.b16 %v4674
        %v5277 = vunpack.c.l.b16 %v4675
        %v5278 = vunpack.c.h.b16 %v4675
        %v5279 = vunpack.c.l.b16 %v4676
        %v5280 = vunpack.c.h.b16 %v4676
        %v5281 = vunpack.c.l.b16 %v4677
        %v5282 = vunpack.c.h.b16 %v4677
        %v5283 = vunpack.c.l.b16 %v4678
        %v5284 = vunpack.c.h.b16 %v4678
        %v5285 = vunpack.c.l.b16 %v4679
        %v5286 = vunpack.c.h.b16 %v4679
        %v5287 = vpack.c.b16 %v4909, %v4903
        %v5288 = vpack.c.b16 %v4910, %v4904
        %v5289 = vpack.c.b16 %v4911, %v4905
        %v5290 = vpack.c.b16 %v4912, %v4906
        %v5291 = vpack.c.b16 %v4913, %v4907
        %v5292 = vpack.c.b16 %v4914, %v4908
        %v5293 = vpack.c.b16 %v4921, %v4915
        %v5294 = vpack.c.b16 %v4922, %v4916
        %v5295 = vpack.c.b16 %v4923, %v4917
        %v5296 = vpack.c.b16 %v4924, %v4918
        %v5297 = vpack.c.b16 %v4925, %v4919
        %v5298 = vpack.c.b16 %v4926, %v4920
        %v5299 = vpack.c.b16 %v4933, %v4927
        %v5300 = vpack.c.b16 %v4934, %v4928
        %v5301 = vpack.c.b16 %v4935, %v4929
        %v5302 = vpack.c.b16 %v4936, %v4930
        %v5303 = vpack.c.b16 %v4937, %v4931
        %v5304 = vpack.c.b16 %v4938, %v4932
        %v5305 = vpack.c.b16 %v4945, %v4939
        %v5306 = vpack.c.b16 %v4946, %v4940
        %v5307 = vpack.c.b16 %v4947, %v4941
        %v5308 = vpack.c.b16 %v4948, %v4942
        %v5309 = vpack.c.b16 %v4949, %v4943
        %v5310 = vpack.c.b16 %v4950, %v4944
        %v5311 = vpack.c.b16 %v4957, %v4951
        %v5312 = vpack.c.b16 %v4958, %v4952
        %v5313 = vpack.c.b16 %v4959, %v4953
        %v5314 = vpack.c.b16 %v4960, %v4954
        %v5315 = vpack.c.b16 %v4961, %v4955
        %v5316 = vpack.c.b16 %v4962, %v4956
        %v5317 = vpack.c.b16 %v4969, %v4963
        %v5318 = vpack.c.b16 %v4970, %v4964
        %v5319 = vpack.c.b16 %v4971, %v4965
        %v5320 = vpack.c.b16 %v4972, %v4966
        %v5321 = vpack.c.b16 %v4973, %v4967
        %v5322 = vpack.c.b16 %v4974, %v4968
        %v5323 = vpack.c.b16 %v4981, %v4975
        %v5324 = vpack.c.b16 %v4982, %v4976
        %v5325 = vpack.c.b16 %v4983, %v4977
        %v5326 = vpack.c.b16 %v4984, %v4978
        %v5327 = vpack.c.b16 %v4985, %v4979
        %v5328 = vpack.c.b16 %v4986, %v4980
        %v5329 = vpack.c.b16 %v4993, %v4987
        %v5330 = vpack.c.b16 %v4994, %v4988
        %v5331 = vpack.c.b16 %v4995, %v4989
        %v5332 = vpack.c.b16 %v4996, %v4990
        %v5333 = vpack.c.b16 %v4997, %v4991
        %v5334 = vpack.c.b16 %v4998, %v4992
        %v5335 = vpack.c.b16 %v5005, %v4999
        %v5336 = vpack.c.b16 %v5006, %v5000
        %v5337 = vpack.c.b16 %v5007, %v5001
        %v5338 = vpack.c.b16 %v5008, %v5002
        %v5339 = vpack.c.b16 %v5009, %v5003
        %v5340 = vpack.c.b16 %v5010, %v5004
        %v5341 = vpack.c.b16 %v5017, %v5011
        %v5342 = vpack.c.b16 %v5018, %v5012
        %v5343 = vpack.c.b16 %v5019, %v5013
        %v5344 = vpack.c.b16 %v5020, %v5014
        %v5345 = vpack.c.b16 %v5021, %v5015
        %v5346 = vpack.c.b16 %v5022, %v5016
        %v5347 = vpack.c.b16 %v5029, %v5023
        %v5348 = vpack.c.b16 %v5030, %v5024
        %v5349 = vpack.c.b16 %v5031, %v5025
        %v5350 = vpack.c.b16 %v5032, %v5026
        %v5351 = vpack.c.b16 %v5033, %v5027
        %v5352 = vpack.c.b16 %v5034, %v5028
        %v5353 = vpack.c.b16 %v5041, %v5035
        %v5354 = vpack.c.b16 %v5042, %v5036
        %v5355 = vpack.c.b16 %v5043, %v5037
        %v5356 = vpack.c.b16 %v5044, %v5038
        %v5357 = vpack.c.b16 %v5045, %v5039
        %v5358 = vpack.c.b16 %v5046, %v5040
        %v5359 = vpack.c.b16 %v5053, %v5047
        %v5360 = vpack.c.b16 %v5054, %v5048
        %v5361 = vpack.c.b16 %v5055, %v5049
        %v5362 = vpack.c.b16 %v5056, %v5050
        %v5363 = vpack.c.b16 %v5057, %v5051
        %v5364 = vpack.c.b16 %v5058, %v5052
        %v5365 = vpack.c.b16 %v5065, %v5059
        %v5366 = vpack.c.b16 %v5066, %v5060
        %v5367 = vpack.c.b16 %v5067, %v5061
        %v5368 = vpack.c.b16 %v5068, %v5062
        %v5369 = vpack.c.b16 %v5069, %v5063
        %v5370 = vpack.c.b16 %v5070, %v5064
        %v5371 = vpack.c.b16 %v5077, %v5071
        %v5372 = vpack.c.b16 %v5078, %v5072
        %v5373 = vpack.c.b16 %v5079, %v5073
        %v5374 = vpack.c.b16 %v5080, %v5074
        %v5375 = vpack.c.b16 %v5081, %v5075
        %v5376 = vpack.c.b16 %v5082, %v5076
        %v5377 = vpack.c.b16 %v5089, %v5083
        %v5378 = vpack.c.b16 %v5090, %v5084
        %v5379 = vpack.c.b16 %v5091, %v5085
        %v5380 = vpack.c.b16 %v5092, %v5086
        %v5381 = vpack.c.b16 %v5093, %v5087
        %v5382 = vpack.c.b16 %v5094, %v5088
        %v5383 = vpack.c.b16 %v5101, %v5095
        %v5384 = vpack.c.b16 %v5102, %v5096
        %v5385 = vpack.c.b16 %v5103, %v5097
        %v5386 = vpack.c.b16 %v5104, %v5098
        %v5387 = vpack.c.b16 %v5105, %v5099
        %v5388 = vpack.c.b16 %v5106, %v5100
        %v5389 = vpack.c.b16 %v5113, %v5107
        %v5390 = vpack.c.b16 %v5114, %v5108
        %v5391 = vpack.c.b16 %v5115, %v5109
        %v5392 = vpack.c.b16 %v5116, %v5110
        %v5393 = vpack.c.b16 %v5117, %v5111
        %v5394 = vpack.c.b16 %v5118, %v5112
        %v5395 = vpack.c.b16 %v5125, %v5119
        %v5396 = vpack.c.b16 %v5126, %v5120
        %v5397 = vpack.c.b16 %v5127, %v5121
        %v5398 = vpack.c.b16 %v5128, %v5122
        %v5399 = vpack.c.b16 %v5129, %v5123
        %v5400 = vpack.c.b16 %v5130, %v5124
        %v5401 = vpack.c.b16 %v5137, %v5131
        %v5402 = vpack.c.b16 %v5138, %v5132
        %v5403 = vpack.c.b16 %v5139, %v5133
        %v5404 = vpack.c.b16 %v5140, %v5134
        %v5405 = vpack.c.b16 %v5141, %v5135
        %v5406 = vpack.c.b16 %v5142, %v5136
        %v5407 = vpack.c.b16 %v5149, %v5143
        %v5408 = vpack.c.b16 %v5150, %v5144
        %v5409 = vpack.c.b16 %v5151, %v5145
        %v5410 = vpack.c.b16 %v5152, %v5146
        %v5411 = vpack.c.b16 %v5153, %v5147
        %v5412 = vpack.c.b16 %v5154, %v5148
        %v5413 = vpack.c.b16 %v5161, %v5155
        %v5414 = vpack.c.b16 %v5162, %v5156
        %v5415 = vpack.c.b16 %v5163, %v5157
        %v5416 = vpack.c.b16 %v5164, %v5158
        %v5417 = vpack.c.b16 %v5165, %v5159
        %v5418 = vpack.c.b16 %v5166, %v5160
        %v5419 = vpack.c.b16 %v5173, %v5167
        %v5420 = vpack.c.b16 %v5174, %v5168
        %v5421 = vpack.c.b16 %v5175, %v5169
        %v5422 = vpack.c.b16 %v5176, %v5170
        %v5423 = vpack.c.b16 %v5177, %v5171
        %v5424 = vpack.c.b16 %v5178, %v5172
        %v5425 = vpack.c.b16 %v5185, %v5179
        %v5426 = vpack.c.b16 %v5186, %v5180
        %v5427 = vpack.c.b16 %v5187, %v5181
        %v5428 = vpack.c.b16 %v5188, %v5182
        %v5429 = vpack.c.b16 %v5189, %v5183
        %v5430 = vpack.c.b16 %v5190, %v5184
        %v5431 = vpack.c.b16 %v5197, %v5191
        %v5432 = vpack.c.b16 %v5198, %v5192
        %v5433 = vpack.c.b16 %v5199, %v5193
        %v5434 = vpack.c.b16 %v5200, %v5194
        %v5435 = vpack.c.b16 %v5201, %v5195
        %v5436 = vpack.c.b16 %v5202, %v5196
        %v5437 = vpack.c.b16 %v5209, %v5203
        %v5438 = vpack.c.b16 %v5210, %v5204
        %v5439 = vpack.c.b16 %v5211, %v5205
        %v5440 = vpack.c.b16 %v5212, %v5206
        %v5441 = vpack.c.b16 %v5213, %v5207
        %v5442 = vpack.c.b16 %v5214, %v5208
        %v5443 = vpack.c.b16 %v5221, %v5215
        %v5444 = vpack.c.b16 %v5222, %v5216
        %v5445 = vpack.c.b16 %v5223, %v5217
        %v5446 = vpack.c.b16 %v5224, %v5218
        %v5447 = vpack.c.b16 %v5225, %v5219
        %v5448 = vpack.c.b16 %v5226, %v5220
        %v5449 = vpack.c.b16 %v5233, %v5227
        %v5450 = vpack.c.b16 %v5234, %v5228
        %v5451 = vpack.c.b16 %v5235, %v5229
        %v5452 = vpack.c.b16 %v5236, %v5230
        %v5453 = vpack.c.b16 %v5237, %v5231
        %v5454 = vpack.c.b16 %v5238, %v5232
        %v5455 = vpack.c.b16 %v5245, %v5239
        %v5456 = vpack.c.b16 %v5246, %v5240
        %v5457 = vpack.c.b16 %v5247, %v5241
        %v5458 = vpack.c.b16 %v5248, %v5242
        %v5459 = vpack.c.b16 %v5249, %v5243
        %v5460 = vpack.c.b16 %v5250, %v5244
        %v5461 = vpack.c.b16 %v5257, %v5251
        %v5462 = vpack.c.b16 %v5258, %v5252
        %v5463 = vpack.c.b16 %v5259, %v5253
        %v5464 = vpack.c.b16 %v5260, %v5254
        %v5465 = vpack.c.b16 %v5261, %v5255
        %v5466 = vpack.c.b16 %v5262, %v5256
        %v5467 = vpack.c.b16 %v5269, %v5263
        %v5468 = vpack.c.b16 %v5270, %v5264
        %v5469 = vpack.c.b16 %v5271, %v5265
        %v5470 = vpack.c.b16 %v5272, %v5266
        %v5471 = vpack.c.b16 %v5273, %v5267
        %v5472 = vpack.c.b16 %v5274, %v5268
        %v5473 = vpack.c.b16 %v5281, %v5275
        %v5474 = vpack.c.b16 %v5282, %v5276
        %v5475 = vpack.c.b16 %v5283, %v5277
        %v5476 = vpack.c.b16 %v5284, %v5278
        %v5477 = vpack.c.b16 %v5285, %v5279
        %v5478 = vpack.c.b16 %v5286, %v5280
        %5671 = vmatprep.subr.bf16.mxu0 %v5330
        %5672 = vmatpush1.bf16.msra.mxu0 %v5329
        %5673 = vmatprep.subr.bf16.mxu0 %v5324
        %5674 = vmatpush1.bf16.msra.mxu0 %v5323
        %5675 = vmatprep.subr.bf16.mxu0 %v5318
        %5676 = vmatpush1.bf16.msra.mxu0 %v5317
        %5677 = vmatprep.subr.bf16.mxu0 %v5312
        %5678 = vmatpush1.bf16.msra.mxu0 %v5311
        %5679 = vmatprep.subr.bf16.mxu0 %v5306
        %5680 = vmatpush1.bf16.msra.mxu0 %v5305
        %5681 = vmatprep.subr.bf16.mxu0 %v5300
        %5682 = vmatpush1.bf16.msra.mxu0 %v5299
        %5683 = vmatprep.subr.bf16.mxu0 %v5294
        %5684 = vmatpush1.bf16.msra.mxu0 %v5293
        %5685 = vmatprep.subr.bf16.mxu0 %v5288
        %5686 = vmatpush1.bf16.msra.mxu0 %v5287
        %5687 = vmatprep.subr.bf16.mxu0 %v5378
        %5688 = vmatpush2.bf16.msra.mxu0 %v5377
        %5689 = vmatprep.subr.bf16.mxu0 %v5372
        %5690 = vmatpush2.bf16.msra.mxu0 %v5371
        %5691 = vmatprep.subr.bf16.mxu0 %v5366
        %5692 = vmatpush2.bf16.msra.mxu0 %v5365
        %5693 = vmatprep.subr.bf16.mxu0 %v5360
        %5694 = vmatpush2.bf16.msra.mxu0 %v5359
        %5695 = vmatprep.subr.bf16.mxu0 %v5354
        %5696 = vmatpush2.bf16.msra.mxu0 %v5353
        %5697 = vmatprep.subr.bf16.mxu0 %v5348
        %5698 = vmatpush2.bf16.msra.mxu0 %v5347
        %5699 = vmatprep.subr.bf16.mxu0 %v5342
        %5700 = vmatpush2.bf16.msra.mxu0 %v5341
        %5701 = vmatprep.subr.bf16.mxu0 %v5336
        %5702 = vmatpush2.bf16.msra.mxu0 %v5335
        %5703 = vmatprep.mubr.bf16.mxu0 %v4481
        %5704 = vmatmul.mubr.bf16.gmra.mxu0 %v4480
        %v5705 = vpop.f32.mrf.mxu0
        %v5706 = vadd.f32 %v4684, %v5705
        %v5707 = vpop.f32.mrf.mxu0
        %v5708 = vadd.f32 %v4688, %v5707
        %v5709 = vpop.f32.mrf.mxu0
        %v5710 = vadd.f32 %v4684, %v5709
        %v5711 = vpop.f32.mrf.mxu0
        %v5712 = vadd.f32 %v4688, %v5711
        %5713 = vmatprep.mubr.bf16.mxu0 %v4485
        %5714 = vmatmul.mubr.bf16.gmra.mxu0 %v4484
        %v5715 = vpop.f32.mrf.mxu0
        %v5716 = vadd.f32 %v4684, %v5715
        %v5717 = vpop.f32.mrf.mxu0
        %v5718 = vadd.f32 %v4688, %v5717
        %v5719 = vpop.f32.mrf.mxu0
        %v5720 = vadd.f32 %v4684, %v5719
        %v5721 = vpop.f32.mrf.mxu0
        %v5722 = vadd.f32 %v4688, %v5721
        %5723 = vdwg.mxu0
        %5724 = vmatprep.subr.bf16.mxu0 %v5426
        %5725 = vmatpush1.bf16.msra.mxu0 %v5425
        %5726 = vmatprep.subr.bf16.mxu0 %v5420
        %5727 = vmatpush1.bf16.msra.mxu0 %v5419
        %5728 = vmatprep.subr.bf16.mxu0 %v5414
        %5729 = vmatpush1.bf16.msra.mxu0 %v5413
        %5730 = vmatprep.subr.bf16.mxu0 %v5408
        %5731 = vmatpush1.bf16.msra.mxu0 %v5407
        %5732 = vmatprep.subr.bf16.mxu0 %v5402
        %5733 = vmatpush1.bf16.msra.mxu0 %v5401
        %5734 = vmatprep.subr.bf16.mxu0 %v5396
        %5735 = vmatpush1.bf16.msra.mxu0 %v5395
        %5736 = vmatprep.subr.bf16.mxu0 %v5390
        %5737 = vmatpush1.bf16.msra.mxu0 %v5389
        %5738 = vmatprep.subr.bf16.mxu0 %v5384
        %5739 = vmatpush1.bf16.msra.mxu0 %v5383
        %5740 = vmatprep.subr.bf16.mxu0 %v5474
        %5741 = vmatpush2.bf16.msra.mxu0 %v5473
        %5742 = vmatprep.subr.bf16.mxu0 %v5468
        %5743 = vmatpush2.bf16.msra.mxu0 %v5467
        %5744 = vmatprep.subr.bf16.mxu0 %v5462
        %5745 = vmatpush2.bf16.msra.mxu0 %v5461
        %5746 = vmatprep.subr.bf16.mxu0 %v5456
        %5747 = vmatpush2.bf16.msra.mxu0 %v5455
        %5748 = vmatprep.subr.bf16.mxu0 %v5450
        %5749 = vmatpush2.bf16.msra.mxu0 %v5449
        %5750 = vmatprep.subr.bf16.mxu0 %v5444
        %5751 = vmatpush2.bf16.msra.mxu0 %v5443
        %5752 = vmatprep.subr.bf16.mxu0 %v5438
        %5753 = vmatpush2.bf16.msra.mxu0 %v5437
        %5754 = vmatprep.subr.bf16.mxu0 %v5432
        %5755 = vmatpush2.bf16.msra.mxu0 %v5431
        %5756 = vmatprep.mubr.bf16.mxu0 %v4483
        %5757 = vmatmul.mubr.bf16.gmra.mxu0 %v4482
        %v5758 = vpop.f32.mrf.mxu0
        %v5759 = vadd.f32 %v5706, %v5758
        %v5760 = vpop.f32.mrf.mxu0
        %v5761 = vadd.f32 %v5708, %v5760
        %v5762 = vpop.f32.mrf.mxu0
        %v5763 = vadd.f32 %v5710, %v5762
        %v5764 = vpop.f32.mrf.mxu0
        %v5765 = vadd.f32 %v5712, %v5764
        %5766 = vmatprep.mubr.bf16.mxu0 %v4487
        %5767 = vmatmul.mubr.bf16.gmra.mxu0 %v4486
        %v5768 = vpop.f32.mrf.mxu0
        %v5769 = vadd.f32 %v5716, %v5768
        %v5770 = vpop.f32.mrf.mxu0
        %v5771 = vadd.f32 %v5718, %v5770
        %v5772 = vpop.f32.mrf.mxu0
        %v5773 = vadd.f32 %v5720, %v5772
        %v5774 = vpop.f32.mrf.mxu0
        %v5775 = vadd.f32 %v5722, %v5774
        %5776 = vdwg.mxu0
        %5777 = vmatprep.subr.bf16.mxu0 %v5332
        %5778 = vmatpush1.bf16.msra.mxu0 %v5331
        %5779 = vmatprep.subr.bf16.mxu0 %v5326
        %5780 = vmatpush1.bf16.msra.mxu0 %v5325
        %5781 = vmatprep.subr.bf16.mxu0 %v5320
        %5782 = vmatpush1.bf16.msra.mxu0 %v5319
        %5783 = vmatprep.subr.bf16.mxu0 %v5314
        %5784 = vmatpush1.bf16.msra.mxu0 %v5313
        %5785 = vmatprep.subr.bf16.mxu0 %v5308
        %5786 = vmatpush1.bf16.msra.mxu0 %v5307
        %5787 = vmatprep.subr.bf16.mxu0 %v5302
        %5788 = vmatpush1.bf16.msra.mxu0 %v5301
        %5789 = vmatprep.subr.bf16.mxu0 %v5296
        %5790 = vmatpush1.bf16.msra.mxu0 %v5295
        %5791 = vmatprep.subr.bf16.mxu0 %v5290
        %5792 = vmatpush1.bf16.msra.mxu0 %v5289
        %5793 = vmatprep.subr.bf16.mxu0 %v5380
        %5794 = vmatpush2.bf16.msra.mxu0 %v5379
        %5795 = vmatprep.subr.bf16.mxu0 %v5374
        %5796 = vmatpush2.bf16.msra.mxu0 %v5373
        %5797 = vmatprep.subr.bf16.mxu0 %v5368
        %5798 = vmatpush2.bf16.msra.mxu0 %v5367
        %5799 = vmatprep.subr.bf16.mxu0 %v5362
        %5800 = vmatpush2.bf16.msra.mxu0 %v5361
        %5801 = vmatprep.subr.bf16.mxu0 %v5356
        %5802 = vmatpush2.bf16.msra.mxu0 %v5355
        %5803 = vmatprep.subr.bf16.mxu0 %v5350
        %5804 = vmatpush2.bf16.msra.mxu0 %v5349
        %5805 = vmatprep.subr.bf16.mxu0 %v5344
        %5806 = vmatpush2.bf16.msra.mxu0 %v5343
        %5807 = vmatprep.subr.bf16.mxu0 %v5338
        %5808 = vmatpush2.bf16.msra.mxu0 %v5337
        %5809 = vmatprep.mubr.bf16.mxu0 %v4481
        %5810 = vmatmul.mubr.bf16.gmra.mxu0 %v4480
        %v5811 = vpop.f32.mrf.mxu0
        %v5812 = vadd.f32 %v4692, %v5811
        %v5813 = vpop.f32.mrf.mxu0
        %v5814 = vadd.f32 %v4696, %v5813
        %v5815 = vpop.f32.mrf.mxu0
        %v5816 = vadd.f32 %v4692, %v5815
        %v5817 = vpop.f32.mrf.mxu0
        %v5818 = vadd.f32 %v4696, %v5817
        %5819 = vmatprep.mubr.bf16.mxu0 %v4485
        %5820 = vmatmul.mubr.bf16.gmra.mxu0 %v4484
        %v5821 = vpop.f32.mrf.mxu0
        %v5822 = vadd.f32 %v4692, %v5821
        %v5823 = vpop.f32.mrf.mxu0
        %v5824 = vadd.f32 %v4696, %v5823
        %v5825 = vpop.f32.mrf.mxu0
        %v5826 = vadd.f32 %v4692, %v5825
        %v5827 = vpop.f32.mrf.mxu0
        %v5828 = vadd.f32 %v4696, %v5827
        %5829 = vdwg.mxu0
        %5830 = vmatprep.subr.bf16.mxu0 %v5428
        %5831 = vmatpush1.bf16.msra.mxu0 %v5427
        %5832 = vmatprep.subr.bf16.mxu0 %v5422
        %5833 = vmatpush1.bf16.msra.mxu0 %v5421
        %5834 = vmatprep.subr.bf16.mxu0 %v5416
        %5835 = vmatpush1.bf16.msra.mxu0 %v5415
        %5836 = vmatprep.subr.bf16.mxu0 %v5410
        %5837 = vmatpush1.bf16.msra.mxu0 %v5409
        %5838 = vmatprep.subr.bf16.mxu0 %v5404
        %5839 = vmatpush1.bf16.msra.mxu0 %v5403
        %5840 = vmatprep.subr.bf16.mxu0 %v5398
        %5841 = vmatpush1.bf16.msra.mxu0 %v5397
        %5842 = vmatprep.subr.bf16.mxu0 %v5392
        %5843 = vmatpush1.bf16.msra.mxu0 %v5391
        %5844 = vmatprep.subr.bf16.mxu0 %v5386
        %5845 = vmatpush1.bf16.msra.mxu0 %v5385
        %5846 = vmatprep.subr.bf16.mxu0 %v5476
        %5847 = vmatpush2.bf16.msra.mxu0 %v5475
        %5848 = vmatprep.subr.bf16.mxu0 %v5470
        %5849 = vmatpush2.bf16.msra.mxu0 %v5469
        %5850 = vmatprep.subr.bf16.mxu0 %v5464
        %5851 = vmatpush2.bf16.msra.mxu0 %v5463
        %5852 = vmatprep.subr.bf16.mxu0 %v5458
        %5853 = vmatpush2.bf16.msra.mxu0 %v5457
        %5854 = vmatprep.subr.bf16.mxu0 %v5452
        %5855 = vmatpush2.bf16.msra.mxu0 %v5451
        %5856 = vmatprep.subr.bf16.mxu0 %v5446
        %5857 = vmatpush2.bf16.msra.mxu0 %v5445
        %5858 = vmatprep.subr.bf16.mxu0 %v5440
        %5859 = vmatpush2.bf16.msra.mxu0 %v5439
        %5860 = vmatprep.subr.bf16.mxu0 %v5434
        %5861 = vmatpush2.bf16.msra.mxu0 %v5433
        %5862 = vmatprep.mubr.bf16.mxu0 %v4483
        %5863 = vmatmul.mubr.bf16.gmra.mxu0 %v4482
        %v5864 = vpop.f32.mrf.mxu0
        %v5865 = vadd.f32 %v5812, %v5864
        %v5866 = vpop.f32.mrf.mxu0
        %v5867 = vadd.f32 %v5814, %v5866
        %v5868 = vpop.f32.mrf.mxu0
        %v5869 = vadd.f32 %v5816, %v5868
        %v5870 = vpop.f32.mrf.mxu0
        %v5871 = vadd.f32 %v5818, %v5870
        %5872 = vmatprep.mubr.bf16.mxu0 %v4487
        %5873 = vmatmul.mubr.bf16.gmra.mxu0 %v4486
        %v5874 = vpop.f32.mrf.mxu0
        %v5875 = vadd.f32 %v5822, %v5874
        %v5876 = vpop.f32.mrf.mxu0
        %v5877 = vadd.f32 %v5824, %v5876
        %v5878 = vpop.f32.mrf.mxu0
        %v5879 = vadd.f32 %v5826, %v5878
        %v5880 = vpop.f32.mrf.mxu0
        %v5881 = vadd.f32 %v5828, %v5880
        %5882 = vdwg.mxu0
        %5883 = vmatprep.subr.bf16.mxu0 %v5334
        %5884 = vmatpush1.bf16.msra.mxu0 %v5333
        %5885 = vmatprep.subr.bf16.mxu0 %v5328
        %5886 = vmatpush1.bf16.msra.mxu0 %v5327
        %5887 = vmatprep.subr.bf16.mxu0 %v5322
        %5888 = vmatpush1.bf16.msra.mxu0 %v5321
        %5889 = vmatprep.subr.bf16.mxu0 %v5316
        %5890 = vmatpush1.bf16.msra.mxu0 %v5315
        %5891 = vmatprep.subr.bf16.mxu0 %v5310
        %5892 = vmatpush1.bf16.msra.mxu0 %v5309
        %5893 = vmatprep.subr.bf16.mxu0 %v5304
        %5894 = vmatpush1.bf16.msra.mxu0 %v5303
        %5895 = vmatprep.subr.bf16.mxu0 %v5298
        %5896 = vmatpush1.bf16.msra.mxu0 %v5297
        %5897 = vmatprep.subr.bf16.mxu0 %v5292
        %5898 = vmatpush1.bf16.msra.mxu0 %v5291
        %5899 = vmatprep.subr.bf16.mxu0 %v5382
        %5900 = vmatpush2.bf16.msra.mxu0 %v5381
        %5901 = vmatprep.subr.bf16.mxu0 %v5376
        %5902 = vmatpush2.bf16.msra.mxu0 %v5375
        %5903 = vmatprep.subr.bf16.mxu0 %v5370
        %5904 = vmatpush2.bf16.msra.mxu0 %v5369
        %5905 = vmatprep.subr.bf16.mxu0 %v5364
        %5906 = vmatpush2.bf16.msra.mxu0 %v5363
        %5907 = vmatprep.subr.bf16.mxu0 %v5358
        %5908 = vmatpush2.bf16.msra.mxu0 %v5357
        %5909 = vmatprep.subr.bf16.mxu0 %v5352
        %5910 = vmatpush2.bf16.msra.mxu0 %v5351
        %5911 = vmatprep.subr.bf16.mxu0 %v5346
        %5912 = vmatpush2.bf16.msra.mxu0 %v5345
        %5913 = vmatprep.subr.bf16.mxu0 %v5340
        %5914 = vmatpush2.bf16.msra.mxu0 %v5339
        %5915 = vmatprep.mubr.bf16.mxu0 %v4481
        %5916 = vmatmul.mubr.bf16.gmra.mxu0 %v4480
        %v5917 = vpop.f32.mrf.mxu0
        %v5918 = vadd.f32 %v4700, %v5917
        %v5919 = vpop.f32.mrf.mxu0
        %v5920 = vadd.f32 %v4704, %v5919
        %v5921 = vpop.f32.mrf.mxu0
        %v5922 = vadd.f32 %v4700, %v5921
        %v5923 = vpop.f32.mrf.mxu0
        %v5924 = vadd.f32 %v4704, %v5923
        %5925 = vmatprep.mubr.bf16.mxu0 %v4485
        %5926 = vmatmul.mubr.bf16.gmra.mxu0 %v4484
        %v5927 = vpop.f32.mrf.mxu0
        %v5928 = vadd.f32 %v4700, %v5927
        %v5929 = vpop.f32.mrf.mxu0
        %v5930 = vadd.f32 %v4704, %v5929
        %v5931 = vpop.f32.mrf.mxu0
        %v5932 = vadd.f32 %v4700, %v5931
        %v5933 = vpop.f32.mrf.mxu0
        %v5934 = vadd.f32 %v4704, %v5933
        %5935 = vdwg.mxu0
        %5936 = vmatprep.subr.bf16.mxu0 %v5430
        %5937 = vmatpush1.bf16.msra.mxu0 %v5429
        %5938 = vmatprep.subr.bf16.mxu0 %v5424
        %5939 = vmatpush1.bf16.msra.mxu0 %v5423
        %5940 = vmatprep.subr.bf16.mxu0 %v5418
        %5941 = vmatpush1.bf16.msra.mxu0 %v5417
        %5942 = vmatprep.subr.bf16.mxu0 %v5412
        %5943 = vmatpush1.bf16.msra.mxu0 %v5411
        %5944 = vmatprep.subr.bf16.mxu0 %v5406
        %5945 = vmatpush1.bf16.msra.mxu0 %v5405
        %5946 = vmatprep.subr.bf16.mxu0 %v5400
        %5947 = vmatpush1.bf16.msra.mxu0 %v5399
        %5948 = vmatprep.subr.bf16.mxu0 %v5394
        %5949 = vmatpush1.bf16.msra.mxu0 %v5393
        %5950 = vmatprep.subr.bf16.mxu0 %v5388
        %5951 = vmatpush1.bf16.msra.mxu0 %v5387
        %5952 = vmatprep.subr.bf16.mxu0 %v5478
        %5953 = vmatpush2.bf16.msra.mxu0 %v5477
        %5954 = vmatprep.subr.bf16.mxu0 %v5472
        %5955 = vmatpush2.bf16.msra.mxu0 %v5471
        %5956 = vmatprep.subr.bf16.mxu0 %v5466
        %5957 = vmatpush2.bf16.msra.mxu0 %v5465
        %5958 = vmatprep.subr.bf16.mxu0 %v5460
        %5959 = vmatpush2.bf16.msra.mxu0 %v5459
        %5960 = vmatprep.subr.bf16.mxu0 %v5454
        %5961 = vmatpush2.bf16.msra.mxu0 %v5453
        %5962 = vmatprep.subr.bf16.mxu0 %v5448
        %5963 = vmatpush2.bf16.msra.mxu0 %v5447
        %5964 = vmatprep.subr.bf16.mxu0 %v5442
        %5965 = vmatpush2.bf16.msra.mxu0 %v5441
        %5966 = vmatprep.subr.bf16.mxu0 %v5436
        %5967 = vmatpush2.bf16.msra.mxu0 %v5435
        %5968 = vmatprep.mubr.bf16.mxu0 %v4483
        %5969 = vmatmul.mubr.bf16.gmra.mxu0 %v4482
        %v5970 = vpop.f32.mrf.mxu0
        %v5971 = vadd.f32 %v5918, %v5970
        %v5972 = vpop.f32.mrf.mxu0
        %v5973 = vadd.f32 %v5920, %v5972
        %v5974 = vpop.f32.mrf.mxu0
        %v5975 = vadd.f32 %v5922, %v5974
        %v5976 = vpop.f32.mrf.mxu0
        %v5977 = vadd.f32 %v5924, %v5976
        %5978 = vmatprep.mubr.bf16.mxu0 %v4487
        %5979 = vmatmul.mubr.bf16.gmra.mxu0 %v4486
        %v5980 = vpop.f32.mrf.mxu0
        %v5981 = vadd.f32 %v5928, %v5980
        %v5982 = vpop.f32.mrf.mxu0
        %v5983 = vadd.f32 %v5930, %v5982
        %v5984 = vpop.f32.mrf.mxu0
        %v5985 = vadd.f32 %v5932, %v5984
        %v5986 = vpop.f32.mrf.mxu0
        %v5987 = vadd.f32 %v5934, %v5986
        %5988 = vdwg.mxu0
        %v5989 = vmul.f32 %v5759, %v5759
        %v5990 = vmul.f32 %v5761, %v5761
        %v5991 = vmul.f32 %v5865, %v5865
        %v5992 = vmul.f32 %v5867, %v5867
        %v5993 = vmul.f32 %v5971, %v5971
        %v5994 = vmul.f32 %v5973, %v5973
        %v5995 = vmul.f32 %v5763, %v5763
        %v5996 = vmul.f32 %v5765, %v5765
        %v5997 = vmul.f32 %v5869, %v5869
        %v5998 = vmul.f32 %v5871, %v5871
        %v5999 = vmul.f32 %v5975, %v5975
        %v6000 = vmul.f32 %v5977, %v5977
        %v6001 = vmul.f32 %v5769, %v5769
        %v6002 = vmul.f32 %v5771, %v5771
        %v6003 = vmul.f32 %v5875, %v5875
        %v6004 = vmul.f32 %v5877, %v5877
        %v6005 = vmul.f32 %v5981, %v5981
        %v6006 = vmul.f32 %v5983, %v5983
        %v6007 = vmul.f32 %v5773, %v5773
        %v6008 = vmul.f32 %v5775, %v5775
        %v6009 = vmul.f32 %v5879, %v5879
        %v6010 = vmul.f32 %v5881, %v5881
        %v6011 = vmul.f32 %v5985, %v5985
        %v6012 = vmul.f32 %v5987, %v5987
        %v6013 = vadd.f32 %v5989, %v5990
        %v6014 = vadd.f32 %v6013, %v5991
        %v6015 = vadd.f32 %v6014, %v5992
        %v6016 = vadd.f32 %v6015, %v5993
        %v6017 = vadd.f32 %v6016, %v5994
        %6018 = vadd.xlane.f32.xlu0 %v6017
        %v6019 = vpop.xlane.xlu0 %6018
        %v6020 = vadd.f32 %v5995, %v5996
        %v6021 = vadd.f32 %v6020, %v5997
        %v6022 = vadd.f32 %v6021, %v5998
        %v6023 = vadd.f32 %v6022, %v5999
        %v6024 = vadd.f32 %v6023, %v6000
        %6025 = vadd.xlane.f32.xlu0 %v6024
        %v6026 = vpop.xlane.xlu0 %6025
        %v6027 = vadd.f32 %v6001, %v6002
        %v6028 = vadd.f32 %v6027, %v6003
        %v6029 = vadd.f32 %v6028, %v6004
        %v6030 = vadd.f32 %v6029, %v6005
        %v6031 = vadd.f32 %v6030, %v6006
        %6032 = vadd.xlane.f32.xlu0 %v6031
        %v6033 = vpop.xlane.xlu0 %6032
        %v6034 = vadd.f32 %v6007, %v6008
        %v6035 = vadd.f32 %v6034, %v6009
        %v6036 = vadd.f32 %v6035, %v6010
        %v6037 = vadd.f32 %v6036, %v6011
        %v6038 = vadd.f32 %v6037, %v6012
        %6039 = vadd.xlane.f32.xlu0 %v6038
        %v6040 = vpop.xlane.xlu0 %6039
        %v6041 = vadd.f32 %v6019, 1e-24
        %v6042 = vadd.f32 %v6026, 1e-24
        %v6043 = vadd.f32 %v6033, 1e-24
        %v6044 = vadd.f32 %v6040, 1e-24
        %v6045 = vrsqrt.pop %v6041
        %v6046 = vrsqrt.pop %v6042
        %v6047 = vrsqrt.pop %v6043
        %v6048 = vrsqrt.pop %v6044
        %v6049 = vmul.f32 %v5759, %v6045
        %v6050 = vmul.f32 %v5761, %v6045
        %v6051 = vmul.f32 %v5865, %v6045
        %v6052 = vmul.f32 %v5867, %v6045
        %v6053 = vmul.f32 %v5971, %v6045
        %v6054 = vmul.f32 %v5973, %v6045
        %v6055 = vmul.f32 %v5763, %v6046
        %v6056 = vmul.f32 %v5765, %v6046
        %v6057 = vmul.f32 %v5869, %v6046
        %v6058 = vmul.f32 %v5871, %v6046
        %v6059 = vmul.f32 %v5975, %v6046
        %v6060 = vmul.f32 %v5977, %v6046
        %v6061 = vmul.f32 %v5769, %v6047
        %v6062 = vmul.f32 %v5771, %v6047
        %v6063 = vmul.f32 %v5875, %v6047
        %v6064 = vmul.f32 %v5877, %v6047
        %v6065 = vmul.f32 %v5981, %v6047
        %v6066 = vmul.f32 %v5983, %v6047
        %v6067 = vmul.f32 %v5773, %v6048
        %v6068 = vmul.f32 %v5775, %v6048
        %v6069 = vmul.f32 %v5879, %v6048
        %v6070 = vmul.f32 %v5881, %v6048
        %v6071 = vmul.f32 %v5985, %v6048
        %v6072 = vmul.f32 %v5987, %v6048
        %6073 = vst [vmem:[%s656] sm:$0xff] %v6049
        %6074 = vst [vmem:[%s656 + $0x8] sm:$0xff] %v6050
        %6075 = vst [vmem:[%s656 + $0x10] sm:$0xff] %v6051
        %6076 = vst [vmem:[%s656 + $0x18] sm:$0xff] %v6052
        %6077 = vst [vmem:[%s656 + $0x20] sm:$0xff] %v6053
        %6078 = vst [vmem:[%s656 + $0x28] sm:$0xff] %v6054
        %6079 = vst [vmem:[%s656 + $0x30] sm:$0xff] %v6055
        %6080 = vst [vmem:[%s656 + $0x38] sm:$0xff] %v6056
        %6081 = vst [vmem:[%s656 + $0x40] sm:$0xff] %v6057
        %6082 = vst [vmem:[%s656 + $0x48] sm:$0xff] %v6058
        %6083 = vst [vmem:[%s656 + $0x50] sm:$0xff] %v6059
        %6084 = vst [vmem:[%s656 + $0x58] sm:$0xff] %v6060
        %6085 = vst [vmem:[%s656 + $0x60] sm:$0xff] %v6061
        %6086 = vst [vmem:[%s656 + $0x68] sm:$0xff] %v6062
        %6087 = vst [vmem:[%s656 + $0x70] sm:$0xff] %v6063
        %6088 = vst [vmem:[%s656 + $0x78] sm:$0xff] %v6064
        %6089 = vst [vmem:[%s656 + $0x80] sm:$0xff] %v6065
        %6090 = vst [vmem:[%s656 + $0x88] sm:$0xff] %v6066
        %6091 = vst [vmem:[%s656 + $0x90] sm:$0xff] %v6067
        %6092 = vst [vmem:[%s656 + $0x98] sm:$0xff] %v6068
        %6093 = vst [vmem:[%s656 + $0xa0] sm:$0xff] %v6069
        %6094 = vst [vmem:[%s656 + $0xa8] sm:$0xff] %v6070
        %6095 = vst [vmem:[%s656 + $0xb0] sm:$0xff] %v6071
        %6096 = vst [vmem:[%s656 + $0xb8] sm:$0xff] %v6072
        %s6097 = sand.u32 %s386, 1
        %s6098 = scalar_lea.sflag [#allocation4], %s6097
        %s6099 = sand.u32 %s386, 1
        %s6100 = smul.addr %s6099, 192
        %s6101 = scalar_lea.vmem [#allocation17], %s6100
        // Predicated region
        $region121: #{tpu_custom_call.1} parent=83 // pred_check
          %p6102 = pneg %p396
        $region122: #{tpu_custom_call.1} parent=83 // pred_check_branch
          %6104 = sbr.rel (%p6102) target = $region124
        $region123: #{tpu_custom_call.1} parent=83 // pred_region
          %s6105 = smul.u32 4, %s37
          %s6107 = ssub.s32 3072, 3072
          %6108 = vsyncadd %s6098, %s6107
          %s6109 = smul.addr %s6105, 6
          %s6110 = smul.addr %s6109, 128
          %s6111 = scalar_lea.hbm %s16, %s6110
          %s6112 = sshll.u32 %s6101, 4
          %s6113 = int_to_ptr.vmem [resolvable:$true] %s6112
          %6118 = dma.vmem_to_hbm [thread:$0]  %s6113, 3072, %s6111, %s6098, 768, 768, 48
        $region124: #{tpu_custom_call.1} parent=83 // pred_fallthru
          _
      $region84: #{tpu_custom_call.1} parent=5 // pred_fallthru
        _
      %p6119 = scmp.le.s32.totalorder 2, %s32
      // Predicated region
      $region125: #{tpu_custom_call.1} parent=5 // pred_check
        %p6120 = pneg %p6119
      $region126: #{tpu_custom_call.1} parent=5 // pred_check_branch
        %6122 = sbr.rel (%p6120) target = $region128
      $region127: #{tpu_custom_call.1} parent=5 // pred_region
        %s6123 = ssub.s32 %s32, 2
        // Predicated region
        $region129: #{tpu_custom_call.1} parent=127 // pred_check
          %p6124 = pneg %p402
        $region130: #{tpu_custom_call.1} parent=127 // pred_check_branch
          %6126 = sbr.rel (%p6124) target = $region132
        $region131: #{tpu_custom_call.1} parent=127 // pred_region
          %s6127 = sand.u32 %s387, 1
          %s6128 = scalar_lea.sflag [#allocation4], %s6127
          %s6129 = sand.u32 %s387, 1
          %s6130 = smul.addr %s6129, 192
          %s6131 = scalar_lea.vmem [#allocation17], %s6130
          %6132 = dma.done %s6128, 3072
        $region132: #{tpu_custom_call.1} parent=127 // pred_fallthru
          _
      $region128: #{tpu_custom_call.1} parent=5 // pred_fallthru
        _
    $region6: #{tpu_custom_call.1} parent=1 // loop_footer
      %s36 = sadd.s32 1, %s32
    $region7: #{tpu_custom_call.1} parent=1 // loop_footer_branch
      %31 = sbr.rel target = $region3
    $region8: #{tpu_custom_call.1} parent=1 // loop_exit
      _
    %6133 = vsyncpa [#allocation3], 1
    %s6134 = scalar_lea.sflag [#allocation3], 1
    %6135 = vsyncpa %s6134, 1
    %6136 = vsyncpa [#allocation6], 1
    %6137 = vsyncpa [#allocation9], 1
    %6138 = vsyncpa [#allocation12], 1
    %6139 = vsyncpa [#allocation15], 1
    %6140 = vsyncpa [#allocation4], 1
    %s6141 = scalar_lea.sflag [#allocation4], 1
    %6142 = vsyncpa %s6141, 1

</llo_original>
